<compile_context>
chip_gen: v5e
topology: v5e:2x2
jax: 0.10.0
libtpu: 0.0.40
codegen_flags: <defaults>
</compile_context>

<pallas_src>
import functools

import jax
import jax.numpy as jnp
from jax import lax
from jax.experimental import pallas as pl
from jax.experimental.pallas import tpu as pltpu


def _wsconv2d_kernel(x_ref, w_ref, b_ref, o_ref, *, ksize, wp, l_out):
    """One (image, C_out-tile) grid step.

    x_ref: (1, C_in, L_in)     flattened zero-padded image, row-major (Hp, Wp)
    w_ref: (k*k, TCO, C_in)    scale-folded weights, one (TCO, C_in) per tap
    b_ref: (TCO, 1)            bias
    o_ref: (1, TCO, L_out)     L_out = H_out * Wp (junk cols cropped in wrapper)
    """
    x = x_ref[0].astype(jnp.float32)                 # (C_in, L_in)
    c_in = x.shape[0]
    tco = o_ref.shape[1]

    acc = jnp.zeros((tco, l_out), jnp.float32)
    for i in range(ksize):                           # static 3x3 -> unrolled, 9 MXU dots
        for j in range(ksize):
            off = i * wp + j
            patch = lax.slice(x, (0, off), (c_in, off + l_out))   # (C_in, L_out)
            w_tap = w_ref[i * ksize + j]                           # (TCO, C_in)
            acc += jnp.dot(
                w_tap.astype(jnp.float32),
                patch,
                preferred_element_type=jnp.float32,
                precision=lax.Precision.HIGHEST,
            )

    acc += b_ref[...].astype(jnp.float32)            # (TCO, 1) broadcast over lanes
    o_ref[0, :, :] = acc.astype(o_ref.dtype)


def ws_conv2d(x, weight, bias, *, stride=1, padding=1, gain=2):
    """Forward of PACGAN WSConv2d (NCHW), weight in PyTorch OIHW layout."""
    if stride != 1:
        # TODO(synk): strided WSConv2d not implemented in the Pallas kernel.
        raise NotImplementedError("only stride=1 is supported")

    n, c_in, h, w = x.shape
    c_out, c_in_w, k, k2 = weight.shape
    assert c_in == c_in_w and k == k2

    scale = (gain / (k * k * c_in)) ** 0.5
    # Fold the runtime activation scale into the tiny weight tensor.
    w_taps = weight.astype(jnp.float32) * jnp.float32(scale)       # (C_out, C_in, k, k)
    w_taps = jnp.transpose(w_taps, (2, 3, 0, 1)).reshape(k * k, c_out, c_in)
    bias2d = bias.astype(jnp.float32).reshape(c_out, 1)

    hp, wp = h + 2 * padding, w + 2 * padding
    h_out = hp - k + 1
    w_out = wp - k + 1
    l_out = h_out * wp                                  # includes (wp - w_out) junk cols/row
    # Largest flat index read = (k-1)*wp + (k-1) + l_out - 1; pad past it and
    # round the lane dim up to a multiple of 128.
    l_need = (k - 1) * wp + (k - 1) + l_out
    l_in = pl.cdiv(l_need, 128) * 128

    x_pad = jnp.pad(x, ((0, 0), (0, 0), (padding, padding), (padding, padding)))
    x_flat = x_pad.reshape(n, c_in, hp * wp)
    x_flat = jnp.pad(x_flat, ((0, 0), (0, 0), (0, l_in - hp * wp)))

    # Tile output channels so large layers stay within the scoped VMEM budget.
    tco = c_out if c_out <= 128 else 128
    grid = (n, pl.cdiv(c_out, tco))

    kernel = functools.partial(_wsconv2d_kernel, ksize=k, wp=wp, l_out=l_out)

    out_flat = pl.pallas_call(
        kernel,
        out_shape=jax.ShapeDtypeStruct((n, c_out, l_out), x.dtype),
        grid_spec=pltpu.PrefetchScalarGridSpec(
            num_scalar_prefetch=0,
            grid=grid,
            in_specs=[
                pl.BlockSpec((1, c_in, l_in), lambda i, j: (i, 0, 0)),
                pl.BlockSpec((k * k, tco, c_in), lambda i, j: (0, j, 0)),
                pl.BlockSpec((tco, 1), lambda i, j: (j, 0)),
            ],
            out_specs=pl.BlockSpec((1, tco, l_out), lambda i, j: (i, j, 0)),
        ),
        compiler_params=pltpu.CompilerParams(
            dimension_semantics=("parallel", "parallel"),
            vmem_limit_bytes=32 * 1024 * 1024,
        ),
    )(x_flat, w_taps, bias2d)

    # Free reshape, then crop the per-row junk columns (wp -> w_out).
    out = out_flat.reshape(n, c_out, h_out, wp)[..., :w_out]
    return out


def ws_conv2d_ref(x, weight, bias, *, stride=1, padding=1, gain=2):
    """Pure-JAX reference mirroring the PyTorch forward."""
    k = weight.shape[-1]
    c_in = x.shape[1]
    scale = (gain / (k * k * c_in)) ** 0.5
    y = lax.conv_general_dilated(
        (x * scale).astype(jnp.float32),
        weight.astype(jnp.float32),
        window_strides=(stride, stride),
        padding=((padding, padding), (padding, padding)),
        dimension_numbers=("NCHW", "OIHW", "NCHW"),
        precision=lax.Precision.HIGHEST,
    )
    return (y + bias.reshape(1, -1, 1, 1)).astype(x.dtype)


if __name__ == "__main__":
    key = jax.random.PRNGKey(0)
    kx, kw_, kb = jax.random.split(key, 3)

    n, c_in, c_out, h, w = 2, 4, 8, 16, 16
    x = jax.random.normal(kx, (n, c_in, h, w), dtype=jnp.float32)
    # Module init: nn.init.normal_(weight); bias is a learnable param (zero-init
    # in the module) -- use a small random one here to exercise the bias add.
    weight = jax.random.normal(kw_, (c_out, c_in, 3, 3), dtype=jnp.float32)
    bias = 0.1 * jax.random.normal(kb, (c_out,), dtype=jnp.float32)

    out = jax.block_until_ready(ws_conv2d(x, weight, bias))
    ref = ws_conv2d_ref(x, weight, bias)

    assert out.shape == (n, c_out, h, w), out.shape
    assert out.dtype == x.dtype
    assert jnp.allclose(out, ref, atol=5e-4, rtol=5e-4), float(
        jnp.max(jnp.abs(out - ref))
    )
    print("KERNEL_OK")
</pallas_src>

<mosaic_0001>
module attributes {stable_mosaic.version = 11 : i64} {
  func.func @_wsconv2d_kernel(%arg0: i32, %arg1: i32, %arg2: memref<1x4x384xf32, #tpu.memory_space<vmem>>, %arg3: memref<9x8x4xf32, #tpu.memory_space<vmem>>, %arg4: memref<8x1xf32, #tpu.memory_space<vmem>>, %arg5: memref<1x8x288xf32, #tpu.memory_space<vmem>>) attributes {dimension_semantics = [#tpu.dimension_semantics<parallel>, #tpu.dimension_semantics<parallel>], iteration_bounds = array<i64: 2, 1>, scalar_prefetch = 0 : i64, scratch_operands = 0 : i64, tpu.core_type = #tpu.core_type<tc>, window_params = [{transform_indices = @transform_0, window_bounds = array<i64: 1, 4, 384>}, {transform_indices = @transform_1, window_bounds = array<i64: 9, 8, 4>}, {transform_indices = @transform_2, window_bounds = array<i64: 8, 1>}, {transform_indices = @transform_3, window_bounds = array<i64: 1, 8, 288>}]} {
    %c0 = arith.constant 0 : index
    %c0_0 = arith.constant 0 : index
    %c0_1 = arith.constant 0 : index
    %0 = vector.load %arg2[%c0, %c0_0, %c0_1] : memref<1x4x384xf32, #tpu.memory_space<vmem>>, vector<1x4x384xf32>
    %1 = vector.shape_cast %0 : vector<1x4x384xf32> to vector<4x384xf32>
    %cst = arith.constant 0.000000e+00 : f32
    %2 = vector.broadcast %cst : f32 to vector<8x288xf32>
    %3 = vector.extract_strided_slice %1 {offsets = [0, 0], sizes = [4, 288], strides = [1, 1]} : vector<4x384xf32> to vector<4x288xf32>
    %c0_2 = arith.constant 0 : index
    %c0_3 = arith.constant 0 : index
    %c0_4 = arith.constant 0 : index
    %4 = vector.load %arg3[%c0_2, %c0_3, %c0_4] : memref<9x8x4xf32, #tpu.memory_space<vmem>>, vector<1x8x4xf32>
    %5 = vector.shape_cast %4 : vector<1x8x4xf32> to vector<8x4xf32>
    %cst_5 = arith.constant dense<0.000000e+00> : vector<8x288xf32>
    %6 = tpu.matmul %5, %3, %cst_5 {dimension_numbers = #tpu.dot_dimension_numbers<[1], [0], [0], [1], [0, 0, 1, 1], [], []>, precision = #tpu.contract_precision<fp32>} : vector<8x4xf32>, vector<4x288xf32>, vector<8x288xf32> -> vector<8x288xf32>
    %7 = arith.addf %2, %6 : vector<8x288xf32>
    %8 = vector.extract_strided_slice %1 {offsets = [0, 1], sizes = [4, 288], strides = [1, 1]} : vector<4x384xf32> to vector<4x288xf32>
    %c1 = arith.constant 1 : index
    %c0_6 = arith.constant 0 : index
    %c0_7 = arith.constant 0 : index
    %9 = vector.load %arg3[%c1, %c0_6, %c0_7] : memref<9x8x4xf32, #tpu.memory_space<vmem>>, vector<1x8x4xf32>
    %10 = vector.shape_cast %9 : vector<1x8x4xf32> to vector<8x4xf32>
    %cst_8 = arith.constant dense<0.000000e+00> : vector<8x288xf32>
    %11 = tpu.matmul %10, %8, %cst_8 {dimension_numbers = #tpu.dot_dimension_numbers<[1], [0], [0], [1], [0, 0, 1, 1], [], []>, precision = #tpu.contract_precision<fp32>} : vector<8x4xf32>, vector<4x288xf32>, vector<8x288xf32> -> vector<8x288xf32>
    %12 = arith.addf %7, %11 : vector<8x288xf32>
    %13 = vector.extract_strided_slice %1 {offsets = [0, 2], sizes = [4, 288], strides = [1, 1]} : vector<4x384xf32> to vector<4x288xf32>
    %c2 = arith.constant 2 : index
    %c0_9 = arith.constant 0 : index
    %c0_10 = arith.constant 0 : index
    %14 = vector.load %arg3[%c2, %c0_9, %c0_10] : memref<9x8x4xf32, #tpu.memory_space<vmem>>, vector<1x8x4xf32>
    %15 = vector.shape_cast %14 : vector<1x8x4xf32> to vector<8x4xf32>
    %cst_11 = arith.constant dense<0.000000e+00> : vector<8x288xf32>
    %16 = tpu.matmul %15, %13, %cst_11 {dimension_numbers = #tpu.dot_dimension_numbers<[1], [0], [0], [1], [0, 0, 1, 1], [], []>, precision = #tpu.contract_precision<fp32>} : vector<8x4xf32>, vector<4x288xf32>, vector<8x288xf32> -> vector<8x288xf32>
    %17 = arith.addf %12, %16 : vector<8x288xf32>
    %18 = vector.extract_strided_slice %1 {offsets = [0, 18], sizes = [4, 288], strides = [1, 1]} : vector<4x384xf32> to vector<4x288xf32>
    %c3 = arith.constant 3 : index
    %c0_12 = arith.constant 0 : index
    %c0_13 = arith.constant 0 : index
    %19 = vector.load %arg3[%c3, %c0_12, %c0_13] : memref<9x8x4xf32, #tpu.memory_space<vmem>>, vector<1x8x4xf32>
    %20 = vector.shape_cast %19 : vector<1x8x4xf32> to vector<8x4xf32>
    %cst_14 = arith.constant dense<0.000000e+00> : vector<8x288xf32>
    %21 = tpu.matmul %20, %18, %cst_14 {dimension_numbers = #tpu.dot_dimension_numbers<[1], [0], [0], [1], [0, 0, 1, 1], [], []>, precision = #tpu.contract_precision<fp32>} : vector<8x4xf32>, vector<4x288xf32>, vector<8x288xf32> -> vector<8x288xf32>
    %22 = arith.addf %17, %21 : vector<8x288xf32>
    %23 = vector.extract_strided_slice %1 {offsets = [0, 19], sizes = [4, 288], strides = [1, 1]} : vector<4x384xf32> to vector<4x288xf32>
    %c4 = arith.constant 4 : index
    %c0_15 = arith.constant 0 : index
    %c0_16 = arith.constant 0 : index
    %24 = vector.load %arg3[%c4, %c0_15, %c0_16] : memref<9x8x4xf32, #tpu.memory_space<vmem>>, vector<1x8x4xf32>
    %25 = vector.shape_cast %24 : vector<1x8x4xf32> to vector<8x4xf32>
    %cst_17 = arith.constant dense<0.000000e+00> : vector<8x288xf32>
    %26 = tpu.matmul %25, %23, %cst_17 {dimension_numbers = #tpu.dot_dimension_numbers<[1], [0], [0], [1], [0, 0, 1, 1], [], []>, precision = #tpu.contract_precision<fp32>} : vector<8x4xf32>, vector<4x288xf32>, vector<8x288xf32> -> vector<8x288xf32>
    %27 = arith.addf %22, %26 : vector<8x288xf32>
    %28 = vector.extract_strided_slice %1 {offsets = [0, 20], sizes = [4, 288], strides = [1, 1]} : vector<4x384xf32> to vector<4x288xf32>
    %c5 = arith.constant 5 : index
    %c0_18 = arith.constant 0 : index
    %c0_19 = arith.constant 0 : index
    %29 = vector.load %arg3[%c5, %c0_18, %c0_19] : memref<9x8x4xf32, #tpu.memory_space<vmem>>, vector<1x8x4xf32>
    %30 = vector.shape_cast %29 : vector<1x8x4xf32> to vector<8x4xf32>
    %cst_20 = arith.constant dense<0.000000e+00> : vector<8x288xf32>
    %31 = tpu.matmul %30, %28, %cst_20 {dimension_numbers = #tpu.dot_dimension_numbers<[1], [0], [0], [1], [0, 0, 1, 1], [], []>, precision = #tpu.contract_precision<fp32>} : vector<8x4xf32>, vector<4x288xf32>, vector<8x288xf32> -> vector<8x288xf32>
    %32 = arith.addf %27, %31 : vector<8x288xf32>
    %33 = vector.extract_strided_slice %1 {offsets = [0, 36], sizes = [4, 288], strides = [1, 1]} : vector<4x384xf32> to vector<4x288xf32>
    %c6 = arith.constant 6 : index
    %c0_21 = arith.constant 0 : index
    %c0_22 = arith.constant 0 : index
    %34 = vector.load %arg3[%c6, %c0_21, %c0_22] : memref<9x8x4xf32, #tpu.memory_space<vmem>>, vector<1x8x4xf32>
    %35 = vector.shape_cast %34 : vector<1x8x4xf32> to vector<8x4xf32>
    %cst_23 = arith.constant dense<0.000000e+00> : vector<8x288xf32>
    %36 = tpu.matmul %35, %33, %cst_23 {dimension_numbers = #tpu.dot_dimension_numbers<[1], [0], [0], [1], [0, 0, 1, 1], [], []>, precision = #tpu.contract_precision<fp32>} : vector<8x4xf32>, vector<4x288xf32>, vector<8x288xf32> -> vector<8x288xf32>
    %37 = arith.addf %32, %36 : vector<8x288xf32>
    %38 = vector.extract_strided_slice %1 {offsets = [0, 37], sizes = [4, 288], strides = [1, 1]} : vector<4x384xf32> to vector<4x288xf32>
    %c7 = arith.constant 7 : index
    %c0_24 = arith.constant 0 : index
    %c0_25 = arith.constant 0 : index
    %39 = vector.load %arg3[%c7, %c0_24, %c0_25] : memref<9x8x4xf32, #tpu.memory_space<vmem>>, vector<1x8x4xf32>
    %40 = vector.shape_cast %39 : vector<1x8x4xf32> to vector<8x4xf32>
    %cst_26 = arith.constant dense<0.000000e+00> : vector<8x288xf32>
    %41 = tpu.matmul %40, %38, %cst_26 {dimension_numbers = #tpu.dot_dimension_numbers<[1], [0], [0], [1], [0, 0, 1, 1], [], []>, precision = #tpu.contract_precision<fp32>} : vector<8x4xf32>, vector<4x288xf32>, vector<8x288xf32> -> vector<8x288xf32>
    %42 = arith.addf %37, %41 : vector<8x288xf32>
    %43 = vector.extract_strided_slice %1 {offsets = [0, 38], sizes = [4, 288], strides = [1, 1]} : vector<4x384xf32> to vector<4x288xf32>
    %c8 = arith.constant 8 : index
    %c0_27 = arith.constant 0 : index
    %c0_28 = arith.constant 0 : index
    %44 = vector.load %arg3[%c8, %c0_27, %c0_28] : memref<9x8x4xf32, #tpu.memory_space<vmem>>, vector<1x8x4xf32>
    %45 = vector.shape_cast %44 : vector<1x8x4xf32> to vector<8x4xf32>
    %cst_29 = arith.constant dense<0.000000e+00> : vector<8x288xf32>
    %46 = tpu.matmul %45, %43, %cst_29 {dimension_numbers = #tpu.dot_dimension_numbers<[1], [0], [0], [1], [0, 0, 1, 1], [], []>, precision = #tpu.contract_precision<fp32>} : vector<8x4xf32>, vector<4x288xf32>, vector<8x288xf32> -> vector<8x288xf32>
    %47 = arith.addf %42, %46 : vector<8x288xf32>
    %c0_30 = arith.constant 0 : index
    %c0_31 = arith.constant 0 : index
    %48 = vector.load %arg4[%c0_30, %c0_31] : memref<8x1xf32, #tpu.memory_space<vmem>>, vector<8x1xf32>
    %49 = vector.broadcast %48 : vector<8x1xf32> to vector<8x288xf32>
    %50 = arith.addf %47, %49 : vector<8x288xf32>
    %c0_32 = arith.constant 0 : index
    %c0_33 = arith.constant 0 : index
    %c0_34 = arith.constant 0 : index
    %51 = vector.load %arg5[%c0_32, %c0_33, %c0_34] : memref<1x8x288xf32, #tpu.memory_space<vmem>>, vector<1x8x288xf32>
    %52 = vector.shape_cast %51 : vector<1x8x288xf32> to vector<8x288xf32>
    %53 = vector.shape_cast %50 : vector<8x288xf32> to vector<1x8x288xf32>
    tpu.vector_store %arg5[%c0_32, %c0_33, %c0_34], %53 {strides = array<i32>} : memref<1x8x288xf32, #tpu.memory_space<vmem>>, vector<1x8x288xf32>,
    return
  }
  func.func @transform_0(%arg0: i32, %arg1: i32) -> (i32, i32, i32) {
    %c0_i32 = arith.constant 0 : i32
    %c0_i32_0 = arith.constant 0 : i32
    %c0_i32_1 = arith.constant 0 : i32
    return %arg0, %c0_i32, %c0_i32_0 : i32, i32, i32
  }
  func.func @transform_1(%arg0: i32, %arg1: i32) -> (i32, i32, i32) {
    %c0_i32 = arith.constant 0 : i32
    %c0_i32_0 = arith.constant 0 : i32
    %c0_i32_1 = arith.constant 0 : i32
    return %c0_i32, %arg1, %c0_i32_0 : i32, i32, i32
  }
  func.func @transform_2(%arg0: i32, %arg1: i32) -> (i32, i32) {
    %c0_i32 = arith.constant 0 : i32
    %c0_i32_0 = arith.constant 0 : i32
    return %arg1, %c0_i32 : i32, i32
  }
  func.func @transform_3(%arg0: i32, %arg1: i32) -> (i32, i32, i32) {
    %c0_i32 = arith.constant 0 : i32
    %c0_i32_0 = arith.constant 0 : i32
    return %arg0, %arg1, %c0_i32 : i32, i32, i32
  }
}

</mosaic_0001>

<llo_original>
// kernel: tpu_custom_call.1
$region0: #{tpu_custom_call.1}
  #allocation0 [shape = 'u32[]', space=smem, size = 0x4, offset = 0x4, fixed_abs, tag = 'smem constant byte address 0x4 - core index']
  #allocation1 [shape = 'u32[72,128]{1,0:T(1,128)}', space=vmem, size = 0x9000, scoped, tag = 'internal scratch']
  %s0 = inlined_call_operand.vmem [shape: f32[2,4,384], index: 0, kind: input, shape index: {}]
  %s1 = inlined_call_operand.vmem [shape: f32[9,8,4], index: 1, kind: input, shape index: {}]
  %s2 = inlined_call_operand.vmem [shape: f32[8,1], index: 2, kind: input, shape index: {}]
  %s3 = inlined_call_operand.hbm [shape: f32[2,8,288], index: 3, kind: output, shape index: {}]
  %s4 = sld [smem:[#allocation0]]
  $region45: #{tpu_custom_call.1} parent=0
    _
  %s6 = ssub.s32 1, %s4
  %s7 = scalar_select 0, %s6, %s4
  $region1: #{tpu_custom_call.1} parent=0
    #allocation2 [shape = 'u8[24576]{0}', space=vmem, size = 0x6000, scoped, tag = 'output window, operand 0']
    #allocation3 [shape = 's32[2]{0}', space=sflag, size = 0x8, scoped, tag = 'scoped memory for tpu_custom_call.1']
    %8 = vsyncpa [#allocation3], 0
    %s9 = scalar_lea.sflag [#allocation3], 1
    %10 = vsyncpa %s9, 0
    loop: start=0, step=1, limit=4
    $region2: #{tpu_custom_call.1} parent=1 // loop_pre_header
      _
    $region3: #{tpu_custom_call.1} parent=1 // loop_header
      %s12 = sphi 0, %s16
      %p13 = scmp.ge.s32.totalorder %s12, 4
      %s19 = sphi 0, %s31
      %s20 = sphi 0, %s27
      %s21 = sphi 0, %s19
      %s22 = sphi 0, %s20
      %s23 = sphi 0, %s21
      %s24 = sphi 0, %s22
      %s34 = sphi 0, %s36
      %s37 = sphi 0, %s34
      %s38 = sphi 0, %s37
      %s54 = sphi 0, %s38
      %s60 = sphi 0, %s62
      %s63 = sphi 0, %s60
      %s64 = sphi 0, %s63
      %s80 = sphi 0, %s64
      %s86 = sphi 0, %s88
      %s89 = sphi 0, %s86
      %s90 = sphi 0, %s89
      %s106 = sphi 0, %s90
      %s114 = sphi 0, %s116
      %s117 = sphi 0, %s114
      %s118 = sphi 0, %s117
      %s134 = sphi 0, %s118
    $region4: #{tpu_custom_call.1} parent=1 // loop_header_branch
      %15 = sbr.rel (%p13) target = $region8
    $region5: #{tpu_custom_call.1} parent=1 // loop_body
      %s17 = ssub.s32 %s12, 1
      %s18 = ssub.s32 %s12, 2
      %s25 = sadd.s32 1, %s20
      %p26 = scmp.ge.s32.totalorder %s25, 1
      %s27 = scalar_select %p26, 0, %s25
      %s28 = sadd.s32 1, %s19
      %s29 = scalar_select %p26, %s28, %s19
      %p30 = scmp.ge.s32.totalorder %s29, 2
      %s31 = scalar_select %p30, 0, %s29
      %s32 = ssub.s32 %s19, %s31
      %p33 = scmp.eq.s32.totalorder %s32, 0
      %s35 = sadd.s32 %s34, 1
      %s36 = scalar_select %p33, %s34, %s35
      %p39 = pneg %p33
      %p40 = scmp.eq.s32.totalorder %s12, 1
      %p41 = por %p39, %p40
      %p42 = scmp.ne.s32.totalorder %s34, %s37
      %p43 = scmp.eq.s32.totalorder %s12, 0
      %p44 = por %p42, %p43
      %p45 = scmp.ne.s32.totalorder %s34, %s37
      %p46 = scmp.eq.s32.totalorder %s17, 1
      %p47 = por %p45, %p46
      %p48 = scmp.ne.s32.totalorder %s37, %s38
      %p49 = scmp.eq.s32.totalorder %s17, 0
      %p50 = por %p48, %p49
      %p51 = scmp.ne.s32.totalorder %s37, %s38
      %p52 = scmp.eq.s32.totalorder %s18, 1
      %p53 = por %p51, %p52
      %p55 = scmp.ne.s32.totalorder %s38, %s54
      %p56 = scmp.eq.s32.totalorder %s18, 0
      %p57 = por %p55, %p56
      %s58 = ssub.s32 %s20, %s27
      %p59 = scmp.eq.s32.totalorder %s58, 0
      %s61 = sadd.s32 %s60, 1
      %s62 = scalar_select %p59, %s60, %s61
      %p65 = pneg %p59
      %p66 = scmp.eq.s32.totalorder %s12, 1
      %p67 = por %p65, %p66
      %p68 = scmp.ne.s32.totalorder %s60, %s63
      %p69 = scmp.eq.s32.totalorder %s12, 0
      %p70 = por %p68, %p69
      %p71 = scmp.ne.s32.totalorder %s60, %s63
      %p72 = scmp.eq.s32.totalorder %s17, 1
      %p73 = por %p71, %p72
      %p74 = scmp.ne.s32.totalorder %s63, %s64
      %p75 = scmp.eq.s32.totalorder %s17, 0
      %p76 = por %p74, %p75
      %p77 = scmp.ne.s32.totalorder %s63, %s64
      %p78 = scmp.eq.s32.totalorder %s18, 1
      %p79 = por %p77, %p78
      %p81 = scmp.ne.s32.totalorder %s64, %s80
      %p82 = scmp.eq.s32.totalorder %s18, 0
      %p83 = por %p81, %p82
      %s84 = ssub.s32 %s20, %s27
      %p85 = scmp.eq.s32.totalorder %s84, 0
      %s87 = sadd.s32 %s86, 1
      %s88 = scalar_select %p85, %s86, %s87
      %p91 = pneg %p85
      %p92 = scmp.eq.s32.totalorder %s12, 1
      %p93 = por %p91, %p92
      %p94 = scmp.ne.s32.totalorder %s86, %s89
      %p95 = scmp.eq.s32.totalorder %s12, 0
      %p96 = por %p94, %p95
      %p97 = scmp.ne.s32.totalorder %s86, %s89
      %p98 = scmp.eq.s32.totalorder %s17, 1
      %p99 = por %p97, %p98
      %p100 = scmp.ne.s32.totalorder %s89, %s90
      %p101 = scmp.eq.s32.totalorder %s17, 0
      %p102 = por %p100, %p101
      %p103 = scmp.ne.s32.totalorder %s89, %s90
      %p104 = scmp.eq.s32.totalorder %s18, 1
      %p105 = por %p103, %p104
      %p107 = scmp.ne.s32.totalorder %s90, %s106
      %p108 = scmp.eq.s32.totalorder %s18, 0
      %p109 = por %p107, %p108
      %s110 = ssub.s32 %s19, %s31
      %s111 = ssub.s32 %s20, %s27
      %s112 = sor.u32 %s110, %s111
      %p113 = scmp.eq.s32.totalorder %s112, 0
      %s115 = sadd.s32 %s114, 1
      %s116 = scalar_select %p113, %s114, %s115
      %p119 = pneg %p113
      %p120 = scmp.eq.s32.totalorder %s12, 1
      %p121 = por %p119, %p120
      %p122 = scmp.ne.s32.totalorder %s114, %s117
      %p123 = scmp.eq.s32.totalorder %s12, 0
      %p124 = por %p122, %p123
      %p125 = scmp.ne.s32.totalorder %s114, %s117
      %p126 = scmp.eq.s32.totalorder %s17, 1
      %p127 = por %p125, %p126
      %p128 = scmp.ne.s32.totalorder %s117, %s118
      %p129 = scmp.eq.s32.totalorder %s17, 0
      %p130 = por %p128, %p129
      %p131 = scmp.ne.s32.totalorder %s117, %s118
      %p132 = scmp.eq.s32.totalorder %s18, 1
      %p133 = por %p131, %p132
      %p135 = scmp.ne.s32.totalorder %s118, %s134
      %p136 = scmp.eq.s32.totalorder %s18, 0
      %p137 = por %p135, %p136
      %p138 = scmp.le.s32.totalorder 1, %s12
      %p139 = scmp.lt.s32.totalorder %s12, 3
      %p140 = pnand %p138, %p139
      %p141 = pneg %p140
      // Predicated region
      $region9: #{tpu_custom_call.1} parent=5 // pred_check
        _
      $region10: #{tpu_custom_call.1} parent=5 // pred_check_branch
        %143 = sbr.rel (%p140) target = $region12
      $region11: #{tpu_custom_call.1} parent=5 // pred_region
        %s144 = ssub.s32 %s12, 1
        // Predicated region
        $region13: #{tpu_custom_call.1} parent=11 // pred_check
          %p145 = pneg %p76
        $region14: #{tpu_custom_call.1} parent=11 // pred_check_branch
          %147 = sbr.rel (%p145) target = $region16
        $region15: #{tpu_custom_call.1} parent=11 // pred_region
          %p148 = scmp.lt.s32.totalorder %s22, 0
          %s149 = scalar_select %p148, %s22, 0
          %s150 = smul.addr %s149, 8
          %s151 = scalar_lea.vmem %s1, %s150
        $region16: #{tpu_custom_call.1} parent=11 // pred_fallthru
          _
        // Predicated region
        $region17: #{tpu_custom_call.1} parent=11 // pred_check
          %p152 = pneg %p102
        $region18: #{tpu_custom_call.1} parent=11 // pred_check_branch
          %154 = sbr.rel (%p152) target = $region20
        $region19: #{tpu_custom_call.1} parent=11 // pred_region
          %p155 = scmp.lt.s32.totalorder %s22, 0
          %s156 = scalar_select %p155, %s22, 0
          %s157 = smul.addr %s156, 8
          %s158 = scalar_lea.vmem %s2, %s157
        $region20: #{tpu_custom_call.1} parent=11 // pred_fallthru
          _
      $region12: #{tpu_custom_call.1} parent=5 // pred_fallthru
        _
      %p159 = scmp.lt.s32.totalorder %s12, 2
      // Predicated region
      $region21: #{tpu_custom_call.1} parent=5 // pred_check
        %p160 = pneg %p159
      $region22: #{tpu_custom_call.1} parent=5 // pred_check_branch
        %162 = sbr.rel (%p160) target = $region24
      $region23: #{tpu_custom_call.1} parent=5 // pred_region
        // Predicated region
        $region25: #{tpu_custom_call.1} parent=23 // pred_check
          %p163 = pneg %p44
        $region26: #{tpu_custom_call.1} parent=23 // pred_check_branch
          %165 = sbr.rel (%p163) target = $region28
        $region27: #{tpu_custom_call.1} parent=23 // pred_region
          %p166 = scmp.lt.s32.totalorder %s19, 1
          %s167 = scalar_select %p166, %s19, 1
          %s168 = smul.addr %s167, 3
          %s169 = smul.addr %s168, 4
          %s170 = scalar_lea.vmem %s0, %s169
        $region28: #{tpu_custom_call.1} parent=23 // pred_fallthru
          _
      $region24: #{tpu_custom_call.1} parent=5 // pred_fallthru
        _
      %p171 = scmp.le.s32.totalorder 1, %s12
      %p172 = scmp.lt.s32.totalorder %s12, 3
      %p173 = pnand %p171, %p172
      %p174 = pneg %p173
      // Predicated region
      $region29: #{tpu_custom_call.1} parent=5 // pred_check
        _
      $region30: #{tpu_custom_call.1} parent=5 // pred_check_branch
        %176 = sbr.rel (%p173) target = $region32
      $region31: #{tpu_custom_call.1} parent=5 // pred_region
        %s177 = ssub.s32 %s12, 1
        %p178 = scmp.lt.s32.totalorder %s21, 1
        %s179 = scalar_select %p178, %s21, 1
        %s180 = smul.addr %s179, 3
        %s181 = smul.addr %s180, 4
        %s182 = scalar_lea.vmem %s0, %s181
        %p183 = pneg %p50
        %p184 = pneg %p47
        %p185 = scmp.lt.s32.totalorder %s22, 0
        %s186 = scalar_select %p185, %s22, 0
        %s187 = smul.addr %s186, 8
        %s188 = scalar_lea.vmem %s1, %s187
        %p189 = pneg %p76
        %p190 = pneg %p73
        %p191 = scmp.lt.s32.totalorder %s22, 0
        %s192 = scalar_select %p191, %s22, 0
        %s193 = smul.addr %s192, 8
        %s194 = scalar_lea.vmem %s2, %s193
        %p195 = pneg %p102
        %p196 = pneg %p99
        %p197 = pneg %p130
        %p198 = pneg %p127
        %s199 = sand.u32 %s117, 1
        %s200 = scalar_lea.sflag [#allocation3], %s199
        %s201 = sand.u32 %s117, 1
        %s202 = smul.addr %s201, 24
        %s203 = scalar_lea.vmem [#allocation2], %s202
        %p204 = scmp.lt.s32.totalorder %s21, 1
        %s205 = scalar_select %p204, %s21, 1
        %s206 = smul.addr %s205, 3
        %s207 = smul.addr %s206, 4
        %s208 = scalar_lea.vmem %s0, %s207
        %p209 = scmp.lt.s32.totalorder %s22, 0
        %s210 = scalar_select %p209, %s22, 0
        %s211 = smul.addr %s210, 8
        %s212 = scalar_lea.vmem %s1, %s211
        %p213 = scmp.lt.s32.totalorder %s22, 0
        %s214 = scalar_select %p213, %s22, 0
        %s215 = smul.addr %s214, 8
        %s216 = scalar_lea.vmem %s2, %s215
        %v217 = vld [vmem:[%s208] sm:$0xff]
        %v218 = vld [vmem:[%s208 + $0x8] sm:$0xf]
        %v219 = vld [vmem:[%s212] sm:$0xff]
        %s220 = scalar_lea.vmem %s212, 8
        %v221 = vld [vmem:[%s220] sm:$0xff]
        %224 = vst [vmem:[#allocation1] ss:$2 sm:$0xff] %v217
        %s225 = scalar_lea.vmem [#allocation1], 16
        %226 = vst [vmem:[%s225] ss:$2 sm:$0xff] %v218
        %v227 = vld.sshfl [vmem:[#allocation1] sm:$0xff pattern:$0x75316420]
        %v228 = vld.sshfl [vmem:[#allocation1 + $0x8] sm:$0xff pattern:$0x75316420]
        %v229 = vld.sshfl [vmem:[#allocation1 + $0x10] sm:$0xff pattern:$0x75316420]
        %230 = vrot.lane.b32.xlu0 %v227, 127
        %v231 = vpop.permute.xlu0 %230
        %232 = vrot.lane.b32.xlu0 %v228, 127
        %v233 = vpop.permute.xlu0 %232
        %234 = vrot.lane.b32.xlu0 %v229, 127
        %v235 = vpop.permute.xlu0 %234
        %vm236 = vcmask 1039360
        %v237 = vsel %vm236, %v231, %v233
        %v238 = vsel %vm236, %v233, %v235
        %vm239 = vcmask 31744
        %v241 = vsel %vm239, %v221, 0
        %vm243 = vcmask 1043456
        %v244 = vsel %vm243, %v237, 0
        %v246 = vsel %vm243, %v238, 0
        %v248 = vsel %vm243, %v235, 0
        %250 = vmatpush.msra.mxu0 0.0
        %251 = vmatpush.msra.mxu0 0.0
        %252 = vmatpush.msra.mxu0 0.0
        %253 = vmatpush.msra.mxu0 0.0
        %254 = vmatpush.msra.mxu0 0.0
        %255 = vmatpush.msra.mxu0 0.0
        %256 = vmatpush.msra.mxu0 0.0
        %257 = vmatpush.msra.mxu0 0.0
        %258 = vmatpush.msra.mxu0 0.0
        %259 = vmatpush.msra.mxu0 0.0
        %260 = vmatpush.msra.mxu0 0.0
        %261 = vmatpush.msra.mxu0 0.0
        %262 = vmatpush.msra.mxu0 0.0
        %263 = vmatpush.msra.mxu0 0.0
        %264 = vmatpush.msra.mxu0 0.0
        %v265 = vand.u32 %v244, 4294901760
        %266 = vmatpush.msra.mxu0 %v265
        %v267 = vand.u32 %v241, 4294901760
        %v268 = vsub.f32 %v241, %v267
        %v269 = vand.u32 %v268, 4294901760
        %v270 = vsub.f32 %v268, %v269
        %v271 = vand.u32 %v270, 4294901760
        %272 = vmatmul.f32.gmra.mxu0 %v271
        %v273 = vpop.f32.mrf.mxu0
        %v274 = vadd.f32 0.0, %v273
        %275 = vdwg.mxu0
        %276 = vmatpush.msra.mxu0 0.0
        %277 = vmatpush.msra.mxu0 0.0
        %278 = vmatpush.msra.mxu0 0.0
        %279 = vmatpush.msra.mxu0 0.0
        %280 = vmatpush.msra.mxu0 0.0
        %281 = vmatpush.msra.mxu0 0.0
        %282 = vmatpush.msra.mxu0 0.0
        %283 = vmatpush.msra.mxu0 0.0
        %284 = vmatpush.msra.mxu0 0.0
        %285 = vmatpush.msra.mxu0 0.0
        %286 = vmatpush.msra.mxu0 0.0
        %287 = vmatpush.msra.mxu0 0.0
        %288 = vmatpush.msra.mxu0 0.0
        %289 = vmatpush.msra.mxu0 0.0
        %290 = vmatpush.msra.mxu0 0.0
        %v291 = vand.u32 %v244, 4294901760
        %v292 = vsub.f32 %v244, %v291
        %v293 = vand.u32 %v292, 4294901760
        %v294 = vsub.f32 %v292, %v293
        %v295 = vand.u32 %v294, 4294901760
        %296 = vmatpush.msra.mxu0 %v295
        %v297 = vand.u32 %v241, 4294901760
        %298 = vmatmul.f32.gmra.mxu0 %v297
        %v299 = vpop.f32.mrf.mxu0
        %v300 = vadd.f32 %v274, %v299
        %301 = vdwg.mxu0
        %302 = vmatpush.msra.mxu0 0.0
        %303 = vmatpush.msra.mxu0 0.0
        %304 = vmatpush.msra.mxu0 0.0
        %305 = vmatpush.msra.mxu0 0.0
        %306 = vmatpush.msra.mxu0 0.0
        %307 = vmatpush.msra.mxu0 0.0
        %308 = vmatpush.msra.mxu0 0.0
        %309 = vmatpush.msra.mxu0 0.0
        %310 = vmatpush.msra.mxu0 0.0
        %311 = vmatpush.msra.mxu0 0.0
        %312 = vmatpush.msra.mxu0 0.0
        %313 = vmatpush.msra.mxu0 0.0
        %314 = vmatpush.msra.mxu0 0.0
        %315 = vmatpush.msra.mxu0 0.0
        %316 = vmatpush.msra.mxu0 0.0
        %v317 = vand.u32 %v244, 4294901760
        %v318 = vsub.f32 %v244, %v317
        %319 = vmatpush.msra.mxu0 %v318
        %v320 = vand.u32 %v241, 4294901760
        %v321 = vsub.f32 %v241, %v320
        %322 = vmatmul.f32.gmra.mxu0 %v321
        %v323 = vpop.f32.mrf.mxu0
        %v324 = vadd.f32 %v300, %v323
        %325 = vdwg.mxu0
        %326 = vmatpush.msra.mxu0 0.0
        %327 = vmatpush.msra.mxu0 0.0
        %328 = vmatpush.msra.mxu0 0.0
        %329 = vmatpush.msra.mxu0 0.0
        %330 = vmatpush.msra.mxu0 0.0
        %331 = vmatpush.msra.mxu0 0.0
        %332 = vmatpush.msra.mxu0 0.0
        %333 = vmatpush.msra.mxu0 0.0
        %334 = vmatpush.msra.mxu0 0.0
        %335 = vmatpush.msra.mxu0 0.0
        %336 = vmatpush.msra.mxu0 0.0
        %337 = vmatpush.msra.mxu0 0.0
        %338 = vmatpush.msra.mxu0 0.0
        %339 = vmatpush.msra.mxu0 0.0
        %340 = vmatpush.msra.mxu0 0.0
        %v341 = vand.u32 %v244, 4294901760
        %342 = vmatpush.msra.mxu0 %v341
        %v343 = vand.u32 %v241, 4294901760
        %v344 = vsub.f32 %v241, %v343
        %v345 = vand.u32 %v344, 4294901760
        %346 = vmatmul.f32.gmra.mxu0 %v345
        %v347 = vpop.f32.mrf.mxu0
        %v348 = vadd.f32 %v324, %v347
        %349 = vdwg.mxu0
        %350 = vmatpush.msra.mxu0 0.0
        %351 = vmatpush.msra.mxu0 0.0
        %352 = vmatpush.msra.mxu0 0.0
        %353 = vmatpush.msra.mxu0 0.0
        %354 = vmatpush.msra.mxu0 0.0
        %355 = vmatpush.msra.mxu0 0.0
        %356 = vmatpush.msra.mxu0 0.0
        %357 = vmatpush.msra.mxu0 0.0
        %358 = vmatpush.msra.mxu0 0.0
        %359 = vmatpush.msra.mxu0 0.0
        %360 = vmatpush.msra.mxu0 0.0
        %361 = vmatpush.msra.mxu0 0.0
        %362 = vmatpush.msra.mxu0 0.0
        %363 = vmatpush.msra.mxu0 0.0
        %364 = vmatpush.msra.mxu0 0.0
        %v365 = vand.u32 %v244, 4294901760
        %v366 = vsub.f32 %v244, %v365
        %v367 = vand.u32 %v366, 4294901760
        %368 = vmatpush.msra.mxu0 %v367
        %v369 = vand.u32 %v241, 4294901760
        %370 = vmatmul.f32.gmra.mxu0 %v369
        %v371 = vpop.f32.mrf.mxu0
        %v372 = vadd.f32 %v348, %v371
        %373 = vdwg.mxu0
        %374 = vmatpush.msra.mxu0 0.0
        %375 = vmatpush.msra.mxu0 0.0
        %376 = vmatpush.msra.mxu0 0.0
        %377 = vmatpush.msra.mxu0 0.0
        %378 = vmatpush.msra.mxu0 0.0
        %379 = vmatpush.msra.mxu0 0.0
        %380 = vmatpush.msra.mxu0 0.0
        %381 = vmatpush.msra.mxu0 0.0
        %382 = vmatpush.msra.mxu0 0.0
        %383 = vmatpush.msra.mxu0 0.0
        %384 = vmatpush.msra.mxu0 0.0
        %385 = vmatpush.msra.mxu0 0.0
        %386 = vmatpush.msra.mxu0 0.0
        %387 = vmatpush.msra.mxu0 0.0
        %388 = vmatpush.msra.mxu0 0.0
        %v389 = vand.u32 %v244, 4294901760
        %390 = vmatpush.msra.mxu0 %v389
        %v391 = vand.u32 %v241, 4294901760
        %392 = vmatmul.f32.gmra.mxu0 %v391
        %v393 = vpop.f32.mrf.mxu0
        %v394 = vadd.f32 %v372, %v393
        %395 = vdwg.mxu0
        %396 = vmatpush.msra.mxu0 0.0
        %397 = vmatpush.msra.mxu0 0.0
        %398 = vmatpush.msra.mxu0 0.0
        %399 = vmatpush.msra.mxu0 0.0
        %400 = vmatpush.msra.mxu0 0.0
        %401 = vmatpush.msra.mxu0 0.0
        %402 = vmatpush.msra.mxu0 0.0
        %403 = vmatpush.msra.mxu0 0.0
        %404 = vmatpush.msra.mxu0 0.0
        %405 = vmatpush.msra.mxu0 0.0
        %406 = vmatpush.msra.mxu0 0.0
        %407 = vmatpush.msra.mxu0 0.0
        %408 = vmatpush.msra.mxu0 0.0
        %409 = vmatpush.msra.mxu0 0.0
        %410 = vmatpush.msra.mxu0 0.0
        %v411 = vand.u32 %v246, 4294901760
        %412 = vmatpush.msra.mxu0 %v411
        %v413 = vand.u32 %v241, 4294901760
        %v414 = vsub.f32 %v241, %v413
        %v415 = vand.u32 %v414, 4294901760
        %v416 = vsub.f32 %v414, %v415
        %v417 = vand.u32 %v416, 4294901760
        %418 = vmatmul.f32.gmra.mxu0 %v417
        %v419 = vpop.f32.mrf.mxu0
        %v420 = vadd.f32 0.0, %v419
        %421 = vdwg.mxu0
        %422 = vmatpush.msra.mxu0 0.0
        %423 = vmatpush.msra.mxu0 0.0
        %424 = vmatpush.msra.mxu0 0.0
        %425 = vmatpush.msra.mxu0 0.0
        %426 = vmatpush.msra.mxu0 0.0
        %427 = vmatpush.msra.mxu0 0.0
        %428 = vmatpush.msra.mxu0 0.0
        %429 = vmatpush.msra.mxu0 0.0
        %430 = vmatpush.msra.mxu0 0.0
        %431 = vmatpush.msra.mxu0 0.0
        %432 = vmatpush.msra.mxu0 0.0
        %433 = vmatpush.msra.mxu0 0.0
        %434 = vmatpush.msra.mxu0 0.0
        %435 = vmatpush.msra.mxu0 0.0
        %436 = vmatpush.msra.mxu0 0.0
        %v437 = vand.u32 %v246, 4294901760
        %v438 = vsub.f32 %v246, %v437
        %v439 = vand.u32 %v438, 4294901760
        %v440 = vsub.f32 %v438, %v439
        %v441 = vand.u32 %v440, 4294901760
        %442 = vmatpush.msra.mxu0 %v441
        %v443 = vand.u32 %v241, 4294901760
        %444 = vmatmul.f32.gmra.mxu0 %v443
        %v445 = vpop.f32.mrf.mxu0
        %v446 = vadd.f32 %v420, %v445
        %447 = vdwg.mxu0
        %448 = vmatpush.msra.mxu0 0.0
        %449 = vmatpush.msra.mxu0 0.0
        %450 = vmatpush.msra.mxu0 0.0
        %451 = vmatpush.msra.mxu0 0.0
        %452 = vmatpush.msra.mxu0 0.0
        %453 = vmatpush.msra.mxu0 0.0
        %454 = vmatpush.msra.mxu0 0.0
        %455 = vmatpush.msra.mxu0 0.0
        %456 = vmatpush.msra.mxu0 0.0
        %457 = vmatpush.msra.mxu0 0.0
        %458 = vmatpush.msra.mxu0 0.0
        %459 = vmatpush.msra.mxu0 0.0
        %460 = vmatpush.msra.mxu0 0.0
        %461 = vmatpush.msra.mxu0 0.0
        %462 = vmatpush.msra.mxu0 0.0
        %v463 = vand.u32 %v246, 4294901760
        %v464 = vsub.f32 %v246, %v463
        %465 = vmatpush.msra.mxu0 %v464
        %v466 = vand.u32 %v241, 4294901760
        %v467 = vsub.f32 %v241, %v466
        %468 = vmatmul.f32.gmra.mxu0 %v467
        %v469 = vpop.f32.mrf.mxu0
        %v470 = vadd.f32 %v446, %v469
        %471 = vdwg.mxu0
        %472 = vmatpush.msra.mxu0 0.0
        %473 = vmatpush.msra.mxu0 0.0
        %474 = vmatpush.msra.mxu0 0.0
        %475 = vmatpush.msra.mxu0 0.0
        %476 = vmatpush.msra.mxu0 0.0
        %477 = vmatpush.msra.mxu0 0.0
        %478 = vmatpush.msra.mxu0 0.0
        %479 = vmatpush.msra.mxu0 0.0
        %480 = vmatpush.msra.mxu0 0.0
        %481 = vmatpush.msra.mxu0 0.0
        %482 = vmatpush.msra.mxu0 0.0
        %483 = vmatpush.msra.mxu0 0.0
        %484 = vmatpush.msra.mxu0 0.0
        %485 = vmatpush.msra.mxu0 0.0
        %486 = vmatpush.msra.mxu0 0.0
        %v487 = vand.u32 %v246, 4294901760
        %488 = vmatpush.msra.mxu0 %v487
        %v489 = vand.u32 %v241, 4294901760
        %v490 = vsub.f32 %v241, %v489
        %v491 = vand.u32 %v490, 4294901760
        %492 = vmatmul.f32.gmra.mxu0 %v491
        %v493 = vpop.f32.mrf.mxu0
        %v494 = vadd.f32 %v470, %v493
        %495 = vdwg.mxu0
        %496 = vmatpush.msra.mxu0 0.0
        %497 = vmatpush.msra.mxu0 0.0
        %498 = vmatpush.msra.mxu0 0.0
        %499 = vmatpush.msra.mxu0 0.0
        %500 = vmatpush.msra.mxu0 0.0
        %501 = vmatpush.msra.mxu0 0.0
        %502 = vmatpush.msra.mxu0 0.0
        %503 = vmatpush.msra.mxu0 0.0
        %504 = vmatpush.msra.mxu0 0.0
        %505 = vmatpush.msra.mxu0 0.0
        %506 = vmatpush.msra.mxu0 0.0
        %507 = vmatpush.msra.mxu0 0.0
        %508 = vmatpush.msra.mxu0 0.0
        %509 = vmatpush.msra.mxu0 0.0
        %510 = vmatpush.msra.mxu0 0.0
        %v511 = vand.u32 %v246, 4294901760
        %v512 = vsub.f32 %v246, %v511
        %v513 = vand.u32 %v512, 4294901760
        %514 = vmatpush.msra.mxu0 %v513
        %v515 = vand.u32 %v241, 4294901760
        %516 = vmatmul.f32.gmra.mxu0 %v515
        %v517 = vpop.f32.mrf.mxu0
        %v518 = vadd.f32 %v494, %v517
        %519 = vdwg.mxu0
        %520 = vmatpush.msra.mxu0 0.0
        %521 = vmatpush.msra.mxu0 0.0
        %522 = vmatpush.msra.mxu0 0.0
        %523 = vmatpush.msra.mxu0 0.0
        %524 = vmatpush.msra.mxu0 0.0
        %525 = vmatpush.msra.mxu0 0.0
        %526 = vmatpush.msra.mxu0 0.0
        %527 = vmatpush.msra.mxu0 0.0
        %528 = vmatpush.msra.mxu0 0.0
        %529 = vmatpush.msra.mxu0 0.0
        %530 = vmatpush.msra.mxu0 0.0
        %531 = vmatpush.msra.mxu0 0.0
        %532 = vmatpush.msra.mxu0 0.0
        %533 = vmatpush.msra.mxu0 0.0
        %534 = vmatpush.msra.mxu0 0.0
        %v535 = vand.u32 %v246, 4294901760
        %536 = vmatpush.msra.mxu0 %v535
        %v537 = vand.u32 %v241, 4294901760
        %538 = vmatmul.f32.gmra.mxu0 %v537
        %v539 = vpop.f32.mrf.mxu0
        %v540 = vadd.f32 %v518, %v539
        %541 = vdwg.mxu0
        %542 = vmatpush.msra.mxu0 0.0
        %543 = vmatpush.msra.mxu0 0.0
        %544 = vmatpush.msra.mxu0 0.0
        %545 = vmatpush.msra.mxu0 0.0
        %546 = vmatpush.msra.mxu0 0.0
        %547 = vmatpush.msra.mxu0 0.0
        %548 = vmatpush.msra.mxu0 0.0
        %549 = vmatpush.msra.mxu0 0.0
        %550 = vmatpush.msra.mxu0 0.0
        %551 = vmatpush.msra.mxu0 0.0
        %552 = vmatpush.msra.mxu0 0.0
        %553 = vmatpush.msra.mxu0 0.0
        %554 = vmatpush.msra.mxu0 0.0
        %555 = vmatpush.msra.mxu0 0.0
        %556 = vmatpush.msra.mxu0 0.0
        %v557 = vand.u32 %v248, 4294901760
        %558 = vmatpush.msra.mxu0 %v557
        %v559 = vand.u32 %v241, 4294901760
        %v560 = vsub.f32 %v241, %v559
        %v561 = vand.u32 %v560, 4294901760
        %v562 = vsub.f32 %v560, %v561
        %v563 = vand.u32 %v562, 4294901760
        %564 = vmatmul.f32.gmra.mxu0 %v563
        %v565 = vpop.f32.mrf.mxu0
        %v566 = vadd.f32 0.0, %v565
        %567 = vdwg.mxu0
        %568 = vmatpush.msra.mxu0 0.0
        %569 = vmatpush.msra.mxu0 0.0
        %570 = vmatpush.msra.mxu0 0.0
        %571 = vmatpush.msra.mxu0 0.0
        %572 = vmatpush.msra.mxu0 0.0
        %573 = vmatpush.msra.mxu0 0.0
        %574 = vmatpush.msra.mxu0 0.0
        %575 = vmatpush.msra.mxu0 0.0
        %576 = vmatpush.msra.mxu0 0.0
        %577 = vmatpush.msra.mxu0 0.0
        %578 = vmatpush.msra.mxu0 0.0
        %579 = vmatpush.msra.mxu0 0.0
        %580 = vmatpush.msra.mxu0 0.0
        %581 = vmatpush.msra.mxu0 0.0
        %582 = vmatpush.msra.mxu0 0.0
        %v583 = vand.u32 %v248, 4294901760
        %v584 = vsub.f32 %v248, %v583
        %v585 = vand.u32 %v584, 4294901760
        %v586 = vsub.f32 %v584, %v585
        %v587 = vand.u32 %v586, 4294901760
        %588 = vmatpush.msra.mxu0 %v587
        %v589 = vand.u32 %v241, 4294901760
        %590 = vmatmul.f32.gmra.mxu0 %v589
        %v591 = vpop.f32.mrf.mxu0
        %v592 = vadd.f32 %v566, %v591
        %593 = vdwg.mxu0
        %594 = vmatpush.msra.mxu0 0.0
        %595 = vmatpush.msra.mxu0 0.0
        %596 = vmatpush.msra.mxu0 0.0
        %597 = vmatpush.msra.mxu0 0.0
        %598 = vmatpush.msra.mxu0 0.0
        %599 = vmatpush.msra.mxu0 0.0
        %600 = vmatpush.msra.mxu0 0.0
        %601 = vmatpush.msra.mxu0 0.0
        %602 = vmatpush.msra.mxu0 0.0
        %603 = vmatpush.msra.mxu0 0.0
        %604 = vmatpush.msra.mxu0 0.0
        %605 = vmatpush.msra.mxu0 0.0
        %606 = vmatpush.msra.mxu0 0.0
        %607 = vmatpush.msra.mxu0 0.0
        %608 = vmatpush.msra.mxu0 0.0
        %v609 = vand.u32 %v248, 4294901760
        %v610 = vsub.f32 %v248, %v609
        %611 = vmatpush.msra.mxu0 %v610
        %v612 = vand.u32 %v241, 4294901760
        %v613 = vsub.f32 %v241, %v612
        %614 = vmatmul.f32.gmra.mxu0 %v613
        %v615 = vpop.f32.mrf.mxu0
        %v616 = vadd.f32 %v592, %v615
        %617 = vdwg.mxu0
        %618 = vmatpush.msra.mxu0 0.0
        %619 = vmatpush.msra.mxu0 0.0
        %620 = vmatpush.msra.mxu0 0.0
        %621 = vmatpush.msra.mxu0 0.0
        %622 = vmatpush.msra.mxu0 0.0
        %623 = vmatpush.msra.mxu0 0.0
        %624 = vmatpush.msra.mxu0 0.0
        %625 = vmatpush.msra.mxu0 0.0
        %626 = vmatpush.msra.mxu0 0.0
        %627 = vmatpush.msra.mxu0 0.0
        %628 = vmatpush.msra.mxu0 0.0
        %629 = vmatpush.msra.mxu0 0.0
        %630 = vmatpush.msra.mxu0 0.0
        %631 = vmatpush.msra.mxu0 0.0
        %632 = vmatpush.msra.mxu0 0.0
        %v633 = vand.u32 %v248, 4294901760
        %634 = vmatpush.msra.mxu0 %v633
        %v635 = vand.u32 %v241, 4294901760
        %v636 = vsub.f32 %v241, %v635
        %v637 = vand.u32 %v636, 4294901760
        %638 = vmatmul.f32.gmra.mxu0 %v637
        %v639 = vpop.f32.mrf.mxu0
        %v640 = vadd.f32 %v616, %v639
        %641 = vdwg.mxu0
        %642 = vmatpush.msra.mxu0 0.0
        %643 = vmatpush.msra.mxu0 0.0
        %644 = vmatpush.msra.mxu0 0.0
        %645 = vmatpush.msra.mxu0 0.0
        %646 = vmatpush.msra.mxu0 0.0
        %647 = vmatpush.msra.mxu0 0.0
        %648 = vmatpush.msra.mxu0 0.0
        %649 = vmatpush.msra.mxu0 0.0
        %650 = vmatpush.msra.mxu0 0.0
        %651 = vmatpush.msra.mxu0 0.0
        %652 = vmatpush.msra.mxu0 0.0
        %653 = vmatpush.msra.mxu0 0.0
        %654 = vmatpush.msra.mxu0 0.0
        %655 = vmatpush.msra.mxu0 0.0
        %656 = vmatpush.msra.mxu0 0.0
        %v657 = vand.u32 %v248, 4294901760
        %v658 = vsub.f32 %v248, %v657
        %v659 = vand.u32 %v658, 4294901760
        %660 = vmatpush.msra.mxu0 %v659
        %v661 = vand.u32 %v241, 4294901760
        %662 = vmatmul.f32.gmra.mxu0 %v661
        %v663 = vpop.f32.mrf.mxu0
        %v664 = vadd.f32 %v640, %v663
        %665 = vdwg.mxu0
        %666 = vmatpush.msra.mxu0 0.0
        %667 = vmatpush.msra.mxu0 0.0
        %668 = vmatpush.msra.mxu0 0.0
        %669 = vmatpush.msra.mxu0 0.0
        %670 = vmatpush.msra.mxu0 0.0
        %671 = vmatpush.msra.mxu0 0.0
        %672 = vmatpush.msra.mxu0 0.0
        %673 = vmatpush.msra.mxu0 0.0
        %674 = vmatpush.msra.mxu0 0.0
        %675 = vmatpush.msra.mxu0 0.0
        %676 = vmatpush.msra.mxu0 0.0
        %677 = vmatpush.msra.mxu0 0.0
        %678 = vmatpush.msra.mxu0 0.0
        %679 = vmatpush.msra.mxu0 0.0
        %680 = vmatpush.msra.mxu0 0.0
        %v681 = vand.u32 %v248, 4294901760
        %682 = vmatpush.msra.mxu0 %v681
        %v683 = vand.u32 %v241, 4294901760
        %684 = vmatmul.f32.gmra.mxu0 %v683
        %v685 = vpop.f32.mrf.mxu0
        %v686 = vadd.f32 %v664, %v685
        %687 = vdwg.mxu0
        %688 = vst [vmem:[#allocation1] ss:$2 sm:$0xff] %v217
        %s689 = scalar_lea.vmem [#allocation1], 16
        %690 = vst [vmem:[%s689] ss:$2 sm:$0xff] %v218
        %v691 = vld.sshfl [vmem:[#allocation1] sm:$0xff pattern:$0x75316420]
        %v692 = vld.sshfl [vmem:[#allocation1 + $0x8] sm:$0xff pattern:$0x75316420]
        %v693 = vld.sshfl [vmem:[#allocation1 + $0x10] sm:$0xff pattern:$0x75316420]
        %v695 = vsel %vm239, %v219, 0
        %v697 = vsel %vm243, %v691, 0
        %v699 = vsel %vm243, %v692, 0
        %v701 = vsel %vm243, %v693, 0
        %703 = vmatpush.msra.mxu0 0.0
        %704 = vmatpush.msra.mxu0 0.0
        %705 = vmatpush.msra.mxu0 0.0
        %706 = vmatpush.msra.mxu0 0.0
        %707 = vmatpush.msra.mxu0 0.0
        %708 = vmatpush.msra.mxu0 0.0
        %709 = vmatpush.msra.mxu0 0.0
        %710 = vmatpush.msra.mxu0 0.0
        %711 = vmatpush.msra.mxu0 0.0
        %712 = vmatpush.msra.mxu0 0.0
        %713 = vmatpush.msra.mxu0 0.0
        %714 = vmatpush.msra.mxu0 0.0
        %715 = vmatpush.msra.mxu0 0.0
        %716 = vmatpush.msra.mxu0 0.0
        %717 = vmatpush.msra.mxu0 0.0
        %v718 = vand.u32 %v697, 4294901760
        %719 = vmatpush.msra.mxu0 %v718
        %v720 = vand.u32 %v695, 4294901760
        %v721 = vsub.f32 %v695, %v720
        %v722 = vand.u32 %v721, 4294901760
        %v723 = vsub.f32 %v721, %v722
        %v724 = vand.u32 %v723, 4294901760
        %725 = vmatmul.f32.gmra.mxu0 %v724
        %v726 = vpop.f32.mrf.mxu0
        %v727 = vadd.f32 %v394, %v726
        %728 = vdwg.mxu0
        %729 = vmatpush.msra.mxu0 0.0
        %730 = vmatpush.msra.mxu0 0.0
        %731 = vmatpush.msra.mxu0 0.0
        %732 = vmatpush.msra.mxu0 0.0
        %733 = vmatpush.msra.mxu0 0.0
        %734 = vmatpush.msra.mxu0 0.0
        %735 = vmatpush.msra.mxu0 0.0
        %736 = vmatpush.msra.mxu0 0.0
        %737 = vmatpush.msra.mxu0 0.0
        %738 = vmatpush.msra.mxu0 0.0
        %739 = vmatpush.msra.mxu0 0.0
        %740 = vmatpush.msra.mxu0 0.0
        %741 = vmatpush.msra.mxu0 0.0
        %742 = vmatpush.msra.mxu0 0.0
        %743 = vmatpush.msra.mxu0 0.0
        %v744 = vand.u32 %v697, 4294901760
        %v745 = vsub.f32 %v697, %v744
        %v746 = vand.u32 %v745, 4294901760
        %v747 = vsub.f32 %v745, %v746
        %v748 = vand.u32 %v747, 4294901760
        %749 = vmatpush.msra.mxu0 %v748
        %v750 = vand.u32 %v695, 4294901760
        %751 = vmatmul.f32.gmra.mxu0 %v750
        %v752 = vpop.f32.mrf.mxu0
        %v753 = vadd.f32 %v727, %v752
        %754 = vdwg.mxu0
        %755 = vmatpush.msra.mxu0 0.0
        %756 = vmatpush.msra.mxu0 0.0
        %757 = vmatpush.msra.mxu0 0.0
        %758 = vmatpush.msra.mxu0 0.0
        %759 = vmatpush.msra.mxu0 0.0
        %760 = vmatpush.msra.mxu0 0.0
        %761 = vmatpush.msra.mxu0 0.0
        %762 = vmatpush.msra.mxu0 0.0
        %763 = vmatpush.msra.mxu0 0.0
        %764 = vmatpush.msra.mxu0 0.0
        %765 = vmatpush.msra.mxu0 0.0
        %766 = vmatpush.msra.mxu0 0.0
        %767 = vmatpush.msra.mxu0 0.0
        %768 = vmatpush.msra.mxu0 0.0
        %769 = vmatpush.msra.mxu0 0.0
        %v770 = vand.u32 %v697, 4294901760
        %v771 = vsub.f32 %v697, %v770
        %772 = vmatpush.msra.mxu0 %v771
        %v773 = vand.u32 %v695, 4294901760
        %v774 = vsub.f32 %v695, %v773
        %775 = vmatmul.f32.gmra.mxu0 %v774
        %v776 = vpop.f32.mrf.mxu0
        %v777 = vadd.f32 %v753, %v776
        %778 = vdwg.mxu0
        %779 = vmatpush.msra.mxu0 0.0
        %780 = vmatpush.msra.mxu0 0.0
        %781 = vmatpush.msra.mxu0 0.0
        %782 = vmatpush.msra.mxu0 0.0
        %783 = vmatpush.msra.mxu0 0.0
        %784 = vmatpush.msra.mxu0 0.0
        %785 = vmatpush.msra.mxu0 0.0
        %786 = vmatpush.msra.mxu0 0.0
        %787 = vmatpush.msra.mxu0 0.0
        %788 = vmatpush.msra.mxu0 0.0
        %789 = vmatpush.msra.mxu0 0.0
        %790 = vmatpush.msra.mxu0 0.0
        %791 = vmatpush.msra.mxu0 0.0
        %792 = vmatpush.msra.mxu0 0.0
        %793 = vmatpush.msra.mxu0 0.0
        %v794 = vand.u32 %v697, 4294901760
        %795 = vmatpush.msra.mxu0 %v794
        %v796 = vand.u32 %v695, 4294901760
        %v797 = vsub.f32 %v695, %v796
        %v798 = vand.u32 %v797, 4294901760
        %799 = vmatmul.f32.gmra.mxu0 %v798
        %v800 = vpop.f32.mrf.mxu0
        %v801 = vadd.f32 %v777, %v800
        %802 = vdwg.mxu0
        %803 = vmatpush.msra.mxu0 0.0
        %804 = vmatpush.msra.mxu0 0.0
        %805 = vmatpush.msra.mxu0 0.0
        %806 = vmatpush.msra.mxu0 0.0
        %807 = vmatpush.msra.mxu0 0.0
        %808 = vmatpush.msra.mxu0 0.0
        %809 = vmatpush.msra.mxu0 0.0
        %810 = vmatpush.msra.mxu0 0.0
        %811 = vmatpush.msra.mxu0 0.0
        %812 = vmatpush.msra.mxu0 0.0
        %813 = vmatpush.msra.mxu0 0.0
        %814 = vmatpush.msra.mxu0 0.0
        %815 = vmatpush.msra.mxu0 0.0
        %816 = vmatpush.msra.mxu0 0.0
        %817 = vmatpush.msra.mxu0 0.0
        %v818 = vand.u32 %v697, 4294901760
        %v819 = vsub.f32 %v697, %v818
        %v820 = vand.u32 %v819, 4294901760
        %821 = vmatpush.msra.mxu0 %v820
        %v822 = vand.u32 %v695, 4294901760
        %823 = vmatmul.f32.gmra.mxu0 %v822
        %v824 = vpop.f32.mrf.mxu0
        %v825 = vadd.f32 %v801, %v824
        %826 = vdwg.mxu0
        %827 = vmatpush.msra.mxu0 0.0
        %828 = vmatpush.msra.mxu0 0.0
        %829 = vmatpush.msra.mxu0 0.0
        %830 = vmatpush.msra.mxu0 0.0
        %831 = vmatpush.msra.mxu0 0.0
        %832 = vmatpush.msra.mxu0 0.0
        %833 = vmatpush.msra.mxu0 0.0
        %834 = vmatpush.msra.mxu0 0.0
        %835 = vmatpush.msra.mxu0 0.0
        %836 = vmatpush.msra.mxu0 0.0
        %837 = vmatpush.msra.mxu0 0.0
        %838 = vmatpush.msra.mxu0 0.0
        %839 = vmatpush.msra.mxu0 0.0
        %840 = vmatpush.msra.mxu0 0.0
        %841 = vmatpush.msra.mxu0 0.0
        %v842 = vand.u32 %v697, 4294901760
        %843 = vmatpush.msra.mxu0 %v842
        %v844 = vand.u32 %v695, 4294901760
        %845 = vmatmul.f32.gmra.mxu0 %v844
        %v846 = vpop.f32.mrf.mxu0
        %v847 = vadd.f32 %v825, %v846
        %848 = vdwg.mxu0
        %849 = vmatpush.msra.mxu0 0.0
        %850 = vmatpush.msra.mxu0 0.0
        %851 = vmatpush.msra.mxu0 0.0
        %852 = vmatpush.msra.mxu0 0.0
        %853 = vmatpush.msra.mxu0 0.0
        %854 = vmatpush.msra.mxu0 0.0
        %855 = vmatpush.msra.mxu0 0.0
        %856 = vmatpush.msra.mxu0 0.0
        %857 = vmatpush.msra.mxu0 0.0
        %858 = vmatpush.msra.mxu0 0.0
        %859 = vmatpush.msra.mxu0 0.0
        %860 = vmatpush.msra.mxu0 0.0
        %861 = vmatpush.msra.mxu0 0.0
        %862 = vmatpush.msra.mxu0 0.0
        %863 = vmatpush.msra.mxu0 0.0
        %v864 = vand.u32 %v699, 4294901760
        %865 = vmatpush.msra.mxu0 %v864
        %v866 = vand.u32 %v695, 4294901760
        %v867 = vsub.f32 %v695, %v866
        %v868 = vand.u32 %v867, 4294901760
        %v869 = vsub.f32 %v867, %v868
        %v870 = vand.u32 %v869, 4294901760
        %871 = vmatmul.f32.gmra.mxu0 %v870
        %v872 = vpop.f32.mrf.mxu0
        %v873 = vadd.f32 %v540, %v872
        %874 = vdwg.mxu0
        %875 = vmatpush.msra.mxu0 0.0
        %876 = vmatpush.msra.mxu0 0.0
        %877 = vmatpush.msra.mxu0 0.0
        %878 = vmatpush.msra.mxu0 0.0
        %879 = vmatpush.msra.mxu0 0.0
        %880 = vmatpush.msra.mxu0 0.0
        %881 = vmatpush.msra.mxu0 0.0
        %882 = vmatpush.msra.mxu0 0.0
        %883 = vmatpush.msra.mxu0 0.0
        %884 = vmatpush.msra.mxu0 0.0
        %885 = vmatpush.msra.mxu0 0.0
        %886 = vmatpush.msra.mxu0 0.0
        %887 = vmatpush.msra.mxu0 0.0
        %888 = vmatpush.msra.mxu0 0.0
        %889 = vmatpush.msra.mxu0 0.0
        %v890 = vand.u32 %v699, 4294901760
        %v891 = vsub.f32 %v699, %v890
        %v892 = vand.u32 %v891, 4294901760
        %v893 = vsub.f32 %v891, %v892
        %v894 = vand.u32 %v893, 4294901760
        %895 = vmatpush.msra.mxu0 %v894
        %v896 = vand.u32 %v695, 4294901760
        %897 = vmatmul.f32.gmra.mxu0 %v896
        %v898 = vpop.f32.mrf.mxu0
        %v899 = vadd.f32 %v873, %v898
        %900 = vdwg.mxu0
        %901 = vmatpush.msra.mxu0 0.0
        %902 = vmatpush.msra.mxu0 0.0
        %903 = vmatpush.msra.mxu0 0.0
        %904 = vmatpush.msra.mxu0 0.0
        %905 = vmatpush.msra.mxu0 0.0
        %906 = vmatpush.msra.mxu0 0.0
        %907 = vmatpush.msra.mxu0 0.0
        %908 = vmatpush.msra.mxu0 0.0
        %909 = vmatpush.msra.mxu0 0.0
        %910 = vmatpush.msra.mxu0 0.0
        %911 = vmatpush.msra.mxu0 0.0
        %912 = vmatpush.msra.mxu0 0.0
        %913 = vmatpush.msra.mxu0 0.0
        %914 = vmatpush.msra.mxu0 0.0
        %915 = vmatpush.msra.mxu0 0.0
        %v916 = vand.u32 %v699, 4294901760
        %v917 = vsub.f32 %v699, %v916
        %918 = vmatpush.msra.mxu0 %v917
        %v919 = vand.u32 %v695, 4294901760
        %v920 = vsub.f32 %v695, %v919
        %921 = vmatmul.f32.gmra.mxu0 %v920
        %v922 = vpop.f32.mrf.mxu0
        %v923 = vadd.f32 %v899, %v922
        %924 = vdwg.mxu0
        %925 = vmatpush.msra.mxu0 0.0
        %926 = vmatpush.msra.mxu0 0.0
        %927 = vmatpush.msra.mxu0 0.0
        %928 = vmatpush.msra.mxu0 0.0
        %929 = vmatpush.msra.mxu0 0.0
        %930 = vmatpush.msra.mxu0 0.0
        %931 = vmatpush.msra.mxu0 0.0
        %932 = vmatpush.msra.mxu0 0.0
        %933 = vmatpush.msra.mxu0 0.0
        %934 = vmatpush.msra.mxu0 0.0
        %935 = vmatpush.msra.mxu0 0.0
        %936 = vmatpush.msra.mxu0 0.0
        %937 = vmatpush.msra.mxu0 0.0
        %938 = vmatpush.msra.mxu0 0.0
        %939 = vmatpush.msra.mxu0 0.0
        %v940 = vand.u32 %v699, 4294901760
        %941 = vmatpush.msra.mxu0 %v940
        %v942 = vand.u32 %v695, 4294901760
        %v943 = vsub.f32 %v695, %v942
        %v944 = vand.u32 %v943, 4294901760
        %945 = vmatmul.f32.gmra.mxu0 %v944
        %v946 = vpop.f32.mrf.mxu0
        %v947 = vadd.f32 %v923, %v946
        %948 = vdwg.mxu0
        %949 = vmatpush.msra.mxu0 0.0
        %950 = vmatpush.msra.mxu0 0.0
        %951 = vmatpush.msra.mxu0 0.0
        %952 = vmatpush.msra.mxu0 0.0
        %953 = vmatpush.msra.mxu0 0.0
        %954 = vmatpush.msra.mxu0 0.0
        %955 = vmatpush.msra.mxu0 0.0
        %956 = vmatpush.msra.mxu0 0.0
        %957 = vmatpush.msra.mxu0 0.0
        %958 = vmatpush.msra.mxu0 0.0
        %959 = vmatpush.msra.mxu0 0.0
        %960 = vmatpush.msra.mxu0 0.0
        %961 = vmatpush.msra.mxu0 0.0
        %962 = vmatpush.msra.mxu0 0.0
        %963 = vmatpush.msra.mxu0 0.0
        %v964 = vand.u32 %v699, 4294901760
        %v965 = vsub.f32 %v699, %v964
        %v966 = vand.u32 %v965, 4294901760
        %967 = vmatpush.msra.mxu0 %v966
        %v968 = vand.u32 %v695, 4294901760
        %969 = vmatmul.f32.gmra.mxu0 %v968
        %v970 = vpop.f32.mrf.mxu0
        %v971 = vadd.f32 %v947, %v970
        %972 = vdwg.mxu0
        %973 = vmatpush.msra.mxu0 0.0
        %974 = vmatpush.msra.mxu0 0.0
        %975 = vmatpush.msra.mxu0 0.0
        %976 = vmatpush.msra.mxu0 0.0
        %977 = vmatpush.msra.mxu0 0.0
        %978 = vmatpush.msra.mxu0 0.0
        %979 = vmatpush.msra.mxu0 0.0
        %980 = vmatpush.msra.mxu0 0.0
        %981 = vmatpush.msra.mxu0 0.0
        %982 = vmatpush.msra.mxu0 0.0
        %983 = vmatpush.msra.mxu0 0.0
        %984 = vmatpush.msra.mxu0 0.0
        %985 = vmatpush.msra.mxu0 0.0
        %986 = vmatpush.msra.mxu0 0.0
        %987 = vmatpush.msra.mxu0 0.0
        %v988 = vand.u32 %v699, 4294901760
        %989 = vmatpush.msra.mxu0 %v988
        %v990 = vand.u32 %v695, 4294901760
        %991 = vmatmul.f32.gmra.mxu0 %v990
        %v992 = vpop.f32.mrf.mxu0
        %v993 = vadd.f32 %v971, %v992
        %994 = vdwg.mxu0
        %995 = vmatpush.msra.mxu0 0.0
        %996 = vmatpush.msra.mxu0 0.0
        %997 = vmatpush.msra.mxu0 0.0
        %998 = vmatpush.msra.mxu0 0.0
        %999 = vmatpush.msra.mxu0 0.0
        %1000 = vmatpush.msra.mxu0 0.0
        %1001 = vmatpush.msra.mxu0 0.0
        %1002 = vmatpush.msra.mxu0 0.0
        %1003 = vmatpush.msra.mxu0 0.0
        %1004 = vmatpush.msra.mxu0 0.0
        %1005 = vmatpush.msra.mxu0 0.0
        %1006 = vmatpush.msra.mxu0 0.0
        %1007 = vmatpush.msra.mxu0 0.0
        %1008 = vmatpush.msra.mxu0 0.0
        %1009 = vmatpush.msra.mxu0 0.0
        %v1010 = vand.u32 %v701, 4294901760
        %1011 = vmatpush.msra.mxu0 %v1010
        %v1012 = vand.u32 %v695, 4294901760
        %v1013 = vsub.f32 %v695, %v1012
        %v1014 = vand.u32 %v1013, 4294901760
        %v1015 = vsub.f32 %v1013, %v1014
        %v1016 = vand.u32 %v1015, 4294901760
        %1017 = vmatmul.f32.gmra.mxu0 %v1016
        %v1018 = vpop.f32.mrf.mxu0
        %v1019 = vadd.f32 %v686, %v1018
        %1020 = vdwg.mxu0
        %1021 = vmatpush.msra.mxu0 0.0
        %1022 = vmatpush.msra.mxu0 0.0
        %1023 = vmatpush.msra.mxu0 0.0
        %1024 = vmatpush.msra.mxu0 0.0
        %1025 = vmatpush.msra.mxu0 0.0
        %1026 = vmatpush.msra.mxu0 0.0
        %1027 = vmatpush.msra.mxu0 0.0
        %1028 = vmatpush.msra.mxu0 0.0
        %1029 = vmatpush.msra.mxu0 0.0
        %1030 = vmatpush.msra.mxu0 0.0
        %1031 = vmatpush.msra.mxu0 0.0
        %1032 = vmatpush.msra.mxu0 0.0
        %1033 = vmatpush.msra.mxu0 0.0
        %1034 = vmatpush.msra.mxu0 0.0
        %1035 = vmatpush.msra.mxu0 0.0
        %v1036 = vand.u32 %v701, 4294901760
        %v1037 = vsub.f32 %v701, %v1036
        %v1038 = vand.u32 %v1037, 4294901760
        %v1039 = vsub.f32 %v1037, %v1038
        %v1040 = vand.u32 %v1039, 4294901760
        %1041 = vmatpush.msra.mxu0 %v1040
        %v1042 = vand.u32 %v695, 4294901760
        %1043 = vmatmul.f32.gmra.mxu0 %v1042
        %v1044 = vpop.f32.mrf.mxu0
        %v1045 = vadd.f32 %v1019, %v1044
        %1046 = vdwg.mxu0
        %1047 = vmatpush.msra.mxu0 0.0
        %1048 = vmatpush.msra.mxu0 0.0
        %1049 = vmatpush.msra.mxu0 0.0
        %1050 = vmatpush.msra.mxu0 0.0
        %1051 = vmatpush.msra.mxu0 0.0
        %1052 = vmatpush.msra.mxu0 0.0
        %1053 = vmatpush.msra.mxu0 0.0
        %1054 = vmatpush.msra.mxu0 0.0
        %1055 = vmatpush.msra.mxu0 0.0
        %1056 = vmatpush.msra.mxu0 0.0
        %1057 = vmatpush.msra.mxu0 0.0
        %1058 = vmatpush.msra.mxu0 0.0
        %1059 = vmatpush.msra.mxu0 0.0
        %1060 = vmatpush.msra.mxu0 0.0
        %1061 = vmatpush.msra.mxu0 0.0
        %v1062 = vand.u32 %v701, 4294901760
        %v1063 = vsub.f32 %v701, %v1062
        %1064 = vmatpush.msra.mxu0 %v1063
        %v1065 = vand.u32 %v695, 4294901760
        %v1066 = vsub.f32 %v695, %v1065
        %1067 = vmatmul.f32.gmra.mxu0 %v1066
        %v1068 = vpop.f32.mrf.mxu0
        %v1069 = vadd.f32 %v1045, %v1068
        %1070 = vdwg.mxu0
        %1071 = vmatpush.msra.mxu0 0.0
        %1072 = vmatpush.msra.mxu0 0.0
        %1073 = vmatpush.msra.mxu0 0.0
        %1074 = vmatpush.msra.mxu0 0.0
        %1075 = vmatpush.msra.mxu0 0.0
        %1076 = vmatpush.msra.mxu0 0.0
        %1077 = vmatpush.msra.mxu0 0.0
        %1078 = vmatpush.msra.mxu0 0.0
        %1079 = vmatpush.msra.mxu0 0.0
        %1080 = vmatpush.msra.mxu0 0.0
        %1081 = vmatpush.msra.mxu0 0.0
        %1082 = vmatpush.msra.mxu0 0.0
        %1083 = vmatpush.msra.mxu0 0.0
        %1084 = vmatpush.msra.mxu0 0.0
        %1085 = vmatpush.msra.mxu0 0.0
        %v1086 = vand.u32 %v701, 4294901760
        %1087 = vmatpush.msra.mxu0 %v1086
        %v1088 = vand.u32 %v695, 4294901760
        %v1089 = vsub.f32 %v695, %v1088
        %v1090 = vand.u32 %v1089, 4294901760
        %1091 = vmatmul.f32.gmra.mxu0 %v1090
        %v1092 = vpop.f32.mrf.mxu0
        %v1093 = vadd.f32 %v1069, %v1092
        %1094 = vdwg.mxu0
        %1095 = vmatpush.msra.mxu0 0.0
        %1096 = vmatpush.msra.mxu0 0.0
        %1097 = vmatpush.msra.mxu0 0.0
        %1098 = vmatpush.msra.mxu0 0.0
        %1099 = vmatpush.msra.mxu0 0.0
        %1100 = vmatpush.msra.mxu0 0.0
        %1101 = vmatpush.msra.mxu0 0.0
        %1102 = vmatpush.msra.mxu0 0.0
        %1103 = vmatpush.msra.mxu0 0.0
        %1104 = vmatpush.msra.mxu0 0.0
        %1105 = vmatpush.msra.mxu0 0.0
        %1106 = vmatpush.msra.mxu0 0.0
        %1107 = vmatpush.msra.mxu0 0.0
        %1108 = vmatpush.msra.mxu0 0.0
        %1109 = vmatpush.msra.mxu0 0.0
        %v1110 = vand.u32 %v701, 4294901760
        %v1111 = vsub.f32 %v701, %v1110
        %v1112 = vand.u32 %v1111, 4294901760
        %1113 = vmatpush.msra.mxu0 %v1112
        %v1114 = vand.u32 %v695, 4294901760
        %1115 = vmatmul.f32.gmra.mxu0 %v1114
        %v1116 = vpop.f32.mrf.mxu0
        %v1117 = vadd.f32 %v1093, %v1116
        %1118 = vdwg.mxu0
        %1119 = vmatpush.msra.mxu0 0.0
        %1120 = vmatpush.msra.mxu0 0.0
        %1121 = vmatpush.msra.mxu0 0.0
        %1122 = vmatpush.msra.mxu0 0.0
        %1123 = vmatpush.msra.mxu0 0.0
        %1124 = vmatpush.msra.mxu0 0.0
        %1125 = vmatpush.msra.mxu0 0.0
        %1126 = vmatpush.msra.mxu0 0.0
        %1127 = vmatpush.msra.mxu0 0.0
        %1128 = vmatpush.msra.mxu0 0.0
        %1129 = vmatpush.msra.mxu0 0.0
        %1130 = vmatpush.msra.mxu0 0.0
        %1131 = vmatpush.msra.mxu0 0.0
        %1132 = vmatpush.msra.mxu0 0.0
        %1133 = vmatpush.msra.mxu0 0.0
        %v1134 = vand.u32 %v701, 4294901760
        %1135 = vmatpush.msra.mxu0 %v1134
        %v1136 = vand.u32 %v695, 4294901760
        %1137 = vmatmul.f32.gmra.mxu0 %v1136
        %v1138 = vpop.f32.mrf.mxu0
        %v1139 = vadd.f32 %v1117, %v1138
        %1140 = vdwg.mxu0
        %s1141 = scalar_lea.vmem %s212, 16
        %v1142 = vld [vmem:[%s1141] sm:$0xff]
        %1143 = vst [vmem:[#allocation1] ss:$2 sm:$0xff] %v217
        %s1144 = scalar_lea.vmem [#allocation1], 16
        %1145 = vst [vmem:[%s1144] ss:$2 sm:$0xff] %v218
        %v1146 = vld.sshfl [vmem:[#allocation1] sm:$0xff pattern:$0x75316420]
        %v1147 = vld.sshfl [vmem:[#allocation1 + $0x8] sm:$0xff pattern:$0x75316420]
        %v1148 = vld.sshfl [vmem:[#allocation1 + $0x10] sm:$0xff pattern:$0x75316420]
        %1149 = vrot.lane.b32.xlu0 %v1146, 126
        %v1150 = vpop.permute.xlu0 %1149
        %1151 = vrot.lane.b32.xlu0 %v1147, 126
        %v1152 = vpop.permute.xlu0 %1151
        %1153 = vrot.lane.b32.xlu0 %v1148, 126
        %v1154 = vpop.permute.xlu0 %1153
        %vm1155 = vcmask 1031168
        %v1156 = vsel %vm1155, %v1150, %v1152
        %v1157 = vsel %vm1155, %v1152, %v1154
        %v1159 = vsel %vm239, %v1142, 0
        %v1161 = vsel %vm243, %v1156, 0
        %v1163 = vsel %vm243, %v1157, 0
        %v1165 = vsel %vm243, %v1154, 0
        %1167 = vmatpush.msra.mxu0 0.0
        %1168 = vmatpush.msra.mxu0 0.0
        %1169 = vmatpush.msra.mxu0 0.0
        %1170 = vmatpush.msra.mxu0 0.0
        %1171 = vmatpush.msra.mxu0 0.0
        %1172 = vmatpush.msra.mxu0 0.0
        %1173 = vmatpush.msra.mxu0 0.0
        %1174 = vmatpush.msra.mxu0 0.0
        %1175 = vmatpush.msra.mxu0 0.0
        %1176 = vmatpush.msra.mxu0 0.0
        %1177 = vmatpush.msra.mxu0 0.0
        %1178 = vmatpush.msra.mxu0 0.0
        %1179 = vmatpush.msra.mxu0 0.0
        %1180 = vmatpush.msra.mxu0 0.0
        %1181 = vmatpush.msra.mxu0 0.0
        %v1182 = vand.u32 %v1161, 4294901760
        %1183 = vmatpush.msra.mxu0 %v1182
        %v1184 = vand.u32 %v1159, 4294901760
        %v1185 = vsub.f32 %v1159, %v1184
        %v1186 = vand.u32 %v1185, 4294901760
        %v1187 = vsub.f32 %v1185, %v1186
        %v1188 = vand.u32 %v1187, 4294901760
        %1189 = vmatmul.f32.gmra.mxu0 %v1188
        %v1190 = vpop.f32.mrf.mxu0
        %v1191 = vadd.f32 0.0, %v1190
        %1192 = vdwg.mxu0
        %1193 = vmatpush.msra.mxu0 0.0
        %1194 = vmatpush.msra.mxu0 0.0
        %1195 = vmatpush.msra.mxu0 0.0
        %1196 = vmatpush.msra.mxu0 0.0
        %1197 = vmatpush.msra.mxu0 0.0
        %1198 = vmatpush.msra.mxu0 0.0
        %1199 = vmatpush.msra.mxu0 0.0
        %1200 = vmatpush.msra.mxu0 0.0
        %1201 = vmatpush.msra.mxu0 0.0
        %1202 = vmatpush.msra.mxu0 0.0
        %1203 = vmatpush.msra.mxu0 0.0
        %1204 = vmatpush.msra.mxu0 0.0
        %1205 = vmatpush.msra.mxu0 0.0
        %1206 = vmatpush.msra.mxu0 0.0
        %1207 = vmatpush.msra.mxu0 0.0
        %v1208 = vand.u32 %v1161, 4294901760
        %v1209 = vsub.f32 %v1161, %v1208
        %v1210 = vand.u32 %v1209, 4294901760
        %v1211 = vsub.f32 %v1209, %v1210
        %v1212 = vand.u32 %v1211, 4294901760
        %1213 = vmatpush.msra.mxu0 %v1212
        %v1214 = vand.u32 %v1159, 4294901760
        %1215 = vmatmul.f32.gmra.mxu0 %v1214
        %v1216 = vpop.f32.mrf.mxu0
        %v1217 = vadd.f32 %v1191, %v1216
        %1218 = vdwg.mxu0
        %1219 = vmatpush.msra.mxu0 0.0
        %1220 = vmatpush.msra.mxu0 0.0
        %1221 = vmatpush.msra.mxu0 0.0
        %1222 = vmatpush.msra.mxu0 0.0
        %1223 = vmatpush.msra.mxu0 0.0
        %1224 = vmatpush.msra.mxu0 0.0
        %1225 = vmatpush.msra.mxu0 0.0
        %1226 = vmatpush.msra.mxu0 0.0
        %1227 = vmatpush.msra.mxu0 0.0
        %1228 = vmatpush.msra.mxu0 0.0
        %1229 = vmatpush.msra.mxu0 0.0
        %1230 = vmatpush.msra.mxu0 0.0
        %1231 = vmatpush.msra.mxu0 0.0
        %1232 = vmatpush.msra.mxu0 0.0
        %1233 = vmatpush.msra.mxu0 0.0
        %v1234 = vand.u32 %v1161, 4294901760
        %v1235 = vsub.f32 %v1161, %v1234
        %1236 = vmatpush.msra.mxu0 %v1235
        %v1237 = vand.u32 %v1159, 4294901760
        %v1238 = vsub.f32 %v1159, %v1237
        %1239 = vmatmul.f32.gmra.mxu0 %v1238
        %v1240 = vpop.f32.mrf.mxu0
        %v1241 = vadd.f32 %v1217, %v1240
        %1242 = vdwg.mxu0
        %1243 = vmatpush.msra.mxu0 0.0
        %1244 = vmatpush.msra.mxu0 0.0
        %1245 = vmatpush.msra.mxu0 0.0
        %1246 = vmatpush.msra.mxu0 0.0
        %1247 = vmatpush.msra.mxu0 0.0
        %1248 = vmatpush.msra.mxu0 0.0
        %1249 = vmatpush.msra.mxu0 0.0
        %1250 = vmatpush.msra.mxu0 0.0
        %1251 = vmatpush.msra.mxu0 0.0
        %1252 = vmatpush.msra.mxu0 0.0
        %1253 = vmatpush.msra.mxu0 0.0
        %1254 = vmatpush.msra.mxu0 0.0
        %1255 = vmatpush.msra.mxu0 0.0
        %1256 = vmatpush.msra.mxu0 0.0
        %1257 = vmatpush.msra.mxu0 0.0
        %v1258 = vand.u32 %v1161, 4294901760
        %1259 = vmatpush.msra.mxu0 %v1258
        %v1260 = vand.u32 %v1159, 4294901760
        %v1261 = vsub.f32 %v1159, %v1260
        %v1262 = vand.u32 %v1261, 4294901760
        %1263 = vmatmul.f32.gmra.mxu0 %v1262
        %v1264 = vpop.f32.mrf.mxu0
        %v1265 = vadd.f32 %v1241, %v1264
        %1266 = vdwg.mxu0
        %1267 = vmatpush.msra.mxu0 0.0
        %1268 = vmatpush.msra.mxu0 0.0
        %1269 = vmatpush.msra.mxu0 0.0
        %1270 = vmatpush.msra.mxu0 0.0
        %1271 = vmatpush.msra.mxu0 0.0
        %1272 = vmatpush.msra.mxu0 0.0
        %1273 = vmatpush.msra.mxu0 0.0
        %1274 = vmatpush.msra.mxu0 0.0
        %1275 = vmatpush.msra.mxu0 0.0
        %1276 = vmatpush.msra.mxu0 0.0
        %1277 = vmatpush.msra.mxu0 0.0
        %1278 = vmatpush.msra.mxu0 0.0
        %1279 = vmatpush.msra.mxu0 0.0
        %1280 = vmatpush.msra.mxu0 0.0
        %1281 = vmatpush.msra.mxu0 0.0
        %v1282 = vand.u32 %v1161, 4294901760
        %v1283 = vsub.f32 %v1161, %v1282
        %v1284 = vand.u32 %v1283, 4294901760
        %1285 = vmatpush.msra.mxu0 %v1284
        %v1286 = vand.u32 %v1159, 4294901760
        %1287 = vmatmul.f32.gmra.mxu0 %v1286
        %v1288 = vpop.f32.mrf.mxu0
        %v1289 = vadd.f32 %v1265, %v1288
        %1290 = vdwg.mxu0
        %1291 = vmatpush.msra.mxu0 0.0
        %1292 = vmatpush.msra.mxu0 0.0
        %1293 = vmatpush.msra.mxu0 0.0
        %1294 = vmatpush.msra.mxu0 0.0
        %1295 = vmatpush.msra.mxu0 0.0
        %1296 = vmatpush.msra.mxu0 0.0
        %1297 = vmatpush.msra.mxu0 0.0
        %1298 = vmatpush.msra.mxu0 0.0
        %1299 = vmatpush.msra.mxu0 0.0
        %1300 = vmatpush.msra.mxu0 0.0
        %1301 = vmatpush.msra.mxu0 0.0
        %1302 = vmatpush.msra.mxu0 0.0
        %1303 = vmatpush.msra.mxu0 0.0
        %1304 = vmatpush.msra.mxu0 0.0
        %1305 = vmatpush.msra.mxu0 0.0
        %v1306 = vand.u32 %v1161, 4294901760
        %1307 = vmatpush.msra.mxu0 %v1306
        %v1308 = vand.u32 %v1159, 4294901760
        %1309 = vmatmul.f32.gmra.mxu0 %v1308
        %v1310 = vpop.f32.mrf.mxu0
        %v1311 = vadd.f32 %v1289, %v1310
        %1312 = vdwg.mxu0
        %1313 = vmatpush.msra.mxu0 0.0
        %1314 = vmatpush.msra.mxu0 0.0
        %1315 = vmatpush.msra.mxu0 0.0
        %1316 = vmatpush.msra.mxu0 0.0
        %1317 = vmatpush.msra.mxu0 0.0
        %1318 = vmatpush.msra.mxu0 0.0
        %1319 = vmatpush.msra.mxu0 0.0
        %1320 = vmatpush.msra.mxu0 0.0
        %1321 = vmatpush.msra.mxu0 0.0
        %1322 = vmatpush.msra.mxu0 0.0
        %1323 = vmatpush.msra.mxu0 0.0
        %1324 = vmatpush.msra.mxu0 0.0
        %1325 = vmatpush.msra.mxu0 0.0
        %1326 = vmatpush.msra.mxu0 0.0
        %1327 = vmatpush.msra.mxu0 0.0
        %v1328 = vand.u32 %v1163, 4294901760
        %1329 = vmatpush.msra.mxu0 %v1328
        %v1330 = vand.u32 %v1159, 4294901760
        %v1331 = vsub.f32 %v1159, %v1330
        %v1332 = vand.u32 %v1331, 4294901760
        %v1333 = vsub.f32 %v1331, %v1332
        %v1334 = vand.u32 %v1333, 4294901760
        %1335 = vmatmul.f32.gmra.mxu0 %v1334
        %v1336 = vpop.f32.mrf.mxu0
        %v1337 = vadd.f32 0.0, %v1336
        %1338 = vdwg.mxu0
        %1339 = vmatpush.msra.mxu0 0.0
        %1340 = vmatpush.msra.mxu0 0.0
        %1341 = vmatpush.msra.mxu0 0.0
        %1342 = vmatpush.msra.mxu0 0.0
        %1343 = vmatpush.msra.mxu0 0.0
        %1344 = vmatpush.msra.mxu0 0.0
        %1345 = vmatpush.msra.mxu0 0.0
        %1346 = vmatpush.msra.mxu0 0.0
        %1347 = vmatpush.msra.mxu0 0.0
        %1348 = vmatpush.msra.mxu0 0.0
        %1349 = vmatpush.msra.mxu0 0.0
        %1350 = vmatpush.msra.mxu0 0.0
        %1351 = vmatpush.msra.mxu0 0.0
        %1352 = vmatpush.msra.mxu0 0.0
        %1353 = vmatpush.msra.mxu0 0.0
        %v1354 = vand.u32 %v1163, 4294901760
        %v1355 = vsub.f32 %v1163, %v1354
        %v1356 = vand.u32 %v1355, 4294901760
        %v1357 = vsub.f32 %v1355, %v1356
        %v1358 = vand.u32 %v1357, 4294901760
        %1359 = vmatpush.msra.mxu0 %v1358
        %v1360 = vand.u32 %v1159, 4294901760
        %1361 = vmatmul.f32.gmra.mxu0 %v1360
        %v1362 = vpop.f32.mrf.mxu0
        %v1363 = vadd.f32 %v1337, %v1362
        %1364 = vdwg.mxu0
        %1365 = vmatpush.msra.mxu0 0.0
        %1366 = vmatpush.msra.mxu0 0.0
        %1367 = vmatpush.msra.mxu0 0.0
        %1368 = vmatpush.msra.mxu0 0.0
        %1369 = vmatpush.msra.mxu0 0.0
        %1370 = vmatpush.msra.mxu0 0.0
        %1371 = vmatpush.msra.mxu0 0.0
        %1372 = vmatpush.msra.mxu0 0.0
        %1373 = vmatpush.msra.mxu0 0.0
        %1374 = vmatpush.msra.mxu0 0.0
        %1375 = vmatpush.msra.mxu0 0.0
        %1376 = vmatpush.msra.mxu0 0.0
        %1377 = vmatpush.msra.mxu0 0.0
        %1378 = vmatpush.msra.mxu0 0.0
        %1379 = vmatpush.msra.mxu0 0.0
        %v1380 = vand.u32 %v1163, 4294901760
        %v1381 = vsub.f32 %v1163, %v1380
        %1382 = vmatpush.msra.mxu0 %v1381
        %v1383 = vand.u32 %v1159, 4294901760
        %v1384 = vsub.f32 %v1159, %v1383
        %1385 = vmatmul.f32.gmra.mxu0 %v1384
        %v1386 = vpop.f32.mrf.mxu0
        %v1387 = vadd.f32 %v1363, %v1386
        %1388 = vdwg.mxu0
        %1389 = vmatpush.msra.mxu0 0.0
        %1390 = vmatpush.msra.mxu0 0.0
        %1391 = vmatpush.msra.mxu0 0.0
        %1392 = vmatpush.msra.mxu0 0.0
        %1393 = vmatpush.msra.mxu0 0.0
        %1394 = vmatpush.msra.mxu0 0.0
        %1395 = vmatpush.msra.mxu0 0.0
        %1396 = vmatpush.msra.mxu0 0.0
        %1397 = vmatpush.msra.mxu0 0.0
        %1398 = vmatpush.msra.mxu0 0.0
        %1399 = vmatpush.msra.mxu0 0.0
        %1400 = vmatpush.msra.mxu0 0.0
        %1401 = vmatpush.msra.mxu0 0.0
        %1402 = vmatpush.msra.mxu0 0.0
        %1403 = vmatpush.msra.mxu0 0.0
        %v1404 = vand.u32 %v1163, 4294901760
        %1405 = vmatpush.msra.mxu0 %v1404
        %v1406 = vand.u32 %v1159, 4294901760
        %v1407 = vsub.f32 %v1159, %v1406
        %v1408 = vand.u32 %v1407, 4294901760
        %1409 = vmatmul.f32.gmra.mxu0 %v1408
        %v1410 = vpop.f32.mrf.mxu0
        %v1411 = vadd.f32 %v1387, %v1410
        %1412 = vdwg.mxu0
        %1413 = vmatpush.msra.mxu0 0.0
        %1414 = vmatpush.msra.mxu0 0.0
        %1415 = vmatpush.msra.mxu0 0.0
        %1416 = vmatpush.msra.mxu0 0.0
        %1417 = vmatpush.msra.mxu0 0.0
        %1418 = vmatpush.msra.mxu0 0.0
        %1419 = vmatpush.msra.mxu0 0.0
        %1420 = vmatpush.msra.mxu0 0.0
        %1421 = vmatpush.msra.mxu0 0.0
        %1422 = vmatpush.msra.mxu0 0.0
        %1423 = vmatpush.msra.mxu0 0.0
        %1424 = vmatpush.msra.mxu0 0.0
        %1425 = vmatpush.msra.mxu0 0.0
        %1426 = vmatpush.msra.mxu0 0.0
        %1427 = vmatpush.msra.mxu0 0.0
        %v1428 = vand.u32 %v1163, 4294901760
        %v1429 = vsub.f32 %v1163, %v1428
        %v1430 = vand.u32 %v1429, 4294901760
        %1431 = vmatpush.msra.mxu0 %v1430
        %v1432 = vand.u32 %v1159, 4294901760
        %1433 = vmatmul.f32.gmra.mxu0 %v1432
        %v1434 = vpop.f32.mrf.mxu0
        %v1435 = vadd.f32 %v1411, %v1434
        %1436 = vdwg.mxu0
        %1437 = vmatpush.msra.mxu0 0.0
        %1438 = vmatpush.msra.mxu0 0.0
        %1439 = vmatpush.msra.mxu0 0.0
        %1440 = vmatpush.msra.mxu0 0.0
        %1441 = vmatpush.msra.mxu0 0.0
        %1442 = vmatpush.msra.mxu0 0.0
        %1443 = vmatpush.msra.mxu0 0.0
        %1444 = vmatpush.msra.mxu0 0.0
        %1445 = vmatpush.msra.mxu0 0.0
        %1446 = vmatpush.msra.mxu0 0.0
        %1447 = vmatpush.msra.mxu0 0.0
        %1448 = vmatpush.msra.mxu0 0.0
        %1449 = vmatpush.msra.mxu0 0.0
        %1450 = vmatpush.msra.mxu0 0.0
        %1451 = vmatpush.msra.mxu0 0.0
        %v1452 = vand.u32 %v1163, 4294901760
        %1453 = vmatpush.msra.mxu0 %v1452
        %v1454 = vand.u32 %v1159, 4294901760
        %1455 = vmatmul.f32.gmra.mxu0 %v1454
        %v1456 = vpop.f32.mrf.mxu0
        %v1457 = vadd.f32 %v1435, %v1456
        %1458 = vdwg.mxu0
        %1459 = vmatpush.msra.mxu0 0.0
        %1460 = vmatpush.msra.mxu0 0.0
        %1461 = vmatpush.msra.mxu0 0.0
        %1462 = vmatpush.msra.mxu0 0.0
        %1463 = vmatpush.msra.mxu0 0.0
        %1464 = vmatpush.msra.mxu0 0.0
        %1465 = vmatpush.msra.mxu0 0.0
        %1466 = vmatpush.msra.mxu0 0.0
        %1467 = vmatpush.msra.mxu0 0.0
        %1468 = vmatpush.msra.mxu0 0.0
        %1469 = vmatpush.msra.mxu0 0.0
        %1470 = vmatpush.msra.mxu0 0.0
        %1471 = vmatpush.msra.mxu0 0.0
        %1472 = vmatpush.msra.mxu0 0.0
        %1473 = vmatpush.msra.mxu0 0.0
        %v1474 = vand.u32 %v1165, 4294901760
        %1475 = vmatpush.msra.mxu0 %v1474
        %v1476 = vand.u32 %v1159, 4294901760
        %v1477 = vsub.f32 %v1159, %v1476
        %v1478 = vand.u32 %v1477, 4294901760
        %v1479 = vsub.f32 %v1477, %v1478
        %v1480 = vand.u32 %v1479, 4294901760
        %1481 = vmatmul.f32.gmra.mxu0 %v1480
        %v1482 = vpop.f32.mrf.mxu0
        %v1483 = vadd.f32 0.0, %v1482
        %1484 = vdwg.mxu0
        %1485 = vmatpush.msra.mxu0 0.0
        %1486 = vmatpush.msra.mxu0 0.0
        %1487 = vmatpush.msra.mxu0 0.0
        %1488 = vmatpush.msra.mxu0 0.0
        %1489 = vmatpush.msra.mxu0 0.0
        %1490 = vmatpush.msra.mxu0 0.0
        %1491 = vmatpush.msra.mxu0 0.0
        %1492 = vmatpush.msra.mxu0 0.0
        %1493 = vmatpush.msra.mxu0 0.0
        %1494 = vmatpush.msra.mxu0 0.0
        %1495 = vmatpush.msra.mxu0 0.0
        %1496 = vmatpush.msra.mxu0 0.0
        %1497 = vmatpush.msra.mxu0 0.0
        %1498 = vmatpush.msra.mxu0 0.0
        %1499 = vmatpush.msra.mxu0 0.0
        %v1500 = vand.u32 %v1165, 4294901760
        %v1501 = vsub.f32 %v1165, %v1500
        %v1502 = vand.u32 %v1501, 4294901760
        %v1503 = vsub.f32 %v1501, %v1502
        %v1504 = vand.u32 %v1503, 4294901760
        %1505 = vmatpush.msra.mxu0 %v1504
        %v1506 = vand.u32 %v1159, 4294901760
        %1507 = vmatmul.f32.gmra.mxu0 %v1506
        %v1508 = vpop.f32.mrf.mxu0
        %v1509 = vadd.f32 %v1483, %v1508
        %1510 = vdwg.mxu0
        %1511 = vmatpush.msra.mxu0 0.0
        %1512 = vmatpush.msra.mxu0 0.0
        %1513 = vmatpush.msra.mxu0 0.0
        %1514 = vmatpush.msra.mxu0 0.0
        %1515 = vmatpush.msra.mxu0 0.0
        %1516 = vmatpush.msra.mxu0 0.0
        %1517 = vmatpush.msra.mxu0 0.0
        %1518 = vmatpush.msra.mxu0 0.0
        %1519 = vmatpush.msra.mxu0 0.0
        %1520 = vmatpush.msra.mxu0 0.0
        %1521 = vmatpush.msra.mxu0 0.0
        %1522 = vmatpush.msra.mxu0 0.0
        %1523 = vmatpush.msra.mxu0 0.0
        %1524 = vmatpush.msra.mxu0 0.0
        %1525 = vmatpush.msra.mxu0 0.0
        %v1526 = vand.u32 %v1165, 4294901760
        %v1527 = vsub.f32 %v1165, %v1526
        %1528 = vmatpush.msra.mxu0 %v1527
        %v1529 = vand.u32 %v1159, 4294901760
        %v1530 = vsub.f32 %v1159, %v1529
        %1531 = vmatmul.f32.gmra.mxu0 %v1530
        %v1532 = vpop.f32.mrf.mxu0
        %v1533 = vadd.f32 %v1509, %v1532
        %1534 = vdwg.mxu0
        %1535 = vmatpush.msra.mxu0 0.0
        %1536 = vmatpush.msra.mxu0 0.0
        %1537 = vmatpush.msra.mxu0 0.0
        %1538 = vmatpush.msra.mxu0 0.0
        %1539 = vmatpush.msra.mxu0 0.0
        %1540 = vmatpush.msra.mxu0 0.0
        %1541 = vmatpush.msra.mxu0 0.0
        %1542 = vmatpush.msra.mxu0 0.0
        %1543 = vmatpush.msra.mxu0 0.0
        %1544 = vmatpush.msra.mxu0 0.0
        %1545 = vmatpush.msra.mxu0 0.0
        %1546 = vmatpush.msra.mxu0 0.0
        %1547 = vmatpush.msra.mxu0 0.0
        %1548 = vmatpush.msra.mxu0 0.0
        %1549 = vmatpush.msra.mxu0 0.0
        %v1550 = vand.u32 %v1165, 4294901760
        %1551 = vmatpush.msra.mxu0 %v1550
        %v1552 = vand.u32 %v1159, 4294901760
        %v1553 = vsub.f32 %v1159, %v1552
        %v1554 = vand.u32 %v1553, 4294901760
        %1555 = vmatmul.f32.gmra.mxu0 %v1554
        %v1556 = vpop.f32.mrf.mxu0
        %v1557 = vadd.f32 %v1533, %v1556
        %1558 = vdwg.mxu0
        %1559 = vmatpush.msra.mxu0 0.0
        %1560 = vmatpush.msra.mxu0 0.0
        %1561 = vmatpush.msra.mxu0 0.0
        %1562 = vmatpush.msra.mxu0 0.0
        %1563 = vmatpush.msra.mxu0 0.0
        %1564 = vmatpush.msra.mxu0 0.0
        %1565 = vmatpush.msra.mxu0 0.0
        %1566 = vmatpush.msra.mxu0 0.0
        %1567 = vmatpush.msra.mxu0 0.0
        %1568 = vmatpush.msra.mxu0 0.0
        %1569 = vmatpush.msra.mxu0 0.0
        %1570 = vmatpush.msra.mxu0 0.0
        %1571 = vmatpush.msra.mxu0 0.0
        %1572 = vmatpush.msra.mxu0 0.0
        %1573 = vmatpush.msra.mxu0 0.0
        %v1574 = vand.u32 %v1165, 4294901760
        %v1575 = vsub.f32 %v1165, %v1574
        %v1576 = vand.u32 %v1575, 4294901760
        %1577 = vmatpush.msra.mxu0 %v1576
        %v1578 = vand.u32 %v1159, 4294901760
        %1579 = vmatmul.f32.gmra.mxu0 %v1578
        %v1580 = vpop.f32.mrf.mxu0
        %v1581 = vadd.f32 %v1557, %v1580
        %1582 = vdwg.mxu0
        %1583 = vmatpush.msra.mxu0 0.0
        %1584 = vmatpush.msra.mxu0 0.0
        %1585 = vmatpush.msra.mxu0 0.0
        %1586 = vmatpush.msra.mxu0 0.0
        %1587 = vmatpush.msra.mxu0 0.0
        %1588 = vmatpush.msra.mxu0 0.0
        %1589 = vmatpush.msra.mxu0 0.0
        %1590 = vmatpush.msra.mxu0 0.0
        %1591 = vmatpush.msra.mxu0 0.0
        %1592 = vmatpush.msra.mxu0 0.0
        %1593 = vmatpush.msra.mxu0 0.0
        %1594 = vmatpush.msra.mxu0 0.0
        %1595 = vmatpush.msra.mxu0 0.0
        %1596 = vmatpush.msra.mxu0 0.0
        %1597 = vmatpush.msra.mxu0 0.0
        %v1598 = vand.u32 %v1165, 4294901760
        %1599 = vmatpush.msra.mxu0 %v1598
        %v1600 = vand.u32 %v1159, 4294901760
        %1601 = vmatmul.f32.gmra.mxu0 %v1600
        %v1602 = vpop.f32.mrf.mxu0
        %v1603 = vadd.f32 %v1581, %v1602
        %1604 = vdwg.mxu0
        %v1605 = vadd.f32 %v847, %v1311
        %v1606 = vadd.f32 %v993, %v1457
        %v1607 = vadd.f32 %v1139, %v1603
        %s1608 = scalar_lea.vmem %s212, 24
        %v1609 = vld [vmem:[%s1608] sm:$0xff]
        %1610 = vst [vmem:[#allocation1] ss:$2 sm:$0xff] %v217
        %s1611 = scalar_lea.vmem [#allocation1], 16
        %1612 = vst [vmem:[%s1611] ss:$2 sm:$0xff] %v218
        %v1613 = vld.sshfl [vmem:[#allocation1] sm:$0xff pattern:$0x75316420]
        %v1614 = vld.sshfl [vmem:[#allocation1 + $0x8] sm:$0xff pattern:$0x75316420]
        %v1615 = vld.sshfl [vmem:[#allocation1 + $0x10] sm:$0xff pattern:$0x75316420]
        %1616 = vrot.lane.b32.xlu0 %v1613, 110
        %v1617 = vpop.permute.xlu0 %1616
        %1618 = vrot.lane.b32.xlu0 %v1614, 110
        %v1619 = vpop.permute.xlu0 %1618
        %1620 = vrot.lane.b32.xlu0 %v1615, 110
        %v1621 = vpop.permute.xlu0 %1620
        %vm1622 = vcmask 900096
        %v1623 = vsel %vm1622, %v1617, %v1619
        %v1624 = vsel %vm1622, %v1619, %v1621
        %v1626 = vsel %vm239, %v1609, 0
        %v1628 = vsel %vm243, %v1623, 0
        %v1630 = vsel %vm243, %v1624, 0
        %v1632 = vsel %vm243, %v1621, 0
        %1634 = vmatpush.msra.mxu0 0.0
        %1635 = vmatpush.msra.mxu0 0.0
        %1636 = vmatpush.msra.mxu0 0.0
        %1637 = vmatpush.msra.mxu0 0.0
        %1638 = vmatpush.msra.mxu0 0.0
        %1639 = vmatpush.msra.mxu0 0.0
        %1640 = vmatpush.msra.mxu0 0.0
        %1641 = vmatpush.msra.mxu0 0.0
        %1642 = vmatpush.msra.mxu0 0.0
        %1643 = vmatpush.msra.mxu0 0.0
        %1644 = vmatpush.msra.mxu0 0.0
        %1645 = vmatpush.msra.mxu0 0.0
        %1646 = vmatpush.msra.mxu0 0.0
        %1647 = vmatpush.msra.mxu0 0.0
        %1648 = vmatpush.msra.mxu0 0.0
        %v1649 = vand.u32 %v1628, 4294901760
        %1650 = vmatpush.msra.mxu0 %v1649
        %v1651 = vand.u32 %v1626, 4294901760
        %v1652 = vsub.f32 %v1626, %v1651
        %v1653 = vand.u32 %v1652, 4294901760
        %v1654 = vsub.f32 %v1652, %v1653
        %v1655 = vand.u32 %v1654, 4294901760
        %1656 = vmatmul.f32.gmra.mxu0 %v1655
        %v1657 = vpop.f32.mrf.mxu0
        %v1658 = vadd.f32 0.0, %v1657
        %1659 = vdwg.mxu0
        %1660 = vmatpush.msra.mxu0 0.0
        %1661 = vmatpush.msra.mxu0 0.0
        %1662 = vmatpush.msra.mxu0 0.0
        %1663 = vmatpush.msra.mxu0 0.0
        %1664 = vmatpush.msra.mxu0 0.0
        %1665 = vmatpush.msra.mxu0 0.0
        %1666 = vmatpush.msra.mxu0 0.0
        %1667 = vmatpush.msra.mxu0 0.0
        %1668 = vmatpush.msra.mxu0 0.0
        %1669 = vmatpush.msra.mxu0 0.0
        %1670 = vmatpush.msra.mxu0 0.0
        %1671 = vmatpush.msra.mxu0 0.0
        %1672 = vmatpush.msra.mxu0 0.0
        %1673 = vmatpush.msra.mxu0 0.0
        %1674 = vmatpush.msra.mxu0 0.0
        %v1675 = vand.u32 %v1628, 4294901760
        %v1676 = vsub.f32 %v1628, %v1675
        %v1677 = vand.u32 %v1676, 4294901760
        %v1678 = vsub.f32 %v1676, %v1677
        %v1679 = vand.u32 %v1678, 4294901760
        %1680 = vmatpush.msra.mxu0 %v1679
        %v1681 = vand.u32 %v1626, 4294901760
        %1682 = vmatmul.f32.gmra.mxu0 %v1681
        %v1683 = vpop.f32.mrf.mxu0
        %v1684 = vadd.f32 %v1658, %v1683
        %1685 = vdwg.mxu0
        %1686 = vmatpush.msra.mxu0 0.0
        %1687 = vmatpush.msra.mxu0 0.0
        %1688 = vmatpush.msra.mxu0 0.0
        %1689 = vmatpush.msra.mxu0 0.0
        %1690 = vmatpush.msra.mxu0 0.0
        %1691 = vmatpush.msra.mxu0 0.0
        %1692 = vmatpush.msra.mxu0 0.0
        %1693 = vmatpush.msra.mxu0 0.0
        %1694 = vmatpush.msra.mxu0 0.0
        %1695 = vmatpush.msra.mxu0 0.0
        %1696 = vmatpush.msra.mxu0 0.0
        %1697 = vmatpush.msra.mxu0 0.0
        %1698 = vmatpush.msra.mxu0 0.0
        %1699 = vmatpush.msra.mxu0 0.0
        %1700 = vmatpush.msra.mxu0 0.0
        %v1701 = vand.u32 %v1628, 4294901760
        %v1702 = vsub.f32 %v1628, %v1701
        %1703 = vmatpush.msra.mxu0 %v1702
        %v1704 = vand.u32 %v1626, 4294901760
        %v1705 = vsub.f32 %v1626, %v1704
        %1706 = vmatmul.f32.gmra.mxu0 %v1705
        %v1707 = vpop.f32.mrf.mxu0
        %v1708 = vadd.f32 %v1684, %v1707
        %1709 = vdwg.mxu0
        %1710 = vmatpush.msra.mxu0 0.0
        %1711 = vmatpush.msra.mxu0 0.0
        %1712 = vmatpush.msra.mxu0 0.0
        %1713 = vmatpush.msra.mxu0 0.0
        %1714 = vmatpush.msra.mxu0 0.0
        %1715 = vmatpush.msra.mxu0 0.0
        %1716 = vmatpush.msra.mxu0 0.0
        %1717 = vmatpush.msra.mxu0 0.0
        %1718 = vmatpush.msra.mxu0 0.0
        %1719 = vmatpush.msra.mxu0 0.0
        %1720 = vmatpush.msra.mxu0 0.0
        %1721 = vmatpush.msra.mxu0 0.0
        %1722 = vmatpush.msra.mxu0 0.0
        %1723 = vmatpush.msra.mxu0 0.0
        %1724 = vmatpush.msra.mxu0 0.0
        %v1725 = vand.u32 %v1628, 4294901760
        %1726 = vmatpush.msra.mxu0 %v1725
        %v1727 = vand.u32 %v1626, 4294901760
        %v1728 = vsub.f32 %v1626, %v1727
        %v1729 = vand.u32 %v1728, 4294901760
        %1730 = vmatmul.f32.gmra.mxu0 %v1729
        %v1731 = vpop.f32.mrf.mxu0
        %v1732 = vadd.f32 %v1708, %v1731
        %1733 = vdwg.mxu0
        %1734 = vmatpush.msra.mxu0 0.0
        %1735 = vmatpush.msra.mxu0 0.0
        %1736 = vmatpush.msra.mxu0 0.0
        %1737 = vmatpush.msra.mxu0 0.0
        %1738 = vmatpush.msra.mxu0 0.0
        %1739 = vmatpush.msra.mxu0 0.0
        %1740 = vmatpush.msra.mxu0 0.0
        %1741 = vmatpush.msra.mxu0 0.0
        %1742 = vmatpush.msra.mxu0 0.0
        %1743 = vmatpush.msra.mxu0 0.0
        %1744 = vmatpush.msra.mxu0 0.0
        %1745 = vmatpush.msra.mxu0 0.0
        %1746 = vmatpush.msra.mxu0 0.0
        %1747 = vmatpush.msra.mxu0 0.0
        %1748 = vmatpush.msra.mxu0 0.0
        %v1749 = vand.u32 %v1628, 4294901760
        %v1750 = vsub.f32 %v1628, %v1749
        %v1751 = vand.u32 %v1750, 4294901760
        %1752 = vmatpush.msra.mxu0 %v1751
        %v1753 = vand.u32 %v1626, 4294901760
        %1754 = vmatmul.f32.gmra.mxu0 %v1753
        %v1755 = vpop.f32.mrf.mxu0
        %v1756 = vadd.f32 %v1732, %v1755
        %1757 = vdwg.mxu0
        %1758 = vmatpush.msra.mxu0 0.0
        %1759 = vmatpush.msra.mxu0 0.0
        %1760 = vmatpush.msra.mxu0 0.0
        %1761 = vmatpush.msra.mxu0 0.0
        %1762 = vmatpush.msra.mxu0 0.0
        %1763 = vmatpush.msra.mxu0 0.0
        %1764 = vmatpush.msra.mxu0 0.0
        %1765 = vmatpush.msra.mxu0 0.0
        %1766 = vmatpush.msra.mxu0 0.0
        %1767 = vmatpush.msra.mxu0 0.0
        %1768 = vmatpush.msra.mxu0 0.0
        %1769 = vmatpush.msra.mxu0 0.0
        %1770 = vmatpush.msra.mxu0 0.0
        %1771 = vmatpush.msra.mxu0 0.0
        %1772 = vmatpush.msra.mxu0 0.0
        %v1773 = vand.u32 %v1628, 4294901760
        %1774 = vmatpush.msra.mxu0 %v1773
        %v1775 = vand.u32 %v1626, 4294901760
        %1776 = vmatmul.f32.gmra.mxu0 %v1775
        %v1777 = vpop.f32.mrf.mxu0
        %v1778 = vadd.f32 %v1756, %v1777
        %1779 = vdwg.mxu0
        %1780 = vmatpush.msra.mxu0 0.0
        %1781 = vmatpush.msra.mxu0 0.0
        %1782 = vmatpush.msra.mxu0 0.0
        %1783 = vmatpush.msra.mxu0 0.0
        %1784 = vmatpush.msra.mxu0 0.0
        %1785 = vmatpush.msra.mxu0 0.0
        %1786 = vmatpush.msra.mxu0 0.0
        %1787 = vmatpush.msra.mxu0 0.0
        %1788 = vmatpush.msra.mxu0 0.0
        %1789 = vmatpush.msra.mxu0 0.0
        %1790 = vmatpush.msra.mxu0 0.0
        %1791 = vmatpush.msra.mxu0 0.0
        %1792 = vmatpush.msra.mxu0 0.0
        %1793 = vmatpush.msra.mxu0 0.0
        %1794 = vmatpush.msra.mxu0 0.0
        %v1795 = vand.u32 %v1630, 4294901760
        %1796 = vmatpush.msra.mxu0 %v1795
        %v1797 = vand.u32 %v1626, 4294901760
        %v1798 = vsub.f32 %v1626, %v1797
        %v1799 = vand.u32 %v1798, 4294901760
        %v1800 = vsub.f32 %v1798, %v1799
        %v1801 = vand.u32 %v1800, 4294901760
        %1802 = vmatmul.f32.gmra.mxu0 %v1801
        %v1803 = vpop.f32.mrf.mxu0
        %v1804 = vadd.f32 0.0, %v1803
        %1805 = vdwg.mxu0
        %1806 = vmatpush.msra.mxu0 0.0
        %1807 = vmatpush.msra.mxu0 0.0
        %1808 = vmatpush.msra.mxu0 0.0
        %1809 = vmatpush.msra.mxu0 0.0
        %1810 = vmatpush.msra.mxu0 0.0
        %1811 = vmatpush.msra.mxu0 0.0
        %1812 = vmatpush.msra.mxu0 0.0
        %1813 = vmatpush.msra.mxu0 0.0
        %1814 = vmatpush.msra.mxu0 0.0
        %1815 = vmatpush.msra.mxu0 0.0
        %1816 = vmatpush.msra.mxu0 0.0
        %1817 = vmatpush.msra.mxu0 0.0
        %1818 = vmatpush.msra.mxu0 0.0
        %1819 = vmatpush.msra.mxu0 0.0
        %1820 = vmatpush.msra.mxu0 0.0
        %v1821 = vand.u32 %v1630, 4294901760
        %v1822 = vsub.f32 %v1630, %v1821
        %v1823 = vand.u32 %v1822, 4294901760
        %v1824 = vsub.f32 %v1822, %v1823
        %v1825 = vand.u32 %v1824, 4294901760
        %1826 = vmatpush.msra.mxu0 %v1825
        %v1827 = vand.u32 %v1626, 4294901760
        %1828 = vmatmul.f32.gmra.mxu0 %v1827
        %v1829 = vpop.f32.mrf.mxu0
        %v1830 = vadd.f32 %v1804, %v1829
        %1831 = vdwg.mxu0
        %1832 = vmatpush.msra.mxu0 0.0
        %1833 = vmatpush.msra.mxu0 0.0
        %1834 = vmatpush.msra.mxu0 0.0
        %1835 = vmatpush.msra.mxu0 0.0
        %1836 = vmatpush.msra.mxu0 0.0
        %1837 = vmatpush.msra.mxu0 0.0
        %1838 = vmatpush.msra.mxu0 0.0
        %1839 = vmatpush.msra.mxu0 0.0
        %1840 = vmatpush.msra.mxu0 0.0
        %1841 = vmatpush.msra.mxu0 0.0
        %1842 = vmatpush.msra.mxu0 0.0
        %1843 = vmatpush.msra.mxu0 0.0
        %1844 = vmatpush.msra.mxu0 0.0
        %1845 = vmatpush.msra.mxu0 0.0
        %1846 = vmatpush.msra.mxu0 0.0
        %v1847 = vand.u32 %v1630, 4294901760
        %v1848 = vsub.f32 %v1630, %v1847
        %1849 = vmatpush.msra.mxu0 %v1848
        %v1850 = vand.u32 %v1626, 4294901760
        %v1851 = vsub.f32 %v1626, %v1850
        %1852 = vmatmul.f32.gmra.mxu0 %v1851
        %v1853 = vpop.f32.mrf.mxu0
        %v1854 = vadd.f32 %v1830, %v1853
        %1855 = vdwg.mxu0
        %1856 = vmatpush.msra.mxu0 0.0
        %1857 = vmatpush.msra.mxu0 0.0
        %1858 = vmatpush.msra.mxu0 0.0
        %1859 = vmatpush.msra.mxu0 0.0
        %1860 = vmatpush.msra.mxu0 0.0
        %1861 = vmatpush.msra.mxu0 0.0
        %1862 = vmatpush.msra.mxu0 0.0
        %1863 = vmatpush.msra.mxu0 0.0
        %1864 = vmatpush.msra.mxu0 0.0
        %1865 = vmatpush.msra.mxu0 0.0
        %1866 = vmatpush.msra.mxu0 0.0
        %1867 = vmatpush.msra.mxu0 0.0
        %1868 = vmatpush.msra.mxu0 0.0
        %1869 = vmatpush.msra.mxu0 0.0
        %1870 = vmatpush.msra.mxu0 0.0
        %v1871 = vand.u32 %v1630, 4294901760
        %1872 = vmatpush.msra.mxu0 %v1871
        %v1873 = vand.u32 %v1626, 4294901760
        %v1874 = vsub.f32 %v1626, %v1873
        %v1875 = vand.u32 %v1874, 4294901760
        %1876 = vmatmul.f32.gmra.mxu0 %v1875
        %v1877 = vpop.f32.mrf.mxu0
        %v1878 = vadd.f32 %v1854, %v1877
        %1879 = vdwg.mxu0
        %1880 = vmatpush.msra.mxu0 0.0
        %1881 = vmatpush.msra.mxu0 0.0
        %1882 = vmatpush.msra.mxu0 0.0
        %1883 = vmatpush.msra.mxu0 0.0
        %1884 = vmatpush.msra.mxu0 0.0
        %1885 = vmatpush.msra.mxu0 0.0
        %1886 = vmatpush.msra.mxu0 0.0
        %1887 = vmatpush.msra.mxu0 0.0
        %1888 = vmatpush.msra.mxu0 0.0
        %1889 = vmatpush.msra.mxu0 0.0
        %1890 = vmatpush.msra.mxu0 0.0
        %1891 = vmatpush.msra.mxu0 0.0
        %1892 = vmatpush.msra.mxu0 0.0
        %1893 = vmatpush.msra.mxu0 0.0
        %1894 = vmatpush.msra.mxu0 0.0
        %v1895 = vand.u32 %v1630, 4294901760
        %v1896 = vsub.f32 %v1630, %v1895
        %v1897 = vand.u32 %v1896, 4294901760
        %1898 = vmatpush.msra.mxu0 %v1897
        %v1899 = vand.u32 %v1626, 4294901760
        %1900 = vmatmul.f32.gmra.mxu0 %v1899
        %v1901 = vpop.f32.mrf.mxu0
        %v1902 = vadd.f32 %v1878, %v1901
        %1903 = vdwg.mxu0
        %1904 = vmatpush.msra.mxu0 0.0
        %1905 = vmatpush.msra.mxu0 0.0
        %1906 = vmatpush.msra.mxu0 0.0
        %1907 = vmatpush.msra.mxu0 0.0
        %1908 = vmatpush.msra.mxu0 0.0
        %1909 = vmatpush.msra.mxu0 0.0
        %1910 = vmatpush.msra.mxu0 0.0
        %1911 = vmatpush.msra.mxu0 0.0
        %1912 = vmatpush.msra.mxu0 0.0
        %1913 = vmatpush.msra.mxu0 0.0
        %1914 = vmatpush.msra.mxu0 0.0
        %1915 = vmatpush.msra.mxu0 0.0
        %1916 = vmatpush.msra.mxu0 0.0
        %1917 = vmatpush.msra.mxu0 0.0
        %1918 = vmatpush.msra.mxu0 0.0
        %v1919 = vand.u32 %v1630, 4294901760
        %1920 = vmatpush.msra.mxu0 %v1919
        %v1921 = vand.u32 %v1626, 4294901760
        %1922 = vmatmul.f32.gmra.mxu0 %v1921
        %v1923 = vpop.f32.mrf.mxu0
        %v1924 = vadd.f32 %v1902, %v1923
        %1925 = vdwg.mxu0
        %1926 = vmatpush.msra.mxu0 0.0
        %1927 = vmatpush.msra.mxu0 0.0
        %1928 = vmatpush.msra.mxu0 0.0
        %1929 = vmatpush.msra.mxu0 0.0
        %1930 = vmatpush.msra.mxu0 0.0
        %1931 = vmatpush.msra.mxu0 0.0
        %1932 = vmatpush.msra.mxu0 0.0
        %1933 = vmatpush.msra.mxu0 0.0
        %1934 = vmatpush.msra.mxu0 0.0
        %1935 = vmatpush.msra.mxu0 0.0
        %1936 = vmatpush.msra.mxu0 0.0
        %1937 = vmatpush.msra.mxu0 0.0
        %1938 = vmatpush.msra.mxu0 0.0
        %1939 = vmatpush.msra.mxu0 0.0
        %1940 = vmatpush.msra.mxu0 0.0
        %v1941 = vand.u32 %v1632, 4294901760
        %1942 = vmatpush.msra.mxu0 %v1941
        %v1943 = vand.u32 %v1626, 4294901760
        %v1944 = vsub.f32 %v1626, %v1943
        %v1945 = vand.u32 %v1944, 4294901760
        %v1946 = vsub.f32 %v1944, %v1945
        %v1947 = vand.u32 %v1946, 4294901760
        %1948 = vmatmul.f32.gmra.mxu0 %v1947
        %v1949 = vpop.f32.mrf.mxu0
        %v1950 = vadd.f32 0.0, %v1949
        %1951 = vdwg.mxu0
        %1952 = vmatpush.msra.mxu0 0.0
        %1953 = vmatpush.msra.mxu0 0.0
        %1954 = vmatpush.msra.mxu0 0.0
        %1955 = vmatpush.msra.mxu0 0.0
        %1956 = vmatpush.msra.mxu0 0.0
        %1957 = vmatpush.msra.mxu0 0.0
        %1958 = vmatpush.msra.mxu0 0.0
        %1959 = vmatpush.msra.mxu0 0.0
        %1960 = vmatpush.msra.mxu0 0.0
        %1961 = vmatpush.msra.mxu0 0.0
        %1962 = vmatpush.msra.mxu0 0.0
        %1963 = vmatpush.msra.mxu0 0.0
        %1964 = vmatpush.msra.mxu0 0.0
        %1965 = vmatpush.msra.mxu0 0.0
        %1966 = vmatpush.msra.mxu0 0.0
        %v1967 = vand.u32 %v1632, 4294901760
        %v1968 = vsub.f32 %v1632, %v1967
        %v1969 = vand.u32 %v1968, 4294901760
        %v1970 = vsub.f32 %v1968, %v1969
        %v1971 = vand.u32 %v1970, 4294901760
        %1972 = vmatpush.msra.mxu0 %v1971
        %v1973 = vand.u32 %v1626, 4294901760
        %1974 = vmatmul.f32.gmra.mxu0 %v1973
        %v1975 = vpop.f32.mrf.mxu0
        %v1976 = vadd.f32 %v1950, %v1975
        %1977 = vdwg.mxu0
        %1978 = vmatpush.msra.mxu0 0.0
        %1979 = vmatpush.msra.mxu0 0.0
        %1980 = vmatpush.msra.mxu0 0.0
        %1981 = vmatpush.msra.mxu0 0.0
        %1982 = vmatpush.msra.mxu0 0.0
        %1983 = vmatpush.msra.mxu0 0.0
        %1984 = vmatpush.msra.mxu0 0.0
        %1985 = vmatpush.msra.mxu0 0.0
        %1986 = vmatpush.msra.mxu0 0.0
        %1987 = vmatpush.msra.mxu0 0.0
        %1988 = vmatpush.msra.mxu0 0.0
        %1989 = vmatpush.msra.mxu0 0.0
        %1990 = vmatpush.msra.mxu0 0.0
        %1991 = vmatpush.msra.mxu0 0.0
        %1992 = vmatpush.msra.mxu0 0.0
        %v1993 = vand.u32 %v1632, 4294901760
        %v1994 = vsub.f32 %v1632, %v1993
        %1995 = vmatpush.msra.mxu0 %v1994
        %v1996 = vand.u32 %v1626, 4294901760
        %v1997 = vsub.f32 %v1626, %v1996
        %1998 = vmatmul.f32.gmra.mxu0 %v1997
        %v1999 = vpop.f32.mrf.mxu0
        %v2000 = vadd.f32 %v1976, %v1999
        %2001 = vdwg.mxu0
        %2002 = vmatpush.msra.mxu0 0.0
        %2003 = vmatpush.msra.mxu0 0.0
        %2004 = vmatpush.msra.mxu0 0.0
        %2005 = vmatpush.msra.mxu0 0.0
        %2006 = vmatpush.msra.mxu0 0.0
        %2007 = vmatpush.msra.mxu0 0.0
        %2008 = vmatpush.msra.mxu0 0.0
        %2009 = vmatpush.msra.mxu0 0.0
        %2010 = vmatpush.msra.mxu0 0.0
        %2011 = vmatpush.msra.mxu0 0.0
        %2012 = vmatpush.msra.mxu0 0.0
        %2013 = vmatpush.msra.mxu0 0.0
        %2014 = vmatpush.msra.mxu0 0.0
        %2015 = vmatpush.msra.mxu0 0.0
        %2016 = vmatpush.msra.mxu0 0.0
        %v2017 = vand.u32 %v1632, 4294901760
        %2018 = vmatpush.msra.mxu0 %v2017
        %v2019 = vand.u32 %v1626, 4294901760
        %v2020 = vsub.f32 %v1626, %v2019
        %v2021 = vand.u32 %v2020, 4294901760
        %2022 = vmatmul.f32.gmra.mxu0 %v2021
        %v2023 = vpop.f32.mrf.mxu0
        %v2024 = vadd.f32 %v2000, %v2023
        %2025 = vdwg.mxu0
        %2026 = vmatpush.msra.mxu0 0.0
        %2027 = vmatpush.msra.mxu0 0.0
        %2028 = vmatpush.msra.mxu0 0.0
        %2029 = vmatpush.msra.mxu0 0.0
        %2030 = vmatpush.msra.mxu0 0.0
        %2031 = vmatpush.msra.mxu0 0.0
        %2032 = vmatpush.msra.mxu0 0.0
        %2033 = vmatpush.msra.mxu0 0.0
        %2034 = vmatpush.msra.mxu0 0.0
        %2035 = vmatpush.msra.mxu0 0.0
        %2036 = vmatpush.msra.mxu0 0.0
        %2037 = vmatpush.msra.mxu0 0.0
        %2038 = vmatpush.msra.mxu0 0.0
        %2039 = vmatpush.msra.mxu0 0.0
        %2040 = vmatpush.msra.mxu0 0.0
        %v2041 = vand.u32 %v1632, 4294901760
        %v2042 = vsub.f32 %v1632, %v2041
        %v2043 = vand.u32 %v2042, 4294901760
        %2044 = vmatpush.msra.mxu0 %v2043
        %v2045 = vand.u32 %v1626, 4294901760
        %2046 = vmatmul.f32.gmra.mxu0 %v2045
        %v2047 = vpop.f32.mrf.mxu0
        %v2048 = vadd.f32 %v2024, %v2047
        %2049 = vdwg.mxu0
        %2050 = vmatpush.msra.mxu0 0.0
        %2051 = vmatpush.msra.mxu0 0.0
        %2052 = vmatpush.msra.mxu0 0.0
        %2053 = vmatpush.msra.mxu0 0.0
        %2054 = vmatpush.msra.mxu0 0.0
        %2055 = vmatpush.msra.mxu0 0.0
        %2056 = vmatpush.msra.mxu0 0.0
        %2057 = vmatpush.msra.mxu0 0.0
        %2058 = vmatpush.msra.mxu0 0.0
        %2059 = vmatpush.msra.mxu0 0.0
        %2060 = vmatpush.msra.mxu0 0.0
        %2061 = vmatpush.msra.mxu0 0.0
        %2062 = vmatpush.msra.mxu0 0.0
        %2063 = vmatpush.msra.mxu0 0.0
        %2064 = vmatpush.msra.mxu0 0.0
        %v2065 = vand.u32 %v1632, 4294901760
        %2066 = vmatpush.msra.mxu0 %v2065
        %v2067 = vand.u32 %v1626, 4294901760
        %2068 = vmatmul.f32.gmra.mxu0 %v2067
        %v2069 = vpop.f32.mrf.mxu0
        %v2070 = vadd.f32 %v2048, %v2069
        %2071 = vdwg.mxu0
        %v2072 = vadd.f32 %v1605, %v1778
        %v2073 = vadd.f32 %v1606, %v1924
        %v2074 = vadd.f32 %v1607, %v2070
        %s2075 = scalar_lea.vmem %s212, 32
        %v2076 = vld [vmem:[%s2075] sm:$0xff]
        %2077 = vst [vmem:[#allocation1] ss:$2 sm:$0xff] %v217
        %s2078 = scalar_lea.vmem [#allocation1], 16
        %2079 = vst [vmem:[%s2078] ss:$2 sm:$0xff] %v218
        %v2080 = vld.sshfl [vmem:[#allocation1] sm:$0xff pattern:$0x75316420]
        %v2081 = vld.sshfl [vmem:[#allocation1 + $0x8] sm:$0xff pattern:$0x75316420]
        %v2082 = vld.sshfl [vmem:[#allocation1 + $0x10] sm:$0xff pattern:$0x75316420]
        %2083 = vrot.lane.b32.xlu0 %v2080, 109
        %v2084 = vpop.permute.xlu0 %2083
        %2085 = vrot.lane.b32.xlu0 %v2081, 109
        %v2086 = vpop.permute.xlu0 %2085
        %2087 = vrot.lane.b32.xlu0 %v2082, 109
        %v2088 = vpop.permute.xlu0 %2087
        %vm2089 = vcmask 891904
        %v2090 = vsel %vm2089, %v2084, %v2086
        %v2091 = vsel %vm2089, %v2086, %v2088
        %v2093 = vsel %vm239, %v2076, 0
        %v2095 = vsel %vm243, %v2090, 0
        %v2097 = vsel %vm243, %v2091, 0
        %v2099 = vsel %vm243, %v2088, 0
        %2101 = vmatpush.msra.mxu0 0.0
        %2102 = vmatpush.msra.mxu0 0.0
        %2103 = vmatpush.msra.mxu0 0.0
        %2104 = vmatpush.msra.mxu0 0.0
        %2105 = vmatpush.msra.mxu0 0.0
        %2106 = vmatpush.msra.mxu0 0.0
        %2107 = vmatpush.msra.mxu0 0.0
        %2108 = vmatpush.msra.mxu0 0.0
        %2109 = vmatpush.msra.mxu0 0.0
        %2110 = vmatpush.msra.mxu0 0.0
        %2111 = vmatpush.msra.mxu0 0.0
        %2112 = vmatpush.msra.mxu0 0.0
        %2113 = vmatpush.msra.mxu0 0.0
        %2114 = vmatpush.msra.mxu0 0.0
        %2115 = vmatpush.msra.mxu0 0.0
        %v2116 = vand.u32 %v2095, 4294901760
        %2117 = vmatpush.msra.mxu0 %v2116
        %v2118 = vand.u32 %v2093, 4294901760
        %v2119 = vsub.f32 %v2093, %v2118
        %v2120 = vand.u32 %v2119, 4294901760
        %v2121 = vsub.f32 %v2119, %v2120
        %v2122 = vand.u32 %v2121, 4294901760
        %2123 = vmatmul.f32.gmra.mxu0 %v2122
        %v2124 = vpop.f32.mrf.mxu0
        %v2125 = vadd.f32 0.0, %v2124
        %2126 = vdwg.mxu0
        %2127 = vmatpush.msra.mxu0 0.0
        %2128 = vmatpush.msra.mxu0 0.0
        %2129 = vmatpush.msra.mxu0 0.0
        %2130 = vmatpush.msra.mxu0 0.0
        %2131 = vmatpush.msra.mxu0 0.0
        %2132 = vmatpush.msra.mxu0 0.0
        %2133 = vmatpush.msra.mxu0 0.0
        %2134 = vmatpush.msra.mxu0 0.0
        %2135 = vmatpush.msra.mxu0 0.0
        %2136 = vmatpush.msra.mxu0 0.0
        %2137 = vmatpush.msra.mxu0 0.0
        %2138 = vmatpush.msra.mxu0 0.0
        %2139 = vmatpush.msra.mxu0 0.0
        %2140 = vmatpush.msra.mxu0 0.0
        %2141 = vmatpush.msra.mxu0 0.0
        %v2142 = vand.u32 %v2095, 4294901760
        %v2143 = vsub.f32 %v2095, %v2142
        %v2144 = vand.u32 %v2143, 4294901760
        %v2145 = vsub.f32 %v2143, %v2144
        %v2146 = vand.u32 %v2145, 4294901760
        %2147 = vmatpush.msra.mxu0 %v2146
        %v2148 = vand.u32 %v2093, 4294901760
        %2149 = vmatmul.f32.gmra.mxu0 %v2148
        %v2150 = vpop.f32.mrf.mxu0
        %v2151 = vadd.f32 %v2125, %v2150
        %2152 = vdwg.mxu0
        %2153 = vmatpush.msra.mxu0 0.0
        %2154 = vmatpush.msra.mxu0 0.0
        %2155 = vmatpush.msra.mxu0 0.0
        %2156 = vmatpush.msra.mxu0 0.0
        %2157 = vmatpush.msra.mxu0 0.0
        %2158 = vmatpush.msra.mxu0 0.0
        %2159 = vmatpush.msra.mxu0 0.0
        %2160 = vmatpush.msra.mxu0 0.0
        %2161 = vmatpush.msra.mxu0 0.0
        %2162 = vmatpush.msra.mxu0 0.0
        %2163 = vmatpush.msra.mxu0 0.0
        %2164 = vmatpush.msra.mxu0 0.0
        %2165 = vmatpush.msra.mxu0 0.0
        %2166 = vmatpush.msra.mxu0 0.0
        %2167 = vmatpush.msra.mxu0 0.0
        %v2168 = vand.u32 %v2095, 4294901760
        %v2169 = vsub.f32 %v2095, %v2168
        %2170 = vmatpush.msra.mxu0 %v2169
        %v2171 = vand.u32 %v2093, 4294901760
        %v2172 = vsub.f32 %v2093, %v2171
        %2173 = vmatmul.f32.gmra.mxu0 %v2172
        %v2174 = vpop.f32.mrf.mxu0
        %v2175 = vadd.f32 %v2151, %v2174
        %2176 = vdwg.mxu0
        %2177 = vmatpush.msra.mxu0 0.0
        %2178 = vmatpush.msra.mxu0 0.0
        %2179 = vmatpush.msra.mxu0 0.0
        %2180 = vmatpush.msra.mxu0 0.0
        %2181 = vmatpush.msra.mxu0 0.0
        %2182 = vmatpush.msra.mxu0 0.0
        %2183 = vmatpush.msra.mxu0 0.0
        %2184 = vmatpush.msra.mxu0 0.0
        %2185 = vmatpush.msra.mxu0 0.0
        %2186 = vmatpush.msra.mxu0 0.0
        %2187 = vmatpush.msra.mxu0 0.0
        %2188 = vmatpush.msra.mxu0 0.0
        %2189 = vmatpush.msra.mxu0 0.0
        %2190 = vmatpush.msra.mxu0 0.0
        %2191 = vmatpush.msra.mxu0 0.0
        %v2192 = vand.u32 %v2095, 4294901760
        %2193 = vmatpush.msra.mxu0 %v2192
        %v2194 = vand.u32 %v2093, 4294901760
        %v2195 = vsub.f32 %v2093, %v2194
        %v2196 = vand.u32 %v2195, 4294901760
        %2197 = vmatmul.f32.gmra.mxu0 %v2196
        %v2198 = vpop.f32.mrf.mxu0
        %v2199 = vadd.f32 %v2175, %v2198
        %2200 = vdwg.mxu0
        %2201 = vmatpush.msra.mxu0 0.0
        %2202 = vmatpush.msra.mxu0 0.0
        %2203 = vmatpush.msra.mxu0 0.0
        %2204 = vmatpush.msra.mxu0 0.0
        %2205 = vmatpush.msra.mxu0 0.0
        %2206 = vmatpush.msra.mxu0 0.0
        %2207 = vmatpush.msra.mxu0 0.0
        %2208 = vmatpush.msra.mxu0 0.0
        %2209 = vmatpush.msra.mxu0 0.0
        %2210 = vmatpush.msra.mxu0 0.0
        %2211 = vmatpush.msra.mxu0 0.0
        %2212 = vmatpush.msra.mxu0 0.0
        %2213 = vmatpush.msra.mxu0 0.0
        %2214 = vmatpush.msra.mxu0 0.0
        %2215 = vmatpush.msra.mxu0 0.0
        %v2216 = vand.u32 %v2095, 4294901760
        %v2217 = vsub.f32 %v2095, %v2216
        %v2218 = vand.u32 %v2217, 4294901760
        %2219 = vmatpush.msra.mxu0 %v2218
        %v2220 = vand.u32 %v2093, 4294901760
        %2221 = vmatmul.f32.gmra.mxu0 %v2220
        %v2222 = vpop.f32.mrf.mxu0
        %v2223 = vadd.f32 %v2199, %v2222
        %2224 = vdwg.mxu0
        %2225 = vmatpush.msra.mxu0 0.0
        %2226 = vmatpush.msra.mxu0 0.0
        %2227 = vmatpush.msra.mxu0 0.0
        %2228 = vmatpush.msra.mxu0 0.0
        %2229 = vmatpush.msra.mxu0 0.0
        %2230 = vmatpush.msra.mxu0 0.0
        %2231 = vmatpush.msra.mxu0 0.0
        %2232 = vmatpush.msra.mxu0 0.0
        %2233 = vmatpush.msra.mxu0 0.0
        %2234 = vmatpush.msra.mxu0 0.0
        %2235 = vmatpush.msra.mxu0 0.0
        %2236 = vmatpush.msra.mxu0 0.0
        %2237 = vmatpush.msra.mxu0 0.0
        %2238 = vmatpush.msra.mxu0 0.0
        %2239 = vmatpush.msra.mxu0 0.0
        %v2240 = vand.u32 %v2095, 4294901760
        %2241 = vmatpush.msra.mxu0 %v2240
        %v2242 = vand.u32 %v2093, 4294901760
        %2243 = vmatmul.f32.gmra.mxu0 %v2242
        %v2244 = vpop.f32.mrf.mxu0
        %v2245 = vadd.f32 %v2223, %v2244
        %2246 = vdwg.mxu0
        %2247 = vmatpush.msra.mxu0 0.0
        %2248 = vmatpush.msra.mxu0 0.0
        %2249 = vmatpush.msra.mxu0 0.0
        %2250 = vmatpush.msra.mxu0 0.0
        %2251 = vmatpush.msra.mxu0 0.0
        %2252 = vmatpush.msra.mxu0 0.0
        %2253 = vmatpush.msra.mxu0 0.0
        %2254 = vmatpush.msra.mxu0 0.0
        %2255 = vmatpush.msra.mxu0 0.0
        %2256 = vmatpush.msra.mxu0 0.0
        %2257 = vmatpush.msra.mxu0 0.0
        %2258 = vmatpush.msra.mxu0 0.0
        %2259 = vmatpush.msra.mxu0 0.0
        %2260 = vmatpush.msra.mxu0 0.0
        %2261 = vmatpush.msra.mxu0 0.0
        %v2262 = vand.u32 %v2097, 4294901760
        %2263 = vmatpush.msra.mxu0 %v2262
        %v2264 = vand.u32 %v2093, 4294901760
        %v2265 = vsub.f32 %v2093, %v2264
        %v2266 = vand.u32 %v2265, 4294901760
        %v2267 = vsub.f32 %v2265, %v2266
        %v2268 = vand.u32 %v2267, 4294901760
        %2269 = vmatmul.f32.gmra.mxu0 %v2268
        %v2270 = vpop.f32.mrf.mxu0
        %v2271 = vadd.f32 0.0, %v2270
        %2272 = vdwg.mxu0
        %2273 = vmatpush.msra.mxu0 0.0
        %2274 = vmatpush.msra.mxu0 0.0
        %2275 = vmatpush.msra.mxu0 0.0
        %2276 = vmatpush.msra.mxu0 0.0
        %2277 = vmatpush.msra.mxu0 0.0
        %2278 = vmatpush.msra.mxu0 0.0
        %2279 = vmatpush.msra.mxu0 0.0
        %2280 = vmatpush.msra.mxu0 0.0
        %2281 = vmatpush.msra.mxu0 0.0
        %2282 = vmatpush.msra.mxu0 0.0
        %2283 = vmatpush.msra.mxu0 0.0
        %2284 = vmatpush.msra.mxu0 0.0
        %2285 = vmatpush.msra.mxu0 0.0
        %2286 = vmatpush.msra.mxu0 0.0
        %2287 = vmatpush.msra.mxu0 0.0
        %v2288 = vand.u32 %v2097, 4294901760
        %v2289 = vsub.f32 %v2097, %v2288
        %v2290 = vand.u32 %v2289, 4294901760
        %v2291 = vsub.f32 %v2289, %v2290
        %v2292 = vand.u32 %v2291, 4294901760
        %2293 = vmatpush.msra.mxu0 %v2292
        %v2294 = vand.u32 %v2093, 4294901760
        %2295 = vmatmul.f32.gmra.mxu0 %v2294
        %v2296 = vpop.f32.mrf.mxu0
        %v2297 = vadd.f32 %v2271, %v2296
        %2298 = vdwg.mxu0
        %2299 = vmatpush.msra.mxu0 0.0
        %2300 = vmatpush.msra.mxu0 0.0
        %2301 = vmatpush.msra.mxu0 0.0
        %2302 = vmatpush.msra.mxu0 0.0
        %2303 = vmatpush.msra.mxu0 0.0
        %2304 = vmatpush.msra.mxu0 0.0
        %2305 = vmatpush.msra.mxu0 0.0
        %2306 = vmatpush.msra.mxu0 0.0
        %2307 = vmatpush.msra.mxu0 0.0
        %2308 = vmatpush.msra.mxu0 0.0
        %2309 = vmatpush.msra.mxu0 0.0
        %2310 = vmatpush.msra.mxu0 0.0
        %2311 = vmatpush.msra.mxu0 0.0
        %2312 = vmatpush.msra.mxu0 0.0
        %2313 = vmatpush.msra.mxu0 0.0
        %v2314 = vand.u32 %v2097, 4294901760
        %v2315 = vsub.f32 %v2097, %v2314
        %2316 = vmatpush.msra.mxu0 %v2315
        %v2317 = vand.u32 %v2093, 4294901760
        %v2318 = vsub.f32 %v2093, %v2317
        %2319 = vmatmul.f32.gmra.mxu0 %v2318
        %v2320 = vpop.f32.mrf.mxu0
        %v2321 = vadd.f32 %v2297, %v2320
        %2322 = vdwg.mxu0
        %2323 = vmatpush.msra.mxu0 0.0
        %2324 = vmatpush.msra.mxu0 0.0
        %2325 = vmatpush.msra.mxu0 0.0
        %2326 = vmatpush.msra.mxu0 0.0
        %2327 = vmatpush.msra.mxu0 0.0
        %2328 = vmatpush.msra.mxu0 0.0
        %2329 = vmatpush.msra.mxu0 0.0
        %2330 = vmatpush.msra.mxu0 0.0
        %2331 = vmatpush.msra.mxu0 0.0
        %2332 = vmatpush.msra.mxu0 0.0
        %2333 = vmatpush.msra.mxu0 0.0
        %2334 = vmatpush.msra.mxu0 0.0
        %2335 = vmatpush.msra.mxu0 0.0
        %2336 = vmatpush.msra.mxu0 0.0
        %2337 = vmatpush.msra.mxu0 0.0
        %v2338 = vand.u32 %v2097, 4294901760
        %2339 = vmatpush.msra.mxu0 %v2338
        %v2340 = vand.u32 %v2093, 4294901760
        %v2341 = vsub.f32 %v2093, %v2340
        %v2342 = vand.u32 %v2341, 4294901760
        %2343 = vmatmul.f32.gmra.mxu0 %v2342
        %v2344 = vpop.f32.mrf.mxu0
        %v2345 = vadd.f32 %v2321, %v2344
        %2346 = vdwg.mxu0
        %2347 = vmatpush.msra.mxu0 0.0
        %2348 = vmatpush.msra.mxu0 0.0
        %2349 = vmatpush.msra.mxu0 0.0
        %2350 = vmatpush.msra.mxu0 0.0
        %2351 = vmatpush.msra.mxu0 0.0
        %2352 = vmatpush.msra.mxu0 0.0
        %2353 = vmatpush.msra.mxu0 0.0
        %2354 = vmatpush.msra.mxu0 0.0
        %2355 = vmatpush.msra.mxu0 0.0
        %2356 = vmatpush.msra.mxu0 0.0
        %2357 = vmatpush.msra.mxu0 0.0
        %2358 = vmatpush.msra.mxu0 0.0
        %2359 = vmatpush.msra.mxu0 0.0
        %2360 = vmatpush.msra.mxu0 0.0
        %2361 = vmatpush.msra.mxu0 0.0
        %v2362 = vand.u32 %v2097, 4294901760
        %v2363 = vsub.f32 %v2097, %v2362
        %v2364 = vand.u32 %v2363, 4294901760
        %2365 = vmatpush.msra.mxu0 %v2364
        %v2366 = vand.u32 %v2093, 4294901760
        %2367 = vmatmul.f32.gmra.mxu0 %v2366
        %v2368 = vpop.f32.mrf.mxu0
        %v2369 = vadd.f32 %v2345, %v2368
        %2370 = vdwg.mxu0
        %2371 = vmatpush.msra.mxu0 0.0
        %2372 = vmatpush.msra.mxu0 0.0
        %2373 = vmatpush.msra.mxu0 0.0
        %2374 = vmatpush.msra.mxu0 0.0
        %2375 = vmatpush.msra.mxu0 0.0
        %2376 = vmatpush.msra.mxu0 0.0
        %2377 = vmatpush.msra.mxu0 0.0
        %2378 = vmatpush.msra.mxu0 0.0
        %2379 = vmatpush.msra.mxu0 0.0
        %2380 = vmatpush.msra.mxu0 0.0
        %2381 = vmatpush.msra.mxu0 0.0
        %2382 = vmatpush.msra.mxu0 0.0
        %2383 = vmatpush.msra.mxu0 0.0
        %2384 = vmatpush.msra.mxu0 0.0
        %2385 = vmatpush.msra.mxu0 0.0
        %v2386 = vand.u32 %v2097, 4294901760
        %2387 = vmatpush.msra.mxu0 %v2386
        %v2388 = vand.u32 %v2093, 4294901760
        %2389 = vmatmul.f32.gmra.mxu0 %v2388
        %v2390 = vpop.f32.mrf.mxu0
        %v2391 = vadd.f32 %v2369, %v2390
        %2392 = vdwg.mxu0
        %2393 = vmatpush.msra.mxu0 0.0
        %2394 = vmatpush.msra.mxu0 0.0
        %2395 = vmatpush.msra.mxu0 0.0
        %2396 = vmatpush.msra.mxu0 0.0
        %2397 = vmatpush.msra.mxu0 0.0
        %2398 = vmatpush.msra.mxu0 0.0
        %2399 = vmatpush.msra.mxu0 0.0
        %2400 = vmatpush.msra.mxu0 0.0
        %2401 = vmatpush.msra.mxu0 0.0
        %2402 = vmatpush.msra.mxu0 0.0
        %2403 = vmatpush.msra.mxu0 0.0
        %2404 = vmatpush.msra.mxu0 0.0
        %2405 = vmatpush.msra.mxu0 0.0
        %2406 = vmatpush.msra.mxu0 0.0
        %2407 = vmatpush.msra.mxu0 0.0
        %v2408 = vand.u32 %v2099, 4294901760
        %2409 = vmatpush.msra.mxu0 %v2408
        %v2410 = vand.u32 %v2093, 4294901760
        %v2411 = vsub.f32 %v2093, %v2410
        %v2412 = vand.u32 %v2411, 4294901760
        %v2413 = vsub.f32 %v2411, %v2412
        %v2414 = vand.u32 %v2413, 4294901760
        %2415 = vmatmul.f32.gmra.mxu0 %v2414
        %v2416 = vpop.f32.mrf.mxu0
        %v2417 = vadd.f32 0.0, %v2416
        %2418 = vdwg.mxu0
        %2419 = vmatpush.msra.mxu0 0.0
        %2420 = vmatpush.msra.mxu0 0.0
        %2421 = vmatpush.msra.mxu0 0.0
        %2422 = vmatpush.msra.mxu0 0.0
        %2423 = vmatpush.msra.mxu0 0.0
        %2424 = vmatpush.msra.mxu0 0.0
        %2425 = vmatpush.msra.mxu0 0.0
        %2426 = vmatpush.msra.mxu0 0.0
        %2427 = vmatpush.msra.mxu0 0.0
        %2428 = vmatpush.msra.mxu0 0.0
        %2429 = vmatpush.msra.mxu0 0.0
        %2430 = vmatpush.msra.mxu0 0.0
        %2431 = vmatpush.msra.mxu0 0.0
        %2432 = vmatpush.msra.mxu0 0.0
        %2433 = vmatpush.msra.mxu0 0.0
        %v2434 = vand.u32 %v2099, 4294901760
        %v2435 = vsub.f32 %v2099, %v2434
        %v2436 = vand.u32 %v2435, 4294901760
        %v2437 = vsub.f32 %v2435, %v2436
        %v2438 = vand.u32 %v2437, 4294901760
        %2439 = vmatpush.msra.mxu0 %v2438
        %v2440 = vand.u32 %v2093, 4294901760
        %2441 = vmatmul.f32.gmra.mxu0 %v2440
        %v2442 = vpop.f32.mrf.mxu0
        %v2443 = vadd.f32 %v2417, %v2442
        %2444 = vdwg.mxu0
        %2445 = vmatpush.msra.mxu0 0.0
        %2446 = vmatpush.msra.mxu0 0.0
        %2447 = vmatpush.msra.mxu0 0.0
        %2448 = vmatpush.msra.mxu0 0.0
        %2449 = vmatpush.msra.mxu0 0.0
        %2450 = vmatpush.msra.mxu0 0.0
        %2451 = vmatpush.msra.mxu0 0.0
        %2452 = vmatpush.msra.mxu0 0.0
        %2453 = vmatpush.msra.mxu0 0.0
        %2454 = vmatpush.msra.mxu0 0.0
        %2455 = vmatpush.msra.mxu0 0.0
        %2456 = vmatpush.msra.mxu0 0.0
        %2457 = vmatpush.msra.mxu0 0.0
        %2458 = vmatpush.msra.mxu0 0.0
        %2459 = vmatpush.msra.mxu0 0.0
        %v2460 = vand.u32 %v2099, 4294901760
        %v2461 = vsub.f32 %v2099, %v2460
        %2462 = vmatpush.msra.mxu0 %v2461
        %v2463 = vand.u32 %v2093, 4294901760
        %v2464 = vsub.f32 %v2093, %v2463
        %2465 = vmatmul.f32.gmra.mxu0 %v2464
        %v2466 = vpop.f32.mrf.mxu0
        %v2467 = vadd.f32 %v2443, %v2466
        %2468 = vdwg.mxu0
        %2469 = vmatpush.msra.mxu0 0.0
        %2470 = vmatpush.msra.mxu0 0.0
        %2471 = vmatpush.msra.mxu0 0.0
        %2472 = vmatpush.msra.mxu0 0.0
        %2473 = vmatpush.msra.mxu0 0.0
        %2474 = vmatpush.msra.mxu0 0.0
        %2475 = vmatpush.msra.mxu0 0.0
        %2476 = vmatpush.msra.mxu0 0.0
        %2477 = vmatpush.msra.mxu0 0.0
        %2478 = vmatpush.msra.mxu0 0.0
        %2479 = vmatpush.msra.mxu0 0.0
        %2480 = vmatpush.msra.mxu0 0.0
        %2481 = vmatpush.msra.mxu0 0.0
        %2482 = vmatpush.msra.mxu0 0.0
        %2483 = vmatpush.msra.mxu0 0.0
        %v2484 = vand.u32 %v2099, 4294901760
        %2485 = vmatpush.msra.mxu0 %v2484
        %v2486 = vand.u32 %v2093, 4294901760
        %v2487 = vsub.f32 %v2093, %v2486
        %v2488 = vand.u32 %v2487, 4294901760
        %2489 = vmatmul.f32.gmra.mxu0 %v2488
        %v2490 = vpop.f32.mrf.mxu0
        %v2491 = vadd.f32 %v2467, %v2490
        %2492 = vdwg.mxu0
        %2493 = vmatpush.msra.mxu0 0.0
        %2494 = vmatpush.msra.mxu0 0.0
        %2495 = vmatpush.msra.mxu0 0.0
        %2496 = vmatpush.msra.mxu0 0.0
        %2497 = vmatpush.msra.mxu0 0.0
        %2498 = vmatpush.msra.mxu0 0.0
        %2499 = vmatpush.msra.mxu0 0.0
        %2500 = vmatpush.msra.mxu0 0.0
        %2501 = vmatpush.msra.mxu0 0.0
        %2502 = vmatpush.msra.mxu0 0.0
        %2503 = vmatpush.msra.mxu0 0.0
        %2504 = vmatpush.msra.mxu0 0.0
        %2505 = vmatpush.msra.mxu0 0.0
        %2506 = vmatpush.msra.mxu0 0.0
        %2507 = vmatpush.msra.mxu0 0.0
        %v2508 = vand.u32 %v2099, 4294901760
        %v2509 = vsub.f32 %v2099, %v2508
        %v2510 = vand.u32 %v2509, 4294901760
        %2511 = vmatpush.msra.mxu0 %v2510
        %v2512 = vand.u32 %v2093, 4294901760
        %2513 = vmatmul.f32.gmra.mxu0 %v2512
        %v2514 = vpop.f32.mrf.mxu0
        %v2515 = vadd.f32 %v2491, %v2514
        %2516 = vdwg.mxu0
        %2517 = vmatpush.msra.mxu0 0.0
        %2518 = vmatpush.msra.mxu0 0.0
        %2519 = vmatpush.msra.mxu0 0.0
        %2520 = vmatpush.msra.mxu0 0.0
        %2521 = vmatpush.msra.mxu0 0.0
        %2522 = vmatpush.msra.mxu0 0.0
        %2523 = vmatpush.msra.mxu0 0.0
        %2524 = vmatpush.msra.mxu0 0.0
        %2525 = vmatpush.msra.mxu0 0.0
        %2526 = vmatpush.msra.mxu0 0.0
        %2527 = vmatpush.msra.mxu0 0.0
        %2528 = vmatpush.msra.mxu0 0.0
        %2529 = vmatpush.msra.mxu0 0.0
        %2530 = vmatpush.msra.mxu0 0.0
        %2531 = vmatpush.msra.mxu0 0.0
        %v2532 = vand.u32 %v2099, 4294901760
        %2533 = vmatpush.msra.mxu0 %v2532
        %v2534 = vand.u32 %v2093, 4294901760
        %2535 = vmatmul.f32.gmra.mxu0 %v2534
        %v2536 = vpop.f32.mrf.mxu0
        %v2537 = vadd.f32 %v2515, %v2536
        %2538 = vdwg.mxu0
        %v2539 = vadd.f32 %v2072, %v2245
        %v2540 = vadd.f32 %v2073, %v2391
        %v2541 = vadd.f32 %v2074, %v2537
        %s2542 = scalar_lea.vmem %s212, 40
        %v2543 = vld [vmem:[%s2542] sm:$0xff]
        %2544 = vst [vmem:[#allocation1] ss:$2 sm:$0xff] %v217
        %s2545 = scalar_lea.vmem [#allocation1], 16
        %2546 = vst [vmem:[%s2545] ss:$2 sm:$0xff] %v218
        %v2547 = vld.sshfl [vmem:[#allocation1] sm:$0xff pattern:$0x75316420]
        %v2548 = vld.sshfl [vmem:[#allocation1 + $0x8] sm:$0xff pattern:$0x75316420]
        %v2549 = vld.sshfl [vmem:[#allocation1 + $0x10] sm:$0xff pattern:$0x75316420]
        %2550 = vrot.lane.b32.xlu0 %v2547, 108
        %v2551 = vpop.permute.xlu0 %2550
        %2552 = vrot.lane.b32.xlu0 %v2548, 108
        %v2553 = vpop.permute.xlu0 %2552
        %2554 = vrot.lane.b32.xlu0 %v2549, 108
        %v2555 = vpop.permute.xlu0 %2554
        %vm2556 = vcmask 883712
        %v2557 = vsel %vm2556, %v2551, %v2553
        %v2558 = vsel %vm2556, %v2553, %v2555
        %v2560 = vsel %vm239, %v2543, 0
        %v2562 = vsel %vm243, %v2557, 0
        %v2564 = vsel %vm243, %v2558, 0
        %v2566 = vsel %vm243, %v2555, 0
        %2568 = vmatpush.msra.mxu0 0.0
        %2569 = vmatpush.msra.mxu0 0.0
        %2570 = vmatpush.msra.mxu0 0.0
        %2571 = vmatpush.msra.mxu0 0.0
        %2572 = vmatpush.msra.mxu0 0.0
        %2573 = vmatpush.msra.mxu0 0.0
        %2574 = vmatpush.msra.mxu0 0.0
        %2575 = vmatpush.msra.mxu0 0.0
        %2576 = vmatpush.msra.mxu0 0.0
        %2577 = vmatpush.msra.mxu0 0.0
        %2578 = vmatpush.msra.mxu0 0.0
        %2579 = vmatpush.msra.mxu0 0.0
        %2580 = vmatpush.msra.mxu0 0.0
        %2581 = vmatpush.msra.mxu0 0.0
        %2582 = vmatpush.msra.mxu0 0.0
        %v2583 = vand.u32 %v2562, 4294901760
        %2584 = vmatpush.msra.mxu0 %v2583
        %v2585 = vand.u32 %v2560, 4294901760
        %v2586 = vsub.f32 %v2560, %v2585
        %v2587 = vand.u32 %v2586, 4294901760
        %v2588 = vsub.f32 %v2586, %v2587
        %v2589 = vand.u32 %v2588, 4294901760
        %2590 = vmatmul.f32.gmra.mxu0 %v2589
        %v2591 = vpop.f32.mrf.mxu0
        %v2592 = vadd.f32 0.0, %v2591
        %2593 = vdwg.mxu0
        %2594 = vmatpush.msra.mxu0 0.0
        %2595 = vmatpush.msra.mxu0 0.0
        %2596 = vmatpush.msra.mxu0 0.0
        %2597 = vmatpush.msra.mxu0 0.0
        %2598 = vmatpush.msra.mxu0 0.0
        %2599 = vmatpush.msra.mxu0 0.0
        %2600 = vmatpush.msra.mxu0 0.0
        %2601 = vmatpush.msra.mxu0 0.0
        %2602 = vmatpush.msra.mxu0 0.0
        %2603 = vmatpush.msra.mxu0 0.0
        %2604 = vmatpush.msra.mxu0 0.0
        %2605 = vmatpush.msra.mxu0 0.0
        %2606 = vmatpush.msra.mxu0 0.0
        %2607 = vmatpush.msra.mxu0 0.0
        %2608 = vmatpush.msra.mxu0 0.0
        %v2609 = vand.u32 %v2562, 4294901760
        %v2610 = vsub.f32 %v2562, %v2609
        %v2611 = vand.u32 %v2610, 4294901760
        %v2612 = vsub.f32 %v2610, %v2611
        %v2613 = vand.u32 %v2612, 4294901760
        %2614 = vmatpush.msra.mxu0 %v2613
        %v2615 = vand.u32 %v2560, 4294901760
        %2616 = vmatmul.f32.gmra.mxu0 %v2615
        %v2617 = vpop.f32.mrf.mxu0
        %v2618 = vadd.f32 %v2592, %v2617
        %2619 = vdwg.mxu0
        %2620 = vmatpush.msra.mxu0 0.0
        %2621 = vmatpush.msra.mxu0 0.0
        %2622 = vmatpush.msra.mxu0 0.0
        %2623 = vmatpush.msra.mxu0 0.0
        %2624 = vmatpush.msra.mxu0 0.0
        %2625 = vmatpush.msra.mxu0 0.0
        %2626 = vmatpush.msra.mxu0 0.0
        %2627 = vmatpush.msra.mxu0 0.0
        %2628 = vmatpush.msra.mxu0 0.0
        %2629 = vmatpush.msra.mxu0 0.0
        %2630 = vmatpush.msra.mxu0 0.0
        %2631 = vmatpush.msra.mxu0 0.0
        %2632 = vmatpush.msra.mxu0 0.0
        %2633 = vmatpush.msra.mxu0 0.0
        %2634 = vmatpush.msra.mxu0 0.0
        %v2635 = vand.u32 %v2562, 4294901760
        %v2636 = vsub.f32 %v2562, %v2635
        %2637 = vmatpush.msra.mxu0 %v2636
        %v2638 = vand.u32 %v2560, 4294901760
        %v2639 = vsub.f32 %v2560, %v2638
        %2640 = vmatmul.f32.gmra.mxu0 %v2639
        %v2641 = vpop.f32.mrf.mxu0
        %v2642 = vadd.f32 %v2618, %v2641
        %2643 = vdwg.mxu0
        %2644 = vmatpush.msra.mxu0 0.0
        %2645 = vmatpush.msra.mxu0 0.0
        %2646 = vmatpush.msra.mxu0 0.0
        %2647 = vmatpush.msra.mxu0 0.0
        %2648 = vmatpush.msra.mxu0 0.0
        %2649 = vmatpush.msra.mxu0 0.0
        %2650 = vmatpush.msra.mxu0 0.0
        %2651 = vmatpush.msra.mxu0 0.0
        %2652 = vmatpush.msra.mxu0 0.0
        %2653 = vmatpush.msra.mxu0 0.0
        %2654 = vmatpush.msra.mxu0 0.0
        %2655 = vmatpush.msra.mxu0 0.0
        %2656 = vmatpush.msra.mxu0 0.0
        %2657 = vmatpush.msra.mxu0 0.0
        %2658 = vmatpush.msra.mxu0 0.0
        %v2659 = vand.u32 %v2562, 4294901760
        %2660 = vmatpush.msra.mxu0 %v2659
        %v2661 = vand.u32 %v2560, 4294901760
        %v2662 = vsub.f32 %v2560, %v2661
        %v2663 = vand.u32 %v2662, 4294901760
        %2664 = vmatmul.f32.gmra.mxu0 %v2663
        %v2665 = vpop.f32.mrf.mxu0
        %v2666 = vadd.f32 %v2642, %v2665
        %2667 = vdwg.mxu0
        %2668 = vmatpush.msra.mxu0 0.0
        %2669 = vmatpush.msra.mxu0 0.0
        %2670 = vmatpush.msra.mxu0 0.0
        %2671 = vmatpush.msra.mxu0 0.0
        %2672 = vmatpush.msra.mxu0 0.0
        %2673 = vmatpush.msra.mxu0 0.0
        %2674 = vmatpush.msra.mxu0 0.0
        %2675 = vmatpush.msra.mxu0 0.0
        %2676 = vmatpush.msra.mxu0 0.0
        %2677 = vmatpush.msra.mxu0 0.0
        %2678 = vmatpush.msra.mxu0 0.0
        %2679 = vmatpush.msra.mxu0 0.0
        %2680 = vmatpush.msra.mxu0 0.0
        %2681 = vmatpush.msra.mxu0 0.0
        %2682 = vmatpush.msra.mxu0 0.0
        %v2683 = vand.u32 %v2562, 4294901760
        %v2684 = vsub.f32 %v2562, %v2683
        %v2685 = vand.u32 %v2684, 4294901760
        %2686 = vmatpush.msra.mxu0 %v2685
        %v2687 = vand.u32 %v2560, 4294901760
        %2688 = vmatmul.f32.gmra.mxu0 %v2687
        %v2689 = vpop.f32.mrf.mxu0
        %v2690 = vadd.f32 %v2666, %v2689
        %2691 = vdwg.mxu0
        %2692 = vmatpush.msra.mxu0 0.0
        %2693 = vmatpush.msra.mxu0 0.0
        %2694 = vmatpush.msra.mxu0 0.0
        %2695 = vmatpush.msra.mxu0 0.0
        %2696 = vmatpush.msra.mxu0 0.0
        %2697 = vmatpush.msra.mxu0 0.0
        %2698 = vmatpush.msra.mxu0 0.0
        %2699 = vmatpush.msra.mxu0 0.0
        %2700 = vmatpush.msra.mxu0 0.0
        %2701 = vmatpush.msra.mxu0 0.0
        %2702 = vmatpush.msra.mxu0 0.0
        %2703 = vmatpush.msra.mxu0 0.0
        %2704 = vmatpush.msra.mxu0 0.0
        %2705 = vmatpush.msra.mxu0 0.0
        %2706 = vmatpush.msra.mxu0 0.0
        %v2707 = vand.u32 %v2562, 4294901760
        %2708 = vmatpush.msra.mxu0 %v2707
        %v2709 = vand.u32 %v2560, 4294901760
        %2710 = vmatmul.f32.gmra.mxu0 %v2709
        %v2711 = vpop.f32.mrf.mxu0
        %v2712 = vadd.f32 %v2690, %v2711
        %2713 = vdwg.mxu0
        %2714 = vmatpush.msra.mxu0 0.0
        %2715 = vmatpush.msra.mxu0 0.0
        %2716 = vmatpush.msra.mxu0 0.0
        %2717 = vmatpush.msra.mxu0 0.0
        %2718 = vmatpush.msra.mxu0 0.0
        %2719 = vmatpush.msra.mxu0 0.0
        %2720 = vmatpush.msra.mxu0 0.0
        %2721 = vmatpush.msra.mxu0 0.0
        %2722 = vmatpush.msra.mxu0 0.0
        %2723 = vmatpush.msra.mxu0 0.0
        %2724 = vmatpush.msra.mxu0 0.0
        %2725 = vmatpush.msra.mxu0 0.0
        %2726 = vmatpush.msra.mxu0 0.0
        %2727 = vmatpush.msra.mxu0 0.0
        %2728 = vmatpush.msra.mxu0 0.0
        %v2729 = vand.u32 %v2564, 4294901760
        %2730 = vmatpush.msra.mxu0 %v2729
        %v2731 = vand.u32 %v2560, 4294901760
        %v2732 = vsub.f32 %v2560, %v2731
        %v2733 = vand.u32 %v2732, 4294901760
        %v2734 = vsub.f32 %v2732, %v2733
        %v2735 = vand.u32 %v2734, 4294901760
        %2736 = vmatmul.f32.gmra.mxu0 %v2735
        %v2737 = vpop.f32.mrf.mxu0
        %v2738 = vadd.f32 0.0, %v2737
        %2739 = vdwg.mxu0
        %2740 = vmatpush.msra.mxu0 0.0
        %2741 = vmatpush.msra.mxu0 0.0
        %2742 = vmatpush.msra.mxu0 0.0
        %2743 = vmatpush.msra.mxu0 0.0
        %2744 = vmatpush.msra.mxu0 0.0
        %2745 = vmatpush.msra.mxu0 0.0
        %2746 = vmatpush.msra.mxu0 0.0
        %2747 = vmatpush.msra.mxu0 0.0
        %2748 = vmatpush.msra.mxu0 0.0
        %2749 = vmatpush.msra.mxu0 0.0
        %2750 = vmatpush.msra.mxu0 0.0
        %2751 = vmatpush.msra.mxu0 0.0
        %2752 = vmatpush.msra.mxu0 0.0
        %2753 = vmatpush.msra.mxu0 0.0
        %2754 = vmatpush.msra.mxu0 0.0
        %v2755 = vand.u32 %v2564, 4294901760
        %v2756 = vsub.f32 %v2564, %v2755
        %v2757 = vand.u32 %v2756, 4294901760
        %v2758 = vsub.f32 %v2756, %v2757
        %v2759 = vand.u32 %v2758, 4294901760
        %2760 = vmatpush.msra.mxu0 %v2759
        %v2761 = vand.u32 %v2560, 4294901760
        %2762 = vmatmul.f32.gmra.mxu0 %v2761
        %v2763 = vpop.f32.mrf.mxu0
        %v2764 = vadd.f32 %v2738, %v2763
        %2765 = vdwg.mxu0
        %2766 = vmatpush.msra.mxu0 0.0
        %2767 = vmatpush.msra.mxu0 0.0
        %2768 = vmatpush.msra.mxu0 0.0
        %2769 = vmatpush.msra.mxu0 0.0
        %2770 = vmatpush.msra.mxu0 0.0
        %2771 = vmatpush.msra.mxu0 0.0
        %2772 = vmatpush.msra.mxu0 0.0
        %2773 = vmatpush.msra.mxu0 0.0
        %2774 = vmatpush.msra.mxu0 0.0
        %2775 = vmatpush.msra.mxu0 0.0
        %2776 = vmatpush.msra.mxu0 0.0
        %2777 = vmatpush.msra.mxu0 0.0
        %2778 = vmatpush.msra.mxu0 0.0
        %2779 = vmatpush.msra.mxu0 0.0
        %2780 = vmatpush.msra.mxu0 0.0
        %v2781 = vand.u32 %v2564, 4294901760
        %v2782 = vsub.f32 %v2564, %v2781
        %2783 = vmatpush.msra.mxu0 %v2782
        %v2784 = vand.u32 %v2560, 4294901760
        %v2785 = vsub.f32 %v2560, %v2784
        %2786 = vmatmul.f32.gmra.mxu0 %v2785
        %v2787 = vpop.f32.mrf.mxu0
        %v2788 = vadd.f32 %v2764, %v2787
        %2789 = vdwg.mxu0
        %2790 = vmatpush.msra.mxu0 0.0
        %2791 = vmatpush.msra.mxu0 0.0
        %2792 = vmatpush.msra.mxu0 0.0
        %2793 = vmatpush.msra.mxu0 0.0
        %2794 = vmatpush.msra.mxu0 0.0
        %2795 = vmatpush.msra.mxu0 0.0
        %2796 = vmatpush.msra.mxu0 0.0
        %2797 = vmatpush.msra.mxu0 0.0
        %2798 = vmatpush.msra.mxu0 0.0
        %2799 = vmatpush.msra.mxu0 0.0
        %2800 = vmatpush.msra.mxu0 0.0
        %2801 = vmatpush.msra.mxu0 0.0
        %2802 = vmatpush.msra.mxu0 0.0
        %2803 = vmatpush.msra.mxu0 0.0
        %2804 = vmatpush.msra.mxu0 0.0
        %v2805 = vand.u32 %v2564, 4294901760
        %2806 = vmatpush.msra.mxu0 %v2805
        %v2807 = vand.u32 %v2560, 4294901760
        %v2808 = vsub.f32 %v2560, %v2807
        %v2809 = vand.u32 %v2808, 4294901760
        %2810 = vmatmul.f32.gmra.mxu0 %v2809
        %v2811 = vpop.f32.mrf.mxu0
        %v2812 = vadd.f32 %v2788, %v2811
        %2813 = vdwg.mxu0
        %2814 = vmatpush.msra.mxu0 0.0
        %2815 = vmatpush.msra.mxu0 0.0
        %2816 = vmatpush.msra.mxu0 0.0
        %2817 = vmatpush.msra.mxu0 0.0
        %2818 = vmatpush.msra.mxu0 0.0
        %2819 = vmatpush.msra.mxu0 0.0
        %2820 = vmatpush.msra.mxu0 0.0
        %2821 = vmatpush.msra.mxu0 0.0
        %2822 = vmatpush.msra.mxu0 0.0
        %2823 = vmatpush.msra.mxu0 0.0
        %2824 = vmatpush.msra.mxu0 0.0
        %2825 = vmatpush.msra.mxu0 0.0
        %2826 = vmatpush.msra.mxu0 0.0
        %2827 = vmatpush.msra.mxu0 0.0
        %2828 = vmatpush.msra.mxu0 0.0
        %v2829 = vand.u32 %v2564, 4294901760
        %v2830 = vsub.f32 %v2564, %v2829
        %v2831 = vand.u32 %v2830, 4294901760
        %2832 = vmatpush.msra.mxu0 %v2831
        %v2833 = vand.u32 %v2560, 4294901760
        %2834 = vmatmul.f32.gmra.mxu0 %v2833
        %v2835 = vpop.f32.mrf.mxu0
        %v2836 = vadd.f32 %v2812, %v2835
        %2837 = vdwg.mxu0
        %2838 = vmatpush.msra.mxu0 0.0
        %2839 = vmatpush.msra.mxu0 0.0
        %2840 = vmatpush.msra.mxu0 0.0
        %2841 = vmatpush.msra.mxu0 0.0
        %2842 = vmatpush.msra.mxu0 0.0
        %2843 = vmatpush.msra.mxu0 0.0
        %2844 = vmatpush.msra.mxu0 0.0
        %2845 = vmatpush.msra.mxu0 0.0
        %2846 = vmatpush.msra.mxu0 0.0
        %2847 = vmatpush.msra.mxu0 0.0
        %2848 = vmatpush.msra.mxu0 0.0
        %2849 = vmatpush.msra.mxu0 0.0
        %2850 = vmatpush.msra.mxu0 0.0
        %2851 = vmatpush.msra.mxu0 0.0
        %2852 = vmatpush.msra.mxu0 0.0
        %v2853 = vand.u32 %v2564, 4294901760
        %2854 = vmatpush.msra.mxu0 %v2853
        %v2855 = vand.u32 %v2560, 4294901760
        %2856 = vmatmul.f32.gmra.mxu0 %v2855
        %v2857 = vpop.f32.mrf.mxu0
        %v2858 = vadd.f32 %v2836, %v2857
        %2859 = vdwg.mxu0
        %2860 = vmatpush.msra.mxu0 0.0
        %2861 = vmatpush.msra.mxu0 0.0
        %2862 = vmatpush.msra.mxu0 0.0
        %2863 = vmatpush.msra.mxu0 0.0
        %2864 = vmatpush.msra.mxu0 0.0
        %2865 = vmatpush.msra.mxu0 0.0
        %2866 = vmatpush.msra.mxu0 0.0
        %2867 = vmatpush.msra.mxu0 0.0
        %2868 = vmatpush.msra.mxu0 0.0
        %2869 = vmatpush.msra.mxu0 0.0
        %2870 = vmatpush.msra.mxu0 0.0
        %2871 = vmatpush.msra.mxu0 0.0
        %2872 = vmatpush.msra.mxu0 0.0
        %2873 = vmatpush.msra.mxu0 0.0
        %2874 = vmatpush.msra.mxu0 0.0
        %v2875 = vand.u32 %v2566, 4294901760
        %2876 = vmatpush.msra.mxu0 %v2875
        %v2877 = vand.u32 %v2560, 4294901760
        %v2878 = vsub.f32 %v2560, %v2877
        %v2879 = vand.u32 %v2878, 4294901760
        %v2880 = vsub.f32 %v2878, %v2879
        %v2881 = vand.u32 %v2880, 4294901760
        %2882 = vmatmul.f32.gmra.mxu0 %v2881
        %v2883 = vpop.f32.mrf.mxu0
        %v2884 = vadd.f32 0.0, %v2883
        %2885 = vdwg.mxu0
        %2886 = vmatpush.msra.mxu0 0.0
        %2887 = vmatpush.msra.mxu0 0.0
        %2888 = vmatpush.msra.mxu0 0.0
        %2889 = vmatpush.msra.mxu0 0.0
        %2890 = vmatpush.msra.mxu0 0.0
        %2891 = vmatpush.msra.mxu0 0.0
        %2892 = vmatpush.msra.mxu0 0.0
        %2893 = vmatpush.msra.mxu0 0.0
        %2894 = vmatpush.msra.mxu0 0.0
        %2895 = vmatpush.msra.mxu0 0.0
        %2896 = vmatpush.msra.mxu0 0.0
        %2897 = vmatpush.msra.mxu0 0.0
        %2898 = vmatpush.msra.mxu0 0.0
        %2899 = vmatpush.msra.mxu0 0.0
        %2900 = vmatpush.msra.mxu0 0.0
        %v2901 = vand.u32 %v2566, 4294901760
        %v2902 = vsub.f32 %v2566, %v2901
        %v2903 = vand.u32 %v2902, 4294901760
        %v2904 = vsub.f32 %v2902, %v2903
        %v2905 = vand.u32 %v2904, 4294901760
        %2906 = vmatpush.msra.mxu0 %v2905
        %v2907 = vand.u32 %v2560, 4294901760
        %2908 = vmatmul.f32.gmra.mxu0 %v2907
        %v2909 = vpop.f32.mrf.mxu0
        %v2910 = vadd.f32 %v2884, %v2909
        %2911 = vdwg.mxu0
        %2912 = vmatpush.msra.mxu0 0.0
        %2913 = vmatpush.msra.mxu0 0.0
        %2914 = vmatpush.msra.mxu0 0.0
        %2915 = vmatpush.msra.mxu0 0.0
        %2916 = vmatpush.msra.mxu0 0.0
        %2917 = vmatpush.msra.mxu0 0.0
        %2918 = vmatpush.msra.mxu0 0.0
        %2919 = vmatpush.msra.mxu0 0.0
        %2920 = vmatpush.msra.mxu0 0.0
        %2921 = vmatpush.msra.mxu0 0.0
        %2922 = vmatpush.msra.mxu0 0.0
        %2923 = vmatpush.msra.mxu0 0.0
        %2924 = vmatpush.msra.mxu0 0.0
        %2925 = vmatpush.msra.mxu0 0.0
        %2926 = vmatpush.msra.mxu0 0.0
        %v2927 = vand.u32 %v2566, 4294901760
        %v2928 = vsub.f32 %v2566, %v2927
        %2929 = vmatpush.msra.mxu0 %v2928
        %v2930 = vand.u32 %v2560, 4294901760
        %v2931 = vsub.f32 %v2560, %v2930
        %2932 = vmatmul.f32.gmra.mxu0 %v2931
        %v2933 = vpop.f32.mrf.mxu0
        %v2934 = vadd.f32 %v2910, %v2933
        %2935 = vdwg.mxu0
        %2936 = vmatpush.msra.mxu0 0.0
        %2937 = vmatpush.msra.mxu0 0.0
        %2938 = vmatpush.msra.mxu0 0.0
        %2939 = vmatpush.msra.mxu0 0.0
        %2940 = vmatpush.msra.mxu0 0.0
        %2941 = vmatpush.msra.mxu0 0.0
        %2942 = vmatpush.msra.mxu0 0.0
        %2943 = vmatpush.msra.mxu0 0.0
        %2944 = vmatpush.msra.mxu0 0.0
        %2945 = vmatpush.msra.mxu0 0.0
        %2946 = vmatpush.msra.mxu0 0.0
        %2947 = vmatpush.msra.mxu0 0.0
        %2948 = vmatpush.msra.mxu0 0.0
        %2949 = vmatpush.msra.mxu0 0.0
        %2950 = vmatpush.msra.mxu0 0.0
        %v2951 = vand.u32 %v2566, 4294901760
        %2952 = vmatpush.msra.mxu0 %v2951
        %v2953 = vand.u32 %v2560, 4294901760
        %v2954 = vsub.f32 %v2560, %v2953
        %v2955 = vand.u32 %v2954, 4294901760
        %2956 = vmatmul.f32.gmra.mxu0 %v2955
        %v2957 = vpop.f32.mrf.mxu0
        %v2958 = vadd.f32 %v2934, %v2957
        %2959 = vdwg.mxu0
        %2960 = vmatpush.msra.mxu0 0.0
        %2961 = vmatpush.msra.mxu0 0.0
        %2962 = vmatpush.msra.mxu0 0.0
        %2963 = vmatpush.msra.mxu0 0.0
        %2964 = vmatpush.msra.mxu0 0.0
        %2965 = vmatpush.msra.mxu0 0.0
        %2966 = vmatpush.msra.mxu0 0.0
        %2967 = vmatpush.msra.mxu0 0.0
        %2968 = vmatpush.msra.mxu0 0.0
        %2969 = vmatpush.msra.mxu0 0.0
        %2970 = vmatpush.msra.mxu0 0.0
        %2971 = vmatpush.msra.mxu0 0.0
        %2972 = vmatpush.msra.mxu0 0.0
        %2973 = vmatpush.msra.mxu0 0.0
        %2974 = vmatpush.msra.mxu0 0.0
        %v2975 = vand.u32 %v2566, 4294901760
        %v2976 = vsub.f32 %v2566, %v2975
        %v2977 = vand.u32 %v2976, 4294901760
        %2978 = vmatpush.msra.mxu0 %v2977
        %v2979 = vand.u32 %v2560, 4294901760
        %2980 = vmatmul.f32.gmra.mxu0 %v2979
        %v2981 = vpop.f32.mrf.mxu0
        %v2982 = vadd.f32 %v2958, %v2981
        %2983 = vdwg.mxu0
        %2984 = vmatpush.msra.mxu0 0.0
        %2985 = vmatpush.msra.mxu0 0.0
        %2986 = vmatpush.msra.mxu0 0.0
        %2987 = vmatpush.msra.mxu0 0.0
        %2988 = vmatpush.msra.mxu0 0.0
        %2989 = vmatpush.msra.mxu0 0.0
        %2990 = vmatpush.msra.mxu0 0.0
        %2991 = vmatpush.msra.mxu0 0.0
        %2992 = vmatpush.msra.mxu0 0.0
        %2993 = vmatpush.msra.mxu0 0.0
        %2994 = vmatpush.msra.mxu0 0.0
        %2995 = vmatpush.msra.mxu0 0.0
        %2996 = vmatpush.msra.mxu0 0.0
        %2997 = vmatpush.msra.mxu0 0.0
        %2998 = vmatpush.msra.mxu0 0.0
        %v2999 = vand.u32 %v2566, 4294901760
        %3000 = vmatpush.msra.mxu0 %v2999
        %v3001 = vand.u32 %v2560, 4294901760
        %3002 = vmatmul.f32.gmra.mxu0 %v3001
        %v3003 = vpop.f32.mrf.mxu0
        %v3004 = vadd.f32 %v2982, %v3003
        %3005 = vdwg.mxu0
        %v3006 = vadd.f32 %v2539, %v2712
        %v3007 = vadd.f32 %v2540, %v2858
        %v3008 = vadd.f32 %v2541, %v3004
        %s3009 = scalar_lea.vmem %s212, 48
        %v3010 = vld [vmem:[%s3009] sm:$0xff]
        %3011 = vst [vmem:[#allocation1] ss:$2 sm:$0xff] %v217
        %s3012 = scalar_lea.vmem [#allocation1], 16
        %3013 = vst [vmem:[%s3012] ss:$2 sm:$0xff] %v218
        %v3014 = vld.sshfl [vmem:[#allocation1] sm:$0xff pattern:$0x75316420]
        %v3015 = vld.sshfl [vmem:[#allocation1 + $0x8] sm:$0xff pattern:$0x75316420]
        %v3016 = vld.sshfl [vmem:[#allocation1 + $0x10] sm:$0xff pattern:$0x75316420]
        %3017 = vrot.lane.b32.xlu0 %v3014, 92
        %v3018 = vpop.permute.xlu0 %3017
        %3019 = vrot.lane.b32.xlu0 %v3015, 92
        %v3020 = vpop.permute.xlu0 %3019
        %3021 = vrot.lane.b32.xlu0 %v3016, 92
        %v3022 = vpop.permute.xlu0 %3021
        %vm3023 = vcmask 752640
        %v3024 = vsel %vm3023, %v3018, %v3020
        %v3025 = vsel %vm3023, %v3020, %v3022
        %v3027 = vsel %vm239, %v3010, 0
        %v3029 = vsel %vm243, %v3024, 0
        %v3031 = vsel %vm243, %v3025, 0
        %v3033 = vsel %vm243, %v3022, 0
        %3035 = vmatpush.msra.mxu0 0.0
        %3036 = vmatpush.msra.mxu0 0.0
        %3037 = vmatpush.msra.mxu0 0.0
        %3038 = vmatpush.msra.mxu0 0.0
        %3039 = vmatpush.msra.mxu0 0.0
        %3040 = vmatpush.msra.mxu0 0.0
        %3041 = vmatpush.msra.mxu0 0.0
        %3042 = vmatpush.msra.mxu0 0.0
        %3043 = vmatpush.msra.mxu0 0.0
        %3044 = vmatpush.msra.mxu0 0.0
        %3045 = vmatpush.msra.mxu0 0.0
        %3046 = vmatpush.msra.mxu0 0.0
        %3047 = vmatpush.msra.mxu0 0.0
        %3048 = vmatpush.msra.mxu0 0.0
        %3049 = vmatpush.msra.mxu0 0.0
        %v3050 = vand.u32 %v3029, 4294901760
        %3051 = vmatpush.msra.mxu0 %v3050
        %v3052 = vand.u32 %v3027, 4294901760
        %v3053 = vsub.f32 %v3027, %v3052
        %v3054 = vand.u32 %v3053, 4294901760
        %v3055 = vsub.f32 %v3053, %v3054
        %v3056 = vand.u32 %v3055, 4294901760
        %3057 = vmatmul.f32.gmra.mxu0 %v3056
        %v3058 = vpop.f32.mrf.mxu0
        %v3059 = vadd.f32 0.0, %v3058
        %3060 = vdwg.mxu0
        %3061 = vmatpush.msra.mxu0 0.0
        %3062 = vmatpush.msra.mxu0 0.0
        %3063 = vmatpush.msra.mxu0 0.0
        %3064 = vmatpush.msra.mxu0 0.0
        %3065 = vmatpush.msra.mxu0 0.0
        %3066 = vmatpush.msra.mxu0 0.0
        %3067 = vmatpush.msra.mxu0 0.0
        %3068 = vmatpush.msra.mxu0 0.0
        %3069 = vmatpush.msra.mxu0 0.0
        %3070 = vmatpush.msra.mxu0 0.0
        %3071 = vmatpush.msra.mxu0 0.0
        %3072 = vmatpush.msra.mxu0 0.0
        %3073 = vmatpush.msra.mxu0 0.0
        %3074 = vmatpush.msra.mxu0 0.0
        %3075 = vmatpush.msra.mxu0 0.0
        %v3076 = vand.u32 %v3029, 4294901760
        %v3077 = vsub.f32 %v3029, %v3076
        %v3078 = vand.u32 %v3077, 4294901760
        %v3079 = vsub.f32 %v3077, %v3078
        %v3080 = vand.u32 %v3079, 4294901760
        %3081 = vmatpush.msra.mxu0 %v3080
        %v3082 = vand.u32 %v3027, 4294901760
        %3083 = vmatmul.f32.gmra.mxu0 %v3082
        %v3084 = vpop.f32.mrf.mxu0
        %v3085 = vadd.f32 %v3059, %v3084
        %3086 = vdwg.mxu0
        %3087 = vmatpush.msra.mxu0 0.0
        %3088 = vmatpush.msra.mxu0 0.0
        %3089 = vmatpush.msra.mxu0 0.0
        %3090 = vmatpush.msra.mxu0 0.0
        %3091 = vmatpush.msra.mxu0 0.0
        %3092 = vmatpush.msra.mxu0 0.0
        %3093 = vmatpush.msra.mxu0 0.0
        %3094 = vmatpush.msra.mxu0 0.0
        %3095 = vmatpush.msra.mxu0 0.0
        %3096 = vmatpush.msra.mxu0 0.0
        %3097 = vmatpush.msra.mxu0 0.0
        %3098 = vmatpush.msra.mxu0 0.0
        %3099 = vmatpush.msra.mxu0 0.0
        %3100 = vmatpush.msra.mxu0 0.0
        %3101 = vmatpush.msra.mxu0 0.0
        %v3102 = vand.u32 %v3029, 4294901760
        %v3103 = vsub.f32 %v3029, %v3102
        %3104 = vmatpush.msra.mxu0 %v3103
        %v3105 = vand.u32 %v3027, 4294901760
        %v3106 = vsub.f32 %v3027, %v3105
        %3107 = vmatmul.f32.gmra.mxu0 %v3106
        %v3108 = vpop.f32.mrf.mxu0
        %v3109 = vadd.f32 %v3085, %v3108
        %3110 = vdwg.mxu0
        %3111 = vmatpush.msra.mxu0 0.0
        %3112 = vmatpush.msra.mxu0 0.0
        %3113 = vmatpush.msra.mxu0 0.0
        %3114 = vmatpush.msra.mxu0 0.0
        %3115 = vmatpush.msra.mxu0 0.0
        %3116 = vmatpush.msra.mxu0 0.0
        %3117 = vmatpush.msra.mxu0 0.0
        %3118 = vmatpush.msra.mxu0 0.0
        %3119 = vmatpush.msra.mxu0 0.0
        %3120 = vmatpush.msra.mxu0 0.0
        %3121 = vmatpush.msra.mxu0 0.0
        %3122 = vmatpush.msra.mxu0 0.0
        %3123 = vmatpush.msra.mxu0 0.0
        %3124 = vmatpush.msra.mxu0 0.0
        %3125 = vmatpush.msra.mxu0 0.0
        %v3126 = vand.u32 %v3029, 4294901760
        %3127 = vmatpush.msra.mxu0 %v3126
        %v3128 = vand.u32 %v3027, 4294901760
        %v3129 = vsub.f32 %v3027, %v3128
        %v3130 = vand.u32 %v3129, 4294901760
        %3131 = vmatmul.f32.gmra.mxu0 %v3130
        %v3132 = vpop.f32.mrf.mxu0
        %v3133 = vadd.f32 %v3109, %v3132
        %3134 = vdwg.mxu0
        %3135 = vmatpush.msra.mxu0 0.0
        %3136 = vmatpush.msra.mxu0 0.0
        %3137 = vmatpush.msra.mxu0 0.0
        %3138 = vmatpush.msra.mxu0 0.0
        %3139 = vmatpush.msra.mxu0 0.0
        %3140 = vmatpush.msra.mxu0 0.0
        %3141 = vmatpush.msra.mxu0 0.0
        %3142 = vmatpush.msra.mxu0 0.0
        %3143 = vmatpush.msra.mxu0 0.0
        %3144 = vmatpush.msra.mxu0 0.0
        %3145 = vmatpush.msra.mxu0 0.0
        %3146 = vmatpush.msra.mxu0 0.0
        %3147 = vmatpush.msra.mxu0 0.0
        %3148 = vmatpush.msra.mxu0 0.0
        %3149 = vmatpush.msra.mxu0 0.0
        %v3150 = vand.u32 %v3029, 4294901760
        %v3151 = vsub.f32 %v3029, %v3150
        %v3152 = vand.u32 %v3151, 4294901760
        %3153 = vmatpush.msra.mxu0 %v3152
        %v3154 = vand.u32 %v3027, 4294901760
        %3155 = vmatmul.f32.gmra.mxu0 %v3154
        %v3156 = vpop.f32.mrf.mxu0
        %v3157 = vadd.f32 %v3133, %v3156
        %3158 = vdwg.mxu0
        %3159 = vmatpush.msra.mxu0 0.0
        %3160 = vmatpush.msra.mxu0 0.0
        %3161 = vmatpush.msra.mxu0 0.0
        %3162 = vmatpush.msra.mxu0 0.0
        %3163 = vmatpush.msra.mxu0 0.0
        %3164 = vmatpush.msra.mxu0 0.0
        %3165 = vmatpush.msra.mxu0 0.0
        %3166 = vmatpush.msra.mxu0 0.0
        %3167 = vmatpush.msra.mxu0 0.0
        %3168 = vmatpush.msra.mxu0 0.0
        %3169 = vmatpush.msra.mxu0 0.0
        %3170 = vmatpush.msra.mxu0 0.0
        %3171 = vmatpush.msra.mxu0 0.0
        %3172 = vmatpush.msra.mxu0 0.0
        %3173 = vmatpush.msra.mxu0 0.0
        %v3174 = vand.u32 %v3029, 4294901760
        %3175 = vmatpush.msra.mxu0 %v3174
        %v3176 = vand.u32 %v3027, 4294901760
        %3177 = vmatmul.f32.gmra.mxu0 %v3176
        %v3178 = vpop.f32.mrf.mxu0
        %v3179 = vadd.f32 %v3157, %v3178
        %3180 = vdwg.mxu0
        %3181 = vmatpush.msra.mxu0 0.0
        %3182 = vmatpush.msra.mxu0 0.0
        %3183 = vmatpush.msra.mxu0 0.0
        %3184 = vmatpush.msra.mxu0 0.0
        %3185 = vmatpush.msra.mxu0 0.0
        %3186 = vmatpush.msra.mxu0 0.0
        %3187 = vmatpush.msra.mxu0 0.0
        %3188 = vmatpush.msra.mxu0 0.0
        %3189 = vmatpush.msra.mxu0 0.0
        %3190 = vmatpush.msra.mxu0 0.0
        %3191 = vmatpush.msra.mxu0 0.0
        %3192 = vmatpush.msra.mxu0 0.0
        %3193 = vmatpush.msra.mxu0 0.0
        %3194 = vmatpush.msra.mxu0 0.0
        %3195 = vmatpush.msra.mxu0 0.0
        %v3196 = vand.u32 %v3031, 4294901760
        %3197 = vmatpush.msra.mxu0 %v3196
        %v3198 = vand.u32 %v3027, 4294901760
        %v3199 = vsub.f32 %v3027, %v3198
        %v3200 = vand.u32 %v3199, 4294901760
        %v3201 = vsub.f32 %v3199, %v3200
        %v3202 = vand.u32 %v3201, 4294901760
        %3203 = vmatmul.f32.gmra.mxu0 %v3202
        %v3204 = vpop.f32.mrf.mxu0
        %v3205 = vadd.f32 0.0, %v3204
        %3206 = vdwg.mxu0
        %3207 = vmatpush.msra.mxu0 0.0
        %3208 = vmatpush.msra.mxu0 0.0
        %3209 = vmatpush.msra.mxu0 0.0
        %3210 = vmatpush.msra.mxu0 0.0
        %3211 = vmatpush.msra.mxu0 0.0
        %3212 = vmatpush.msra.mxu0 0.0
        %3213 = vmatpush.msra.mxu0 0.0
        %3214 = vmatpush.msra.mxu0 0.0
        %3215 = vmatpush.msra.mxu0 0.0
        %3216 = vmatpush.msra.mxu0 0.0
        %3217 = vmatpush.msra.mxu0 0.0
        %3218 = vmatpush.msra.mxu0 0.0
        %3219 = vmatpush.msra.mxu0 0.0
        %3220 = vmatpush.msra.mxu0 0.0
        %3221 = vmatpush.msra.mxu0 0.0
        %v3222 = vand.u32 %v3031, 4294901760
        %v3223 = vsub.f32 %v3031, %v3222
        %v3224 = vand.u32 %v3223, 4294901760
        %v3225 = vsub.f32 %v3223, %v3224
        %v3226 = vand.u32 %v3225, 4294901760
        %3227 = vmatpush.msra.mxu0 %v3226
        %v3228 = vand.u32 %v3027, 4294901760
        %3229 = vmatmul.f32.gmra.mxu0 %v3228
        %v3230 = vpop.f32.mrf.mxu0
        %v3231 = vadd.f32 %v3205, %v3230
        %3232 = vdwg.mxu0
        %3233 = vmatpush.msra.mxu0 0.0
        %3234 = vmatpush.msra.mxu0 0.0
        %3235 = vmatpush.msra.mxu0 0.0
        %3236 = vmatpush.msra.mxu0 0.0
        %3237 = vmatpush.msra.mxu0 0.0
        %3238 = vmatpush.msra.mxu0 0.0
        %3239 = vmatpush.msra.mxu0 0.0
        %3240 = vmatpush.msra.mxu0 0.0
        %3241 = vmatpush.msra.mxu0 0.0
        %3242 = vmatpush.msra.mxu0 0.0
        %3243 = vmatpush.msra.mxu0 0.0
        %3244 = vmatpush.msra.mxu0 0.0
        %3245 = vmatpush.msra.mxu0 0.0
        %3246 = vmatpush.msra.mxu0 0.0
        %3247 = vmatpush.msra.mxu0 0.0
        %v3248 = vand.u32 %v3031, 4294901760
        %v3249 = vsub.f32 %v3031, %v3248
        %3250 = vmatpush.msra.mxu0 %v3249
        %v3251 = vand.u32 %v3027, 4294901760
        %v3252 = vsub.f32 %v3027, %v3251
        %3253 = vmatmul.f32.gmra.mxu0 %v3252
        %v3254 = vpop.f32.mrf.mxu0
        %v3255 = vadd.f32 %v3231, %v3254
        %3256 = vdwg.mxu0
        %3257 = vmatpush.msra.mxu0 0.0
        %3258 = vmatpush.msra.mxu0 0.0
        %3259 = vmatpush.msra.mxu0 0.0
        %3260 = vmatpush.msra.mxu0 0.0
        %3261 = vmatpush.msra.mxu0 0.0
        %3262 = vmatpush.msra.mxu0 0.0
        %3263 = vmatpush.msra.mxu0 0.0
        %3264 = vmatpush.msra.mxu0 0.0
        %3265 = vmatpush.msra.mxu0 0.0
        %3266 = vmatpush.msra.mxu0 0.0
        %3267 = vmatpush.msra.mxu0 0.0
        %3268 = vmatpush.msra.mxu0 0.0
        %3269 = vmatpush.msra.mxu0 0.0
        %3270 = vmatpush.msra.mxu0 0.0
        %3271 = vmatpush.msra.mxu0 0.0
        %v3272 = vand.u32 %v3031, 4294901760
        %3273 = vmatpush.msra.mxu0 %v3272
        %v3274 = vand.u32 %v3027, 4294901760
        %v3275 = vsub.f32 %v3027, %v3274
        %v3276 = vand.u32 %v3275, 4294901760
        %3277 = vmatmul.f32.gmra.mxu0 %v3276
        %v3278 = vpop.f32.mrf.mxu0
        %v3279 = vadd.f32 %v3255, %v3278
        %3280 = vdwg.mxu0
        %3281 = vmatpush.msra.mxu0 0.0
        %3282 = vmatpush.msra.mxu0 0.0
        %3283 = vmatpush.msra.mxu0 0.0
        %3284 = vmatpush.msra.mxu0 0.0
        %3285 = vmatpush.msra.mxu0 0.0
        %3286 = vmatpush.msra.mxu0 0.0
        %3287 = vmatpush.msra.mxu0 0.0
        %3288 = vmatpush.msra.mxu0 0.0
        %3289 = vmatpush.msra.mxu0 0.0
        %3290 = vmatpush.msra.mxu0 0.0
        %3291 = vmatpush.msra.mxu0 0.0
        %3292 = vmatpush.msra.mxu0 0.0
        %3293 = vmatpush.msra.mxu0 0.0
        %3294 = vmatpush.msra.mxu0 0.0
        %3295 = vmatpush.msra.mxu0 0.0
        %v3296 = vand.u32 %v3031, 4294901760
        %v3297 = vsub.f32 %v3031, %v3296
        %v3298 = vand.u32 %v3297, 4294901760
        %3299 = vmatpush.msra.mxu0 %v3298
        %v3300 = vand.u32 %v3027, 4294901760
        %3301 = vmatmul.f32.gmra.mxu0 %v3300
        %v3302 = vpop.f32.mrf.mxu0
        %v3303 = vadd.f32 %v3279, %v3302
        %3304 = vdwg.mxu0
        %3305 = vmatpush.msra.mxu0 0.0
        %3306 = vmatpush.msra.mxu0 0.0
        %3307 = vmatpush.msra.mxu0 0.0
        %3308 = vmatpush.msra.mxu0 0.0
        %3309 = vmatpush.msra.mxu0 0.0
        %3310 = vmatpush.msra.mxu0 0.0
        %3311 = vmatpush.msra.mxu0 0.0
        %3312 = vmatpush.msra.mxu0 0.0
        %3313 = vmatpush.msra.mxu0 0.0
        %3314 = vmatpush.msra.mxu0 0.0
        %3315 = vmatpush.msra.mxu0 0.0
        %3316 = vmatpush.msra.mxu0 0.0
        %3317 = vmatpush.msra.mxu0 0.0
        %3318 = vmatpush.msra.mxu0 0.0
        %3319 = vmatpush.msra.mxu0 0.0
        %v3320 = vand.u32 %v3031, 4294901760
        %3321 = vmatpush.msra.mxu0 %v3320
        %v3322 = vand.u32 %v3027, 4294901760
        %3323 = vmatmul.f32.gmra.mxu0 %v3322
        %v3324 = vpop.f32.mrf.mxu0
        %v3325 = vadd.f32 %v3303, %v3324
        %3326 = vdwg.mxu0
        %3327 = vmatpush.msra.mxu0 0.0
        %3328 = vmatpush.msra.mxu0 0.0
        %3329 = vmatpush.msra.mxu0 0.0
        %3330 = vmatpush.msra.mxu0 0.0
        %3331 = vmatpush.msra.mxu0 0.0
        %3332 = vmatpush.msra.mxu0 0.0
        %3333 = vmatpush.msra.mxu0 0.0
        %3334 = vmatpush.msra.mxu0 0.0
        %3335 = vmatpush.msra.mxu0 0.0
        %3336 = vmatpush.msra.mxu0 0.0
        %3337 = vmatpush.msra.mxu0 0.0
        %3338 = vmatpush.msra.mxu0 0.0
        %3339 = vmatpush.msra.mxu0 0.0
        %3340 = vmatpush.msra.mxu0 0.0
        %3341 = vmatpush.msra.mxu0 0.0
        %v3342 = vand.u32 %v3033, 4294901760
        %3343 = vmatpush.msra.mxu0 %v3342
        %v3344 = vand.u32 %v3027, 4294901760
        %v3345 = vsub.f32 %v3027, %v3344
        %v3346 = vand.u32 %v3345, 4294901760
        %v3347 = vsub.f32 %v3345, %v3346
        %v3348 = vand.u32 %v3347, 4294901760
        %3349 = vmatmul.f32.gmra.mxu0 %v3348
        %v3350 = vpop.f32.mrf.mxu0
        %v3351 = vadd.f32 0.0, %v3350
        %3352 = vdwg.mxu0
        %3353 = vmatpush.msra.mxu0 0.0
        %3354 = vmatpush.msra.mxu0 0.0
        %3355 = vmatpush.msra.mxu0 0.0
        %3356 = vmatpush.msra.mxu0 0.0
        %3357 = vmatpush.msra.mxu0 0.0
        %3358 = vmatpush.msra.mxu0 0.0
        %3359 = vmatpush.msra.mxu0 0.0
        %3360 = vmatpush.msra.mxu0 0.0
        %3361 = vmatpush.msra.mxu0 0.0
        %3362 = vmatpush.msra.mxu0 0.0
        %3363 = vmatpush.msra.mxu0 0.0
        %3364 = vmatpush.msra.mxu0 0.0
        %3365 = vmatpush.msra.mxu0 0.0
        %3366 = vmatpush.msra.mxu0 0.0
        %3367 = vmatpush.msra.mxu0 0.0
        %v3368 = vand.u32 %v3033, 4294901760
        %v3369 = vsub.f32 %v3033, %v3368
        %v3370 = vand.u32 %v3369, 4294901760
        %v3371 = vsub.f32 %v3369, %v3370
        %v3372 = vand.u32 %v3371, 4294901760
        %3373 = vmatpush.msra.mxu0 %v3372
        %v3374 = vand.u32 %v3027, 4294901760
        %3375 = vmatmul.f32.gmra.mxu0 %v3374
        %v3376 = vpop.f32.mrf.mxu0
        %v3377 = vadd.f32 %v3351, %v3376
        %3378 = vdwg.mxu0
        %3379 = vmatpush.msra.mxu0 0.0
        %3380 = vmatpush.msra.mxu0 0.0
        %3381 = vmatpush.msra.mxu0 0.0
        %3382 = vmatpush.msra.mxu0 0.0
        %3383 = vmatpush.msra.mxu0 0.0
        %3384 = vmatpush.msra.mxu0 0.0
        %3385 = vmatpush.msra.mxu0 0.0
        %3386 = vmatpush.msra.mxu0 0.0
        %3387 = vmatpush.msra.mxu0 0.0
        %3388 = vmatpush.msra.mxu0 0.0
        %3389 = vmatpush.msra.mxu0 0.0
        %3390 = vmatpush.msra.mxu0 0.0
        %3391 = vmatpush.msra.mxu0 0.0
        %3392 = vmatpush.msra.mxu0 0.0
        %3393 = vmatpush.msra.mxu0 0.0
        %v3394 = vand.u32 %v3033, 4294901760
        %v3395 = vsub.f32 %v3033, %v3394
        %3396 = vmatpush.msra.mxu0 %v3395
        %v3397 = vand.u32 %v3027, 4294901760
        %v3398 = vsub.f32 %v3027, %v3397
        %3399 = vmatmul.f32.gmra.mxu0 %v3398
        %v3400 = vpop.f32.mrf.mxu0
        %v3401 = vadd.f32 %v3377, %v3400
        %3402 = vdwg.mxu0
        %3403 = vmatpush.msra.mxu0 0.0
        %3404 = vmatpush.msra.mxu0 0.0
        %3405 = vmatpush.msra.mxu0 0.0
        %3406 = vmatpush.msra.mxu0 0.0
        %3407 = vmatpush.msra.mxu0 0.0
        %3408 = vmatpush.msra.mxu0 0.0
        %3409 = vmatpush.msra.mxu0 0.0
        %3410 = vmatpush.msra.mxu0 0.0
        %3411 = vmatpush.msra.mxu0 0.0
        %3412 = vmatpush.msra.mxu0 0.0
        %3413 = vmatpush.msra.mxu0 0.0
        %3414 = vmatpush.msra.mxu0 0.0
        %3415 = vmatpush.msra.mxu0 0.0
        %3416 = vmatpush.msra.mxu0 0.0
        %3417 = vmatpush.msra.mxu0 0.0
        %v3418 = vand.u32 %v3033, 4294901760
        %3419 = vmatpush.msra.mxu0 %v3418
        %v3420 = vand.u32 %v3027, 4294901760
        %v3421 = vsub.f32 %v3027, %v3420
        %v3422 = vand.u32 %v3421, 4294901760
        %3423 = vmatmul.f32.gmra.mxu0 %v3422
        %v3424 = vpop.f32.mrf.mxu0
        %v3425 = vadd.f32 %v3401, %v3424
        %3426 = vdwg.mxu0
        %3427 = vmatpush.msra.mxu0 0.0
        %3428 = vmatpush.msra.mxu0 0.0
        %3429 = vmatpush.msra.mxu0 0.0
        %3430 = vmatpush.msra.mxu0 0.0
        %3431 = vmatpush.msra.mxu0 0.0
        %3432 = vmatpush.msra.mxu0 0.0
        %3433 = vmatpush.msra.mxu0 0.0
        %3434 = vmatpush.msra.mxu0 0.0
        %3435 = vmatpush.msra.mxu0 0.0
        %3436 = vmatpush.msra.mxu0 0.0
        %3437 = vmatpush.msra.mxu0 0.0
        %3438 = vmatpush.msra.mxu0 0.0
        %3439 = vmatpush.msra.mxu0 0.0
        %3440 = vmatpush.msra.mxu0 0.0
        %3441 = vmatpush.msra.mxu0 0.0
        %v3442 = vand.u32 %v3033, 4294901760
        %v3443 = vsub.f32 %v3033, %v3442
        %v3444 = vand.u32 %v3443, 4294901760
        %3445 = vmatpush.msra.mxu0 %v3444
        %v3446 = vand.u32 %v3027, 4294901760
        %3447 = vmatmul.f32.gmra.mxu0 %v3446
        %v3448 = vpop.f32.mrf.mxu0
        %v3449 = vadd.f32 %v3425, %v3448
        %3450 = vdwg.mxu0
        %3451 = vmatpush.msra.mxu0 0.0
        %3452 = vmatpush.msra.mxu0 0.0
        %3453 = vmatpush.msra.mxu0 0.0
        %3454 = vmatpush.msra.mxu0 0.0
        %3455 = vmatpush.msra.mxu0 0.0
        %3456 = vmatpush.msra.mxu0 0.0
        %3457 = vmatpush.msra.mxu0 0.0
        %3458 = vmatpush.msra.mxu0 0.0
        %3459 = vmatpush.msra.mxu0 0.0
        %3460 = vmatpush.msra.mxu0 0.0
        %3461 = vmatpush.msra.mxu0 0.0
        %3462 = vmatpush.msra.mxu0 0.0
        %3463 = vmatpush.msra.mxu0 0.0
        %3464 = vmatpush.msra.mxu0 0.0
        %3465 = vmatpush.msra.mxu0 0.0
        %v3466 = vand.u32 %v3033, 4294901760
        %3467 = vmatpush.msra.mxu0 %v3466
        %v3468 = vand.u32 %v3027, 4294901760
        %3469 = vmatmul.f32.gmra.mxu0 %v3468
        %v3470 = vpop.f32.mrf.mxu0
        %v3471 = vadd.f32 %v3449, %v3470
        %3472 = vdwg.mxu0
        %v3473 = vadd.f32 %v3006, %v3179
        %v3474 = vadd.f32 %v3007, %v3325
        %v3475 = vadd.f32 %v3008, %v3471
        %s3476 = scalar_lea.vmem %s212, 56
        %v3477 = vld [vmem:[%s3476] sm:$0xff]
        %3478 = vst [vmem:[#allocation1] ss:$2 sm:$0xff] %v217
        %s3479 = scalar_lea.vmem [#allocation1], 16
        %3480 = vst [vmem:[%s3479] ss:$2 sm:$0xff] %v218
        %v3481 = vld.sshfl [vmem:[#allocation1] sm:$0xff pattern:$0x75316420]
        %v3482 = vld.sshfl [vmem:[#allocation1 + $0x8] sm:$0xff pattern:$0x75316420]
        %v3483 = vld.sshfl [vmem:[#allocation1 + $0x10] sm:$0xff pattern:$0x75316420]
        %3484 = vrot.lane.b32.xlu0 %v3481, 91
        %v3485 = vpop.permute.xlu0 %3484
        %3486 = vrot.lane.b32.xlu0 %v3482, 91
        %v3487 = vpop.permute.xlu0 %3486
        %3488 = vrot.lane.b32.xlu0 %v3483, 91
        %v3489 = vpop.permute.xlu0 %3488
        %vm3490 = vcmask 744448
        %v3491 = vsel %vm3490, %v3485, %v3487
        %v3492 = vsel %vm3490, %v3487, %v3489
        %v3494 = vsel %vm239, %v3477, 0
        %v3496 = vsel %vm243, %v3491, 0
        %v3498 = vsel %vm243, %v3492, 0
        %v3500 = vsel %vm243, %v3489, 0
        %3502 = vmatpush.msra.mxu0 0.0
        %3503 = vmatpush.msra.mxu0 0.0
        %3504 = vmatpush.msra.mxu0 0.0
        %3505 = vmatpush.msra.mxu0 0.0
        %3506 = vmatpush.msra.mxu0 0.0
        %3507 = vmatpush.msra.mxu0 0.0
        %3508 = vmatpush.msra.mxu0 0.0
        %3509 = vmatpush.msra.mxu0 0.0
        %3510 = vmatpush.msra.mxu0 0.0
        %3511 = vmatpush.msra.mxu0 0.0
        %3512 = vmatpush.msra.mxu0 0.0
        %3513 = vmatpush.msra.mxu0 0.0
        %3514 = vmatpush.msra.mxu0 0.0
        %3515 = vmatpush.msra.mxu0 0.0
        %3516 = vmatpush.msra.mxu0 0.0
        %v3517 = vand.u32 %v3496, 4294901760
        %3518 = vmatpush.msra.mxu0 %v3517
        %v3519 = vand.u32 %v3494, 4294901760
        %v3520 = vsub.f32 %v3494, %v3519
        %v3521 = vand.u32 %v3520, 4294901760
        %v3522 = vsub.f32 %v3520, %v3521
        %v3523 = vand.u32 %v3522, 4294901760
        %3524 = vmatmul.f32.gmra.mxu0 %v3523
        %v3525 = vpop.f32.mrf.mxu0
        %v3526 = vadd.f32 0.0, %v3525
        %3527 = vdwg.mxu0
        %3528 = vmatpush.msra.mxu0 0.0
        %3529 = vmatpush.msra.mxu0 0.0
        %3530 = vmatpush.msra.mxu0 0.0
        %3531 = vmatpush.msra.mxu0 0.0
        %3532 = vmatpush.msra.mxu0 0.0
        %3533 = vmatpush.msra.mxu0 0.0
        %3534 = vmatpush.msra.mxu0 0.0
        %3535 = vmatpush.msra.mxu0 0.0
        %3536 = vmatpush.msra.mxu0 0.0
        %3537 = vmatpush.msra.mxu0 0.0
        %3538 = vmatpush.msra.mxu0 0.0
        %3539 = vmatpush.msra.mxu0 0.0
        %3540 = vmatpush.msra.mxu0 0.0
        %3541 = vmatpush.msra.mxu0 0.0
        %3542 = vmatpush.msra.mxu0 0.0
        %v3543 = vand.u32 %v3496, 4294901760
        %v3544 = vsub.f32 %v3496, %v3543
        %v3545 = vand.u32 %v3544, 4294901760
        %v3546 = vsub.f32 %v3544, %v3545
        %v3547 = vand.u32 %v3546, 4294901760
        %3548 = vmatpush.msra.mxu0 %v3547
        %v3549 = vand.u32 %v3494, 4294901760
        %3550 = vmatmul.f32.gmra.mxu0 %v3549
        %v3551 = vpop.f32.mrf.mxu0
        %v3552 = vadd.f32 %v3526, %v3551
        %3553 = vdwg.mxu0
        %3554 = vmatpush.msra.mxu0 0.0
        %3555 = vmatpush.msra.mxu0 0.0
        %3556 = vmatpush.msra.mxu0 0.0
        %3557 = vmatpush.msra.mxu0 0.0
        %3558 = vmatpush.msra.mxu0 0.0
        %3559 = vmatpush.msra.mxu0 0.0
        %3560 = vmatpush.msra.mxu0 0.0
        %3561 = vmatpush.msra.mxu0 0.0
        %3562 = vmatpush.msra.mxu0 0.0
        %3563 = vmatpush.msra.mxu0 0.0
        %3564 = vmatpush.msra.mxu0 0.0
        %3565 = vmatpush.msra.mxu0 0.0
        %3566 = vmatpush.msra.mxu0 0.0
        %3567 = vmatpush.msra.mxu0 0.0
        %3568 = vmatpush.msra.mxu0 0.0
        %v3569 = vand.u32 %v3496, 4294901760
        %v3570 = vsub.f32 %v3496, %v3569
        %3571 = vmatpush.msra.mxu0 %v3570
        %v3572 = vand.u32 %v3494, 4294901760
        %v3573 = vsub.f32 %v3494, %v3572
        %3574 = vmatmul.f32.gmra.mxu0 %v3573
        %v3575 = vpop.f32.mrf.mxu0
        %v3576 = vadd.f32 %v3552, %v3575
        %3577 = vdwg.mxu0
        %3578 = vmatpush.msra.mxu0 0.0
        %3579 = vmatpush.msra.mxu0 0.0
        %3580 = vmatpush.msra.mxu0 0.0
        %3581 = vmatpush.msra.mxu0 0.0
        %3582 = vmatpush.msra.mxu0 0.0
        %3583 = vmatpush.msra.mxu0 0.0
        %3584 = vmatpush.msra.mxu0 0.0
        %3585 = vmatpush.msra.mxu0 0.0
        %3586 = vmatpush.msra.mxu0 0.0
        %3587 = vmatpush.msra.mxu0 0.0
        %3588 = vmatpush.msra.mxu0 0.0
        %3589 = vmatpush.msra.mxu0 0.0
        %3590 = vmatpush.msra.mxu0 0.0
        %3591 = vmatpush.msra.mxu0 0.0
        %3592 = vmatpush.msra.mxu0 0.0
        %v3593 = vand.u32 %v3496, 4294901760
        %3594 = vmatpush.msra.mxu0 %v3593
        %v3595 = vand.u32 %v3494, 4294901760
        %v3596 = vsub.f32 %v3494, %v3595
        %v3597 = vand.u32 %v3596, 4294901760
        %3598 = vmatmul.f32.gmra.mxu0 %v3597
        %v3599 = vpop.f32.mrf.mxu0
        %v3600 = vadd.f32 %v3576, %v3599
        %3601 = vdwg.mxu0
        %3602 = vmatpush.msra.mxu0 0.0
        %3603 = vmatpush.msra.mxu0 0.0
        %3604 = vmatpush.msra.mxu0 0.0
        %3605 = vmatpush.msra.mxu0 0.0
        %3606 = vmatpush.msra.mxu0 0.0
        %3607 = vmatpush.msra.mxu0 0.0
        %3608 = vmatpush.msra.mxu0 0.0
        %3609 = vmatpush.msra.mxu0 0.0
        %3610 = vmatpush.msra.mxu0 0.0
        %3611 = vmatpush.msra.mxu0 0.0
        %3612 = vmatpush.msra.mxu0 0.0
        %3613 = vmatpush.msra.mxu0 0.0
        %3614 = vmatpush.msra.mxu0 0.0
        %3615 = vmatpush.msra.mxu0 0.0
        %3616 = vmatpush.msra.mxu0 0.0
        %v3617 = vand.u32 %v3496, 4294901760
        %v3618 = vsub.f32 %v3496, %v3617
        %v3619 = vand.u32 %v3618, 4294901760
        %3620 = vmatpush.msra.mxu0 %v3619
        %v3621 = vand.u32 %v3494, 4294901760
        %3622 = vmatmul.f32.gmra.mxu0 %v3621
        %v3623 = vpop.f32.mrf.mxu0
        %v3624 = vadd.f32 %v3600, %v3623
        %3625 = vdwg.mxu0
        %3626 = vmatpush.msra.mxu0 0.0
        %3627 = vmatpush.msra.mxu0 0.0
        %3628 = vmatpush.msra.mxu0 0.0
        %3629 = vmatpush.msra.mxu0 0.0
        %3630 = vmatpush.msra.mxu0 0.0
        %3631 = vmatpush.msra.mxu0 0.0
        %3632 = vmatpush.msra.mxu0 0.0
        %3633 = vmatpush.msra.mxu0 0.0
        %3634 = vmatpush.msra.mxu0 0.0
        %3635 = vmatpush.msra.mxu0 0.0
        %3636 = vmatpush.msra.mxu0 0.0
        %3637 = vmatpush.msra.mxu0 0.0
        %3638 = vmatpush.msra.mxu0 0.0
        %3639 = vmatpush.msra.mxu0 0.0
        %3640 = vmatpush.msra.mxu0 0.0
        %v3641 = vand.u32 %v3496, 4294901760
        %3642 = vmatpush.msra.mxu0 %v3641
        %v3643 = vand.u32 %v3494, 4294901760
        %3644 = vmatmul.f32.gmra.mxu0 %v3643
        %v3645 = vpop.f32.mrf.mxu0
        %v3646 = vadd.f32 %v3624, %v3645
        %3647 = vdwg.mxu0
        %3648 = vmatpush.msra.mxu0 0.0
        %3649 = vmatpush.msra.mxu0 0.0
        %3650 = vmatpush.msra.mxu0 0.0
        %3651 = vmatpush.msra.mxu0 0.0
        %3652 = vmatpush.msra.mxu0 0.0
        %3653 = vmatpush.msra.mxu0 0.0
        %3654 = vmatpush.msra.mxu0 0.0
        %3655 = vmatpush.msra.mxu0 0.0
        %3656 = vmatpush.msra.mxu0 0.0
        %3657 = vmatpush.msra.mxu0 0.0
        %3658 = vmatpush.msra.mxu0 0.0
        %3659 = vmatpush.msra.mxu0 0.0
        %3660 = vmatpush.msra.mxu0 0.0
        %3661 = vmatpush.msra.mxu0 0.0
        %3662 = vmatpush.msra.mxu0 0.0
        %v3663 = vand.u32 %v3498, 4294901760
        %3664 = vmatpush.msra.mxu0 %v3663
        %v3665 = vand.u32 %v3494, 4294901760
        %v3666 = vsub.f32 %v3494, %v3665
        %v3667 = vand.u32 %v3666, 4294901760
        %v3668 = vsub.f32 %v3666, %v3667
        %v3669 = vand.u32 %v3668, 4294901760
        %3670 = vmatmul.f32.gmra.mxu0 %v3669
        %v3671 = vpop.f32.mrf.mxu0
        %v3672 = vadd.f32 0.0, %v3671
        %3673 = vdwg.mxu0
        %3674 = vmatpush.msra.mxu0 0.0
        %3675 = vmatpush.msra.mxu0 0.0
        %3676 = vmatpush.msra.mxu0 0.0
        %3677 = vmatpush.msra.mxu0 0.0
        %3678 = vmatpush.msra.mxu0 0.0
        %3679 = vmatpush.msra.mxu0 0.0
        %3680 = vmatpush.msra.mxu0 0.0
        %3681 = vmatpush.msra.mxu0 0.0
        %3682 = vmatpush.msra.mxu0 0.0
        %3683 = vmatpush.msra.mxu0 0.0
        %3684 = vmatpush.msra.mxu0 0.0
        %3685 = vmatpush.msra.mxu0 0.0
        %3686 = vmatpush.msra.mxu0 0.0
        %3687 = vmatpush.msra.mxu0 0.0
        %3688 = vmatpush.msra.mxu0 0.0
        %v3689 = vand.u32 %v3498, 4294901760
        %v3690 = vsub.f32 %v3498, %v3689
        %v3691 = vand.u32 %v3690, 4294901760
        %v3692 = vsub.f32 %v3690, %v3691
        %v3693 = vand.u32 %v3692, 4294901760
        %3694 = vmatpush.msra.mxu0 %v3693
        %v3695 = vand.u32 %v3494, 4294901760
        %3696 = vmatmul.f32.gmra.mxu0 %v3695
        %v3697 = vpop.f32.mrf.mxu0
        %v3698 = vadd.f32 %v3672, %v3697
        %3699 = vdwg.mxu0
        %3700 = vmatpush.msra.mxu0 0.0
        %3701 = vmatpush.msra.mxu0 0.0
        %3702 = vmatpush.msra.mxu0 0.0
        %3703 = vmatpush.msra.mxu0 0.0
        %3704 = vmatpush.msra.mxu0 0.0
        %3705 = vmatpush.msra.mxu0 0.0
        %3706 = vmatpush.msra.mxu0 0.0
        %3707 = vmatpush.msra.mxu0 0.0
        %3708 = vmatpush.msra.mxu0 0.0
        %3709 = vmatpush.msra.mxu0 0.0
        %3710 = vmatpush.msra.mxu0 0.0
        %3711 = vmatpush.msra.mxu0 0.0
        %3712 = vmatpush.msra.mxu0 0.0
        %3713 = vmatpush.msra.mxu0 0.0
        %3714 = vmatpush.msra.mxu0 0.0
        %v3715 = vand.u32 %v3498, 4294901760
        %v3716 = vsub.f32 %v3498, %v3715
        %3717 = vmatpush.msra.mxu0 %v3716
        %v3718 = vand.u32 %v3494, 4294901760
        %v3719 = vsub.f32 %v3494, %v3718
        %3720 = vmatmul.f32.gmra.mxu0 %v3719
        %v3721 = vpop.f32.mrf.mxu0
        %v3722 = vadd.f32 %v3698, %v3721
        %3723 = vdwg.mxu0
        %3724 = vmatpush.msra.mxu0 0.0
        %3725 = vmatpush.msra.mxu0 0.0
        %3726 = vmatpush.msra.mxu0 0.0
        %3727 = vmatpush.msra.mxu0 0.0
        %3728 = vmatpush.msra.mxu0 0.0
        %3729 = vmatpush.msra.mxu0 0.0
        %3730 = vmatpush.msra.mxu0 0.0
        %3731 = vmatpush.msra.mxu0 0.0
        %3732 = vmatpush.msra.mxu0 0.0
        %3733 = vmatpush.msra.mxu0 0.0
        %3734 = vmatpush.msra.mxu0 0.0
        %3735 = vmatpush.msra.mxu0 0.0
        %3736 = vmatpush.msra.mxu0 0.0
        %3737 = vmatpush.msra.mxu0 0.0
        %3738 = vmatpush.msra.mxu0 0.0
        %v3739 = vand.u32 %v3498, 4294901760
        %3740 = vmatpush.msra.mxu0 %v3739
        %v3741 = vand.u32 %v3494, 4294901760
        %v3742 = vsub.f32 %v3494, %v3741
        %v3743 = vand.u32 %v3742, 4294901760
        %3744 = vmatmul.f32.gmra.mxu0 %v3743
        %v3745 = vpop.f32.mrf.mxu0
        %v3746 = vadd.f32 %v3722, %v3745
        %3747 = vdwg.mxu0
        %3748 = vmatpush.msra.mxu0 0.0
        %3749 = vmatpush.msra.mxu0 0.0
        %3750 = vmatpush.msra.mxu0 0.0
        %3751 = vmatpush.msra.mxu0 0.0
        %3752 = vmatpush.msra.mxu0 0.0
        %3753 = vmatpush.msra.mxu0 0.0
        %3754 = vmatpush.msra.mxu0 0.0
        %3755 = vmatpush.msra.mxu0 0.0
        %3756 = vmatpush.msra.mxu0 0.0
        %3757 = vmatpush.msra.mxu0 0.0
        %3758 = vmatpush.msra.mxu0 0.0
        %3759 = vmatpush.msra.mxu0 0.0
        %3760 = vmatpush.msra.mxu0 0.0
        %3761 = vmatpush.msra.mxu0 0.0
        %3762 = vmatpush.msra.mxu0 0.0
        %v3763 = vand.u32 %v3498, 4294901760
        %v3764 = vsub.f32 %v3498, %v3763
        %v3765 = vand.u32 %v3764, 4294901760
        %3766 = vmatpush.msra.mxu0 %v3765
        %v3767 = vand.u32 %v3494, 4294901760
        %3768 = vmatmul.f32.gmra.mxu0 %v3767
        %v3769 = vpop.f32.mrf.mxu0
        %v3770 = vadd.f32 %v3746, %v3769
        %3771 = vdwg.mxu0
        %3772 = vmatpush.msra.mxu0 0.0
        %3773 = vmatpush.msra.mxu0 0.0
        %3774 = vmatpush.msra.mxu0 0.0
        %3775 = vmatpush.msra.mxu0 0.0
        %3776 = vmatpush.msra.mxu0 0.0
        %3777 = vmatpush.msra.mxu0 0.0
        %3778 = vmatpush.msra.mxu0 0.0
        %3779 = vmatpush.msra.mxu0 0.0
        %3780 = vmatpush.msra.mxu0 0.0
        %3781 = vmatpush.msra.mxu0 0.0
        %3782 = vmatpush.msra.mxu0 0.0
        %3783 = vmatpush.msra.mxu0 0.0
        %3784 = vmatpush.msra.mxu0 0.0
        %3785 = vmatpush.msra.mxu0 0.0
        %3786 = vmatpush.msra.mxu0 0.0
        %v3787 = vand.u32 %v3498, 4294901760
        %3788 = vmatpush.msra.mxu0 %v3787
        %v3789 = vand.u32 %v3494, 4294901760
        %3790 = vmatmul.f32.gmra.mxu0 %v3789
        %v3791 = vpop.f32.mrf.mxu0
        %v3792 = vadd.f32 %v3770, %v3791
        %3793 = vdwg.mxu0
        %3794 = vmatpush.msra.mxu0 0.0
        %3795 = vmatpush.msra.mxu0 0.0
        %3796 = vmatpush.msra.mxu0 0.0
        %3797 = vmatpush.msra.mxu0 0.0
        %3798 = vmatpush.msra.mxu0 0.0
        %3799 = vmatpush.msra.mxu0 0.0
        %3800 = vmatpush.msra.mxu0 0.0
        %3801 = vmatpush.msra.mxu0 0.0
        %3802 = vmatpush.msra.mxu0 0.0
        %3803 = vmatpush.msra.mxu0 0.0
        %3804 = vmatpush.msra.mxu0 0.0
        %3805 = vmatpush.msra.mxu0 0.0
        %3806 = vmatpush.msra.mxu0 0.0
        %3807 = vmatpush.msra.mxu0 0.0
        %3808 = vmatpush.msra.mxu0 0.0
        %v3809 = vand.u32 %v3500, 4294901760
        %3810 = vmatpush.msra.mxu0 %v3809
        %v3811 = vand.u32 %v3494, 4294901760
        %v3812 = vsub.f32 %v3494, %v3811
        %v3813 = vand.u32 %v3812, 4294901760
        %v3814 = vsub.f32 %v3812, %v3813
        %v3815 = vand.u32 %v3814, 4294901760
        %3816 = vmatmul.f32.gmra.mxu0 %v3815
        %v3817 = vpop.f32.mrf.mxu0
        %v3818 = vadd.f32 0.0, %v3817
        %3819 = vdwg.mxu0
        %3820 = vmatpush.msra.mxu0 0.0
        %3821 = vmatpush.msra.mxu0 0.0
        %3822 = vmatpush.msra.mxu0 0.0
        %3823 = vmatpush.msra.mxu0 0.0
        %3824 = vmatpush.msra.mxu0 0.0
        %3825 = vmatpush.msra.mxu0 0.0
        %3826 = vmatpush.msra.mxu0 0.0
        %3827 = vmatpush.msra.mxu0 0.0
        %3828 = vmatpush.msra.mxu0 0.0
        %3829 = vmatpush.msra.mxu0 0.0
        %3830 = vmatpush.msra.mxu0 0.0
        %3831 = vmatpush.msra.mxu0 0.0
        %3832 = vmatpush.msra.mxu0 0.0
        %3833 = vmatpush.msra.mxu0 0.0
        %3834 = vmatpush.msra.mxu0 0.0
        %v3835 = vand.u32 %v3500, 4294901760
        %v3836 = vsub.f32 %v3500, %v3835
        %v3837 = vand.u32 %v3836, 4294901760
        %v3838 = vsub.f32 %v3836, %v3837
        %v3839 = vand.u32 %v3838, 4294901760
        %3840 = vmatpush.msra.mxu0 %v3839
        %v3841 = vand.u32 %v3494, 4294901760
        %3842 = vmatmul.f32.gmra.mxu0 %v3841
        %v3843 = vpop.f32.mrf.mxu0
        %v3844 = vadd.f32 %v3818, %v3843
        %3845 = vdwg.mxu0
        %3846 = vmatpush.msra.mxu0 0.0
        %3847 = vmatpush.msra.mxu0 0.0
        %3848 = vmatpush.msra.mxu0 0.0
        %3849 = vmatpush.msra.mxu0 0.0
        %3850 = vmatpush.msra.mxu0 0.0
        %3851 = vmatpush.msra.mxu0 0.0
        %3852 = vmatpush.msra.mxu0 0.0
        %3853 = vmatpush.msra.mxu0 0.0
        %3854 = vmatpush.msra.mxu0 0.0
        %3855 = vmatpush.msra.mxu0 0.0
        %3856 = vmatpush.msra.mxu0 0.0
        %3857 = vmatpush.msra.mxu0 0.0
        %3858 = vmatpush.msra.mxu0 0.0
        %3859 = vmatpush.msra.mxu0 0.0
        %3860 = vmatpush.msra.mxu0 0.0
        %v3861 = vand.u32 %v3500, 4294901760
        %v3862 = vsub.f32 %v3500, %v3861
        %3863 = vmatpush.msra.mxu0 %v3862
        %v3864 = vand.u32 %v3494, 4294901760
        %v3865 = vsub.f32 %v3494, %v3864
        %3866 = vmatmul.f32.gmra.mxu0 %v3865
        %v3867 = vpop.f32.mrf.mxu0
        %v3868 = vadd.f32 %v3844, %v3867
        %3869 = vdwg.mxu0
        %3870 = vmatpush.msra.mxu0 0.0
        %3871 = vmatpush.msra.mxu0 0.0
        %3872 = vmatpush.msra.mxu0 0.0
        %3873 = vmatpush.msra.mxu0 0.0
        %3874 = vmatpush.msra.mxu0 0.0
        %3875 = vmatpush.msra.mxu0 0.0
        %3876 = vmatpush.msra.mxu0 0.0
        %3877 = vmatpush.msra.mxu0 0.0
        %3878 = vmatpush.msra.mxu0 0.0
        %3879 = vmatpush.msra.mxu0 0.0
        %3880 = vmatpush.msra.mxu0 0.0
        %3881 = vmatpush.msra.mxu0 0.0
        %3882 = vmatpush.msra.mxu0 0.0
        %3883 = vmatpush.msra.mxu0 0.0
        %3884 = vmatpush.msra.mxu0 0.0
        %v3885 = vand.u32 %v3500, 4294901760
        %3886 = vmatpush.msra.mxu0 %v3885
        %v3887 = vand.u32 %v3494, 4294901760
        %v3888 = vsub.f32 %v3494, %v3887
        %v3889 = vand.u32 %v3888, 4294901760
        %3890 = vmatmul.f32.gmra.mxu0 %v3889
        %v3891 = vpop.f32.mrf.mxu0
        %v3892 = vadd.f32 %v3868, %v3891
        %3893 = vdwg.mxu0
        %3894 = vmatpush.msra.mxu0 0.0
        %3895 = vmatpush.msra.mxu0 0.0
        %3896 = vmatpush.msra.mxu0 0.0
        %3897 = vmatpush.msra.mxu0 0.0
        %3898 = vmatpush.msra.mxu0 0.0
        %3899 = vmatpush.msra.mxu0 0.0
        %3900 = vmatpush.msra.mxu0 0.0
        %3901 = vmatpush.msra.mxu0 0.0
        %3902 = vmatpush.msra.mxu0 0.0
        %3903 = vmatpush.msra.mxu0 0.0
        %3904 = vmatpush.msra.mxu0 0.0
        %3905 = vmatpush.msra.mxu0 0.0
        %3906 = vmatpush.msra.mxu0 0.0
        %3907 = vmatpush.msra.mxu0 0.0
        %3908 = vmatpush.msra.mxu0 0.0
        %v3909 = vand.u32 %v3500, 4294901760
        %v3910 = vsub.f32 %v3500, %v3909
        %v3911 = vand.u32 %v3910, 4294901760
        %3912 = vmatpush.msra.mxu0 %v3911
        %v3913 = vand.u32 %v3494, 4294901760
        %3914 = vmatmul.f32.gmra.mxu0 %v3913
        %v3915 = vpop.f32.mrf.mxu0
        %v3916 = vadd.f32 %v3892, %v3915
        %3917 = vdwg.mxu0
        %3918 = vmatpush.msra.mxu0 0.0
        %3919 = vmatpush.msra.mxu0 0.0
        %3920 = vmatpush.msra.mxu0 0.0
        %3921 = vmatpush.msra.mxu0 0.0
        %3922 = vmatpush.msra.mxu0 0.0
        %3923 = vmatpush.msra.mxu0 0.0
        %3924 = vmatpush.msra.mxu0 0.0
        %3925 = vmatpush.msra.mxu0 0.0
        %3926 = vmatpush.msra.mxu0 0.0
        %3927 = vmatpush.msra.mxu0 0.0
        %3928 = vmatpush.msra.mxu0 0.0
        %3929 = vmatpush.msra.mxu0 0.0
        %3930 = vmatpush.msra.mxu0 0.0
        %3931 = vmatpush.msra.mxu0 0.0
        %3932 = vmatpush.msra.mxu0 0.0
        %v3933 = vand.u32 %v3500, 4294901760
        %3934 = vmatpush.msra.mxu0 %v3933
        %v3935 = vand.u32 %v3494, 4294901760
        %3936 = vmatmul.f32.gmra.mxu0 %v3935
        %v3937 = vpop.f32.mrf.mxu0
        %v3938 = vadd.f32 %v3916, %v3937
        %3939 = vdwg.mxu0
        %v3940 = vadd.f32 %v3473, %v3646
        %v3941 = vadd.f32 %v3474, %v3792
        %v3942 = vadd.f32 %v3475, %v3938
        %s3943 = scalar_lea.vmem %s212, 64
        %v3944 = vld [vmem:[%s3943] sm:$0xff]
        %3945 = vst [vmem:[#allocation1] ss:$2 sm:$0xff] %v217
        %s3946 = scalar_lea.vmem [#allocation1], 16
        %3947 = vst [vmem:[%s3946] ss:$2 sm:$0xff] %v218
        %v3948 = vld.sshfl [vmem:[#allocation1] sm:$0xff pattern:$0x75316420]
        %v3949 = vld.sshfl [vmem:[#allocation1 + $0x8] sm:$0xff pattern:$0x75316420]
        %v3950 = vld.sshfl [vmem:[#allocation1 + $0x10] sm:$0xff pattern:$0x75316420]
        %3951 = vrot.lane.b32.xlu0 %v3948, 90
        %v3952 = vpop.permute.xlu0 %3951
        %3953 = vrot.lane.b32.xlu0 %v3949, 90
        %v3954 = vpop.permute.xlu0 %3953
        %3955 = vrot.lane.b32.xlu0 %v3950, 90
        %v3956 = vpop.permute.xlu0 %3955
        %vm3957 = vcmask 736256
        %v3958 = vsel %vm3957, %v3952, %v3954
        %v3959 = vsel %vm3957, %v3954, %v3956
        %v3961 = vsel %vm239, %v3944, 0
        %v3963 = vsel %vm243, %v3958, 0
        %v3965 = vsel %vm243, %v3959, 0
        %v3967 = vsel %vm243, %v3956, 0
        %3969 = vmatpush.msra.mxu0 0.0
        %3970 = vmatpush.msra.mxu0 0.0
        %3971 = vmatpush.msra.mxu0 0.0
        %3972 = vmatpush.msra.mxu0 0.0
        %3973 = vmatpush.msra.mxu0 0.0
        %3974 = vmatpush.msra.mxu0 0.0
        %3975 = vmatpush.msra.mxu0 0.0
        %3976 = vmatpush.msra.mxu0 0.0
        %3977 = vmatpush.msra.mxu0 0.0
        %3978 = vmatpush.msra.mxu0 0.0
        %3979 = vmatpush.msra.mxu0 0.0
        %3980 = vmatpush.msra.mxu0 0.0
        %3981 = vmatpush.msra.mxu0 0.0
        %3982 = vmatpush.msra.mxu0 0.0
        %3983 = vmatpush.msra.mxu0 0.0
        %v3984 = vand.u32 %v3963, 4294901760
        %3985 = vmatpush.msra.mxu0 %v3984
        %v3986 = vand.u32 %v3961, 4294901760
        %v3987 = vsub.f32 %v3961, %v3986
        %v3988 = vand.u32 %v3987, 4294901760
        %v3989 = vsub.f32 %v3987, %v3988
        %v3990 = vand.u32 %v3989, 4294901760
        %3991 = vmatmul.f32.gmra.mxu0 %v3990
        %v3992 = vpop.f32.mrf.mxu0
        %v3993 = vadd.f32 0.0, %v3992
        %3994 = vdwg.mxu0
        %3995 = vmatpush.msra.mxu0 0.0
        %3996 = vmatpush.msra.mxu0 0.0
        %3997 = vmatpush.msra.mxu0 0.0
        %3998 = vmatpush.msra.mxu0 0.0
        %3999 = vmatpush.msra.mxu0 0.0
        %4000 = vmatpush.msra.mxu0 0.0
        %4001 = vmatpush.msra.mxu0 0.0
        %4002 = vmatpush.msra.mxu0 0.0
        %4003 = vmatpush.msra.mxu0 0.0
        %4004 = vmatpush.msra.mxu0 0.0
        %4005 = vmatpush.msra.mxu0 0.0
        %4006 = vmatpush.msra.mxu0 0.0
        %4007 = vmatpush.msra.mxu0 0.0
        %4008 = vmatpush.msra.mxu0 0.0
        %4009 = vmatpush.msra.mxu0 0.0
        %v4010 = vand.u32 %v3963, 4294901760
        %v4011 = vsub.f32 %v3963, %v4010
        %v4012 = vand.u32 %v4011, 4294901760
        %v4013 = vsub.f32 %v4011, %v4012
        %v4014 = vand.u32 %v4013, 4294901760
        %4015 = vmatpush.msra.mxu0 %v4014
        %v4016 = vand.u32 %v3961, 4294901760
        %4017 = vmatmul.f32.gmra.mxu0 %v4016
        %v4018 = vpop.f32.mrf.mxu0
        %v4019 = vadd.f32 %v3993, %v4018
        %4020 = vdwg.mxu0
        %4021 = vmatpush.msra.mxu0 0.0
        %4022 = vmatpush.msra.mxu0 0.0
        %4023 = vmatpush.msra.mxu0 0.0
        %4024 = vmatpush.msra.mxu0 0.0
        %4025 = vmatpush.msra.mxu0 0.0
        %4026 = vmatpush.msra.mxu0 0.0
        %4027 = vmatpush.msra.mxu0 0.0
        %4028 = vmatpush.msra.mxu0 0.0
        %4029 = vmatpush.msra.mxu0 0.0
        %4030 = vmatpush.msra.mxu0 0.0
        %4031 = vmatpush.msra.mxu0 0.0
        %4032 = vmatpush.msra.mxu0 0.0
        %4033 = vmatpush.msra.mxu0 0.0
        %4034 = vmatpush.msra.mxu0 0.0
        %4035 = vmatpush.msra.mxu0 0.0
        %v4036 = vand.u32 %v3963, 4294901760
        %v4037 = vsub.f32 %v3963, %v4036
        %4038 = vmatpush.msra.mxu0 %v4037
        %v4039 = vand.u32 %v3961, 4294901760
        %v4040 = vsub.f32 %v3961, %v4039
        %4041 = vmatmul.f32.gmra.mxu0 %v4040
        %v4042 = vpop.f32.mrf.mxu0
        %v4043 = vadd.f32 %v4019, %v4042
        %4044 = vdwg.mxu0
        %4045 = vmatpush.msra.mxu0 0.0
        %4046 = vmatpush.msra.mxu0 0.0
        %4047 = vmatpush.msra.mxu0 0.0
        %4048 = vmatpush.msra.mxu0 0.0
        %4049 = vmatpush.msra.mxu0 0.0
        %4050 = vmatpush.msra.mxu0 0.0
        %4051 = vmatpush.msra.mxu0 0.0
        %4052 = vmatpush.msra.mxu0 0.0
        %4053 = vmatpush.msra.mxu0 0.0
        %4054 = vmatpush.msra.mxu0 0.0
        %4055 = vmatpush.msra.mxu0 0.0
        %4056 = vmatpush.msra.mxu0 0.0
        %4057 = vmatpush.msra.mxu0 0.0
        %4058 = vmatpush.msra.mxu0 0.0
        %4059 = vmatpush.msra.mxu0 0.0
        %v4060 = vand.u32 %v3963, 4294901760
        %4061 = vmatpush.msra.mxu0 %v4060
        %v4062 = vand.u32 %v3961, 4294901760
        %v4063 = vsub.f32 %v3961, %v4062
        %v4064 = vand.u32 %v4063, 4294901760
        %4065 = vmatmul.f32.gmra.mxu0 %v4064
        %v4066 = vpop.f32.mrf.mxu0
        %v4067 = vadd.f32 %v4043, %v4066
        %4068 = vdwg.mxu0
        %4069 = vmatpush.msra.mxu0 0.0
        %4070 = vmatpush.msra.mxu0 0.0
        %4071 = vmatpush.msra.mxu0 0.0
        %4072 = vmatpush.msra.mxu0 0.0
        %4073 = vmatpush.msra.mxu0 0.0
        %4074 = vmatpush.msra.mxu0 0.0
        %4075 = vmatpush.msra.mxu0 0.0
        %4076 = vmatpush.msra.mxu0 0.0
        %4077 = vmatpush.msra.mxu0 0.0
        %4078 = vmatpush.msra.mxu0 0.0
        %4079 = vmatpush.msra.mxu0 0.0
        %4080 = vmatpush.msra.mxu0 0.0
        %4081 = vmatpush.msra.mxu0 0.0
        %4082 = vmatpush.msra.mxu0 0.0
        %4083 = vmatpush.msra.mxu0 0.0
        %v4084 = vand.u32 %v3963, 4294901760
        %v4085 = vsub.f32 %v3963, %v4084
        %v4086 = vand.u32 %v4085, 4294901760
        %4087 = vmatpush.msra.mxu0 %v4086
        %v4088 = vand.u32 %v3961, 4294901760
        %4089 = vmatmul.f32.gmra.mxu0 %v4088
        %v4090 = vpop.f32.mrf.mxu0
        %v4091 = vadd.f32 %v4067, %v4090
        %4092 = vdwg.mxu0
        %4093 = vmatpush.msra.mxu0 0.0
        %4094 = vmatpush.msra.mxu0 0.0
        %4095 = vmatpush.msra.mxu0 0.0
        %4096 = vmatpush.msra.mxu0 0.0
        %4097 = vmatpush.msra.mxu0 0.0
        %4098 = vmatpush.msra.mxu0 0.0
        %4099 = vmatpush.msra.mxu0 0.0
        %4100 = vmatpush.msra.mxu0 0.0
        %4101 = vmatpush.msra.mxu0 0.0
        %4102 = vmatpush.msra.mxu0 0.0
        %4103 = vmatpush.msra.mxu0 0.0
        %4104 = vmatpush.msra.mxu0 0.0
        %4105 = vmatpush.msra.mxu0 0.0
        %4106 = vmatpush.msra.mxu0 0.0
        %4107 = vmatpush.msra.mxu0 0.0
        %v4108 = vand.u32 %v3963, 4294901760
        %4109 = vmatpush.msra.mxu0 %v4108
        %v4110 = vand.u32 %v3961, 4294901760
        %4111 = vmatmul.f32.gmra.mxu0 %v4110
        %v4112 = vpop.f32.mrf.mxu0
        %v4113 = vadd.f32 %v4091, %v4112
        %4114 = vdwg.mxu0
        %4115 = vmatpush.msra.mxu0 0.0
        %4116 = vmatpush.msra.mxu0 0.0
        %4117 = vmatpush.msra.mxu0 0.0
        %4118 = vmatpush.msra.mxu0 0.0
        %4119 = vmatpush.msra.mxu0 0.0
        %4120 = vmatpush.msra.mxu0 0.0
        %4121 = vmatpush.msra.mxu0 0.0
        %4122 = vmatpush.msra.mxu0 0.0
        %4123 = vmatpush.msra.mxu0 0.0
        %4124 = vmatpush.msra.mxu0 0.0
        %4125 = vmatpush.msra.mxu0 0.0
        %4126 = vmatpush.msra.mxu0 0.0
        %4127 = vmatpush.msra.mxu0 0.0
        %4128 = vmatpush.msra.mxu0 0.0
        %4129 = vmatpush.msra.mxu0 0.0
        %v4130 = vand.u32 %v3965, 4294901760
        %4131 = vmatpush.msra.mxu0 %v4130
        %v4132 = vand.u32 %v3961, 4294901760
        %v4133 = vsub.f32 %v3961, %v4132
        %v4134 = vand.u32 %v4133, 4294901760
        %v4135 = vsub.f32 %v4133, %v4134
        %v4136 = vand.u32 %v4135, 4294901760
        %4137 = vmatmul.f32.gmra.mxu0 %v4136
        %v4138 = vpop.f32.mrf.mxu0
        %v4139 = vadd.f32 0.0, %v4138
        %4140 = vdwg.mxu0
        %4141 = vmatpush.msra.mxu0 0.0
        %4142 = vmatpush.msra.mxu0 0.0
        %4143 = vmatpush.msra.mxu0 0.0
        %4144 = vmatpush.msra.mxu0 0.0
        %4145 = vmatpush.msra.mxu0 0.0
        %4146 = vmatpush.msra.mxu0 0.0
        %4147 = vmatpush.msra.mxu0 0.0
        %4148 = vmatpush.msra.mxu0 0.0
        %4149 = vmatpush.msra.mxu0 0.0
        %4150 = vmatpush.msra.mxu0 0.0
        %4151 = vmatpush.msra.mxu0 0.0
        %4152 = vmatpush.msra.mxu0 0.0
        %4153 = vmatpush.msra.mxu0 0.0
        %4154 = vmatpush.msra.mxu0 0.0
        %4155 = vmatpush.msra.mxu0 0.0
        %v4156 = vand.u32 %v3965, 4294901760
        %v4157 = vsub.f32 %v3965, %v4156
        %v4158 = vand.u32 %v4157, 4294901760
        %v4159 = vsub.f32 %v4157, %v4158
        %v4160 = vand.u32 %v4159, 4294901760
        %4161 = vmatpush.msra.mxu0 %v4160
        %v4162 = vand.u32 %v3961, 4294901760
        %4163 = vmatmul.f32.gmra.mxu0 %v4162
        %v4164 = vpop.f32.mrf.mxu0
        %v4165 = vadd.f32 %v4139, %v4164
        %4166 = vdwg.mxu0
        %4167 = vmatpush.msra.mxu0 0.0
        %4168 = vmatpush.msra.mxu0 0.0
        %4169 = vmatpush.msra.mxu0 0.0
        %4170 = vmatpush.msra.mxu0 0.0
        %4171 = vmatpush.msra.mxu0 0.0
        %4172 = vmatpush.msra.mxu0 0.0
        %4173 = vmatpush.msra.mxu0 0.0
        %4174 = vmatpush.msra.mxu0 0.0
        %4175 = vmatpush.msra.mxu0 0.0
        %4176 = vmatpush.msra.mxu0 0.0
        %4177 = vmatpush.msra.mxu0 0.0
        %4178 = vmatpush.msra.mxu0 0.0
        %4179 = vmatpush.msra.mxu0 0.0
        %4180 = vmatpush.msra.mxu0 0.0
        %4181 = vmatpush.msra.mxu0 0.0
        %v4182 = vand.u32 %v3965, 4294901760
        %v4183 = vsub.f32 %v3965, %v4182
        %4184 = vmatpush.msra.mxu0 %v4183
        %v4185 = vand.u32 %v3961, 4294901760
        %v4186 = vsub.f32 %v3961, %v4185
        %4187 = vmatmul.f32.gmra.mxu0 %v4186
        %v4188 = vpop.f32.mrf.mxu0
        %v4189 = vadd.f32 %v4165, %v4188
        %4190 = vdwg.mxu0
        %4191 = vmatpush.msra.mxu0 0.0
        %4192 = vmatpush.msra.mxu0 0.0
        %4193 = vmatpush.msra.mxu0 0.0
        %4194 = vmatpush.msra.mxu0 0.0
        %4195 = vmatpush.msra.mxu0 0.0
        %4196 = vmatpush.msra.mxu0 0.0
        %4197 = vmatpush.msra.mxu0 0.0
        %4198 = vmatpush.msra.mxu0 0.0
        %4199 = vmatpush.msra.mxu0 0.0
        %4200 = vmatpush.msra.mxu0 0.0
        %4201 = vmatpush.msra.mxu0 0.0
        %4202 = vmatpush.msra.mxu0 0.0
        %4203 = vmatpush.msra.mxu0 0.0
        %4204 = vmatpush.msra.mxu0 0.0
        %4205 = vmatpush.msra.mxu0 0.0
        %v4206 = vand.u32 %v3965, 4294901760
        %4207 = vmatpush.msra.mxu0 %v4206
        %v4208 = vand.u32 %v3961, 4294901760
        %v4209 = vsub.f32 %v3961, %v4208
        %v4210 = vand.u32 %v4209, 4294901760
        %4211 = vmatmul.f32.gmra.mxu0 %v4210
        %v4212 = vpop.f32.mrf.mxu0
        %v4213 = vadd.f32 %v4189, %v4212
        %4214 = vdwg.mxu0
        %4215 = vmatpush.msra.mxu0 0.0
        %4216 = vmatpush.msra.mxu0 0.0
        %4217 = vmatpush.msra.mxu0 0.0
        %4218 = vmatpush.msra.mxu0 0.0
        %4219 = vmatpush.msra.mxu0 0.0
        %4220 = vmatpush.msra.mxu0 0.0
        %4221 = vmatpush.msra.mxu0 0.0
        %4222 = vmatpush.msra.mxu0 0.0
        %4223 = vmatpush.msra.mxu0 0.0
        %4224 = vmatpush.msra.mxu0 0.0
        %4225 = vmatpush.msra.mxu0 0.0
        %4226 = vmatpush.msra.mxu0 0.0
        %4227 = vmatpush.msra.mxu0 0.0
        %4228 = vmatpush.msra.mxu0 0.0
        %4229 = vmatpush.msra.mxu0 0.0
        %v4230 = vand.u32 %v3965, 4294901760
        %v4231 = vsub.f32 %v3965, %v4230
        %v4232 = vand.u32 %v4231, 4294901760
        %4233 = vmatpush.msra.mxu0 %v4232
        %v4234 = vand.u32 %v3961, 4294901760
        %4235 = vmatmul.f32.gmra.mxu0 %v4234
        %v4236 = vpop.f32.mrf.mxu0
        %v4237 = vadd.f32 %v4213, %v4236
        %4238 = vdwg.mxu0
        %4239 = vmatpush.msra.mxu0 0.0
        %4240 = vmatpush.msra.mxu0 0.0
        %4241 = vmatpush.msra.mxu0 0.0
        %4242 = vmatpush.msra.mxu0 0.0
        %4243 = vmatpush.msra.mxu0 0.0
        %4244 = vmatpush.msra.mxu0 0.0
        %4245 = vmatpush.msra.mxu0 0.0
        %4246 = vmatpush.msra.mxu0 0.0
        %4247 = vmatpush.msra.mxu0 0.0
        %4248 = vmatpush.msra.mxu0 0.0
        %4249 = vmatpush.msra.mxu0 0.0
        %4250 = vmatpush.msra.mxu0 0.0
        %4251 = vmatpush.msra.mxu0 0.0
        %4252 = vmatpush.msra.mxu0 0.0
        %4253 = vmatpush.msra.mxu0 0.0
        %v4254 = vand.u32 %v3965, 4294901760
        %4255 = vmatpush.msra.mxu0 %v4254
        %v4256 = vand.u32 %v3961, 4294901760
        %4257 = vmatmul.f32.gmra.mxu0 %v4256
        %v4258 = vpop.f32.mrf.mxu0
        %v4259 = vadd.f32 %v4237, %v4258
        %4260 = vdwg.mxu0
        %4261 = vmatpush.msra.mxu0 0.0
        %4262 = vmatpush.msra.mxu0 0.0
        %4263 = vmatpush.msra.mxu0 0.0
        %4264 = vmatpush.msra.mxu0 0.0
        %4265 = vmatpush.msra.mxu0 0.0
        %4266 = vmatpush.msra.mxu0 0.0
        %4267 = vmatpush.msra.mxu0 0.0
        %4268 = vmatpush.msra.mxu0 0.0
        %4269 = vmatpush.msra.mxu0 0.0
        %4270 = vmatpush.msra.mxu0 0.0
        %4271 = vmatpush.msra.mxu0 0.0
        %4272 = vmatpush.msra.mxu0 0.0
        %4273 = vmatpush.msra.mxu0 0.0
        %4274 = vmatpush.msra.mxu0 0.0
        %4275 = vmatpush.msra.mxu0 0.0
        %v4276 = vand.u32 %v3967, 4294901760
        %4277 = vmatpush.msra.mxu0 %v4276
        %v4278 = vand.u32 %v3961, 4294901760
        %v4279 = vsub.f32 %v3961, %v4278
        %v4280 = vand.u32 %v4279, 4294901760
        %v4281 = vsub.f32 %v4279, %v4280
        %v4282 = vand.u32 %v4281, 4294901760
        %4283 = vmatmul.f32.gmra.mxu0 %v4282
        %v4284 = vpop.f32.mrf.mxu0
        %v4285 = vadd.f32 0.0, %v4284
        %4286 = vdwg.mxu0
        %4287 = vmatpush.msra.mxu0 0.0
        %4288 = vmatpush.msra.mxu0 0.0
        %4289 = vmatpush.msra.mxu0 0.0
        %4290 = vmatpush.msra.mxu0 0.0
        %4291 = vmatpush.msra.mxu0 0.0
        %4292 = vmatpush.msra.mxu0 0.0
        %4293 = vmatpush.msra.mxu0 0.0
        %4294 = vmatpush.msra.mxu0 0.0
        %4295 = vmatpush.msra.mxu0 0.0
        %4296 = vmatpush.msra.mxu0 0.0
        %4297 = vmatpush.msra.mxu0 0.0
        %4298 = vmatpush.msra.mxu0 0.0
        %4299 = vmatpush.msra.mxu0 0.0
        %4300 = vmatpush.msra.mxu0 0.0
        %4301 = vmatpush.msra.mxu0 0.0
        %v4302 = vand.u32 %v3967, 4294901760
        %v4303 = vsub.f32 %v3967, %v4302
        %v4304 = vand.u32 %v4303, 4294901760
        %v4305 = vsub.f32 %v4303, %v4304
        %v4306 = vand.u32 %v4305, 4294901760
        %4307 = vmatpush.msra.mxu0 %v4306
        %v4308 = vand.u32 %v3961, 4294901760
        %4309 = vmatmul.f32.gmra.mxu0 %v4308
        %v4310 = vpop.f32.mrf.mxu0
        %v4311 = vadd.f32 %v4285, %v4310
        %4312 = vdwg.mxu0
        %4313 = vmatpush.msra.mxu0 0.0
        %4314 = vmatpush.msra.mxu0 0.0
        %4315 = vmatpush.msra.mxu0 0.0
        %4316 = vmatpush.msra.mxu0 0.0
        %4317 = vmatpush.msra.mxu0 0.0
        %4318 = vmatpush.msra.mxu0 0.0
        %4319 = vmatpush.msra.mxu0 0.0
        %4320 = vmatpush.msra.mxu0 0.0
        %4321 = vmatpush.msra.mxu0 0.0
        %4322 = vmatpush.msra.mxu0 0.0
        %4323 = vmatpush.msra.mxu0 0.0
        %4324 = vmatpush.msra.mxu0 0.0
        %4325 = vmatpush.msra.mxu0 0.0
        %4326 = vmatpush.msra.mxu0 0.0
        %4327 = vmatpush.msra.mxu0 0.0
        %v4328 = vand.u32 %v3967, 4294901760
        %v4329 = vsub.f32 %v3967, %v4328
        %4330 = vmatpush.msra.mxu0 %v4329
        %v4331 = vand.u32 %v3961, 4294901760
        %v4332 = vsub.f32 %v3961, %v4331
        %4333 = vmatmul.f32.gmra.mxu0 %v4332
        %v4334 = vpop.f32.mrf.mxu0
        %v4335 = vadd.f32 %v4311, %v4334
        %4336 = vdwg.mxu0
        %4337 = vmatpush.msra.mxu0 0.0
        %4338 = vmatpush.msra.mxu0 0.0
        %4339 = vmatpush.msra.mxu0 0.0
        %4340 = vmatpush.msra.mxu0 0.0
        %4341 = vmatpush.msra.mxu0 0.0
        %4342 = vmatpush.msra.mxu0 0.0
        %4343 = vmatpush.msra.mxu0 0.0
        %4344 = vmatpush.msra.mxu0 0.0
        %4345 = vmatpush.msra.mxu0 0.0
        %4346 = vmatpush.msra.mxu0 0.0
        %4347 = vmatpush.msra.mxu0 0.0
        %4348 = vmatpush.msra.mxu0 0.0
        %4349 = vmatpush.msra.mxu0 0.0
        %4350 = vmatpush.msra.mxu0 0.0
        %4351 = vmatpush.msra.mxu0 0.0
        %v4352 = vand.u32 %v3967, 4294901760
        %4353 = vmatpush.msra.mxu0 %v4352
        %v4354 = vand.u32 %v3961, 4294901760
        %v4355 = vsub.f32 %v3961, %v4354
        %v4356 = vand.u32 %v4355, 4294901760
        %4357 = vmatmul.f32.gmra.mxu0 %v4356
        %v4358 = vpop.f32.mrf.mxu0
        %v4359 = vadd.f32 %v4335, %v4358
        %4360 = vdwg.mxu0
        %4361 = vmatpush.msra.mxu0 0.0
        %4362 = vmatpush.msra.mxu0 0.0
        %4363 = vmatpush.msra.mxu0 0.0
        %4364 = vmatpush.msra.mxu0 0.0
        %4365 = vmatpush.msra.mxu0 0.0
        %4366 = vmatpush.msra.mxu0 0.0
        %4367 = vmatpush.msra.mxu0 0.0
        %4368 = vmatpush.msra.mxu0 0.0
        %4369 = vmatpush.msra.mxu0 0.0
        %4370 = vmatpush.msra.mxu0 0.0
        %4371 = vmatpush.msra.mxu0 0.0
        %4372 = vmatpush.msra.mxu0 0.0
        %4373 = vmatpush.msra.mxu0 0.0
        %4374 = vmatpush.msra.mxu0 0.0
        %4375 = vmatpush.msra.mxu0 0.0
        %v4376 = vand.u32 %v3967, 4294901760
        %v4377 = vsub.f32 %v3967, %v4376
        %v4378 = vand.u32 %v4377, 4294901760
        %4379 = vmatpush.msra.mxu0 %v4378
        %v4380 = vand.u32 %v3961, 4294901760
        %4381 = vmatmul.f32.gmra.mxu0 %v4380
        %v4382 = vpop.f32.mrf.mxu0
        %v4383 = vadd.f32 %v4359, %v4382
        %4384 = vdwg.mxu0
        %4385 = vmatpush.msra.mxu0 0.0
        %4386 = vmatpush.msra.mxu0 0.0
        %4387 = vmatpush.msra.mxu0 0.0
        %4388 = vmatpush.msra.mxu0 0.0
        %4389 = vmatpush.msra.mxu0 0.0
        %4390 = vmatpush.msra.mxu0 0.0
        %4391 = vmatpush.msra.mxu0 0.0
        %4392 = vmatpush.msra.mxu0 0.0
        %4393 = vmatpush.msra.mxu0 0.0
        %4394 = vmatpush.msra.mxu0 0.0
        %4395 = vmatpush.msra.mxu0 0.0
        %4396 = vmatpush.msra.mxu0 0.0
        %4397 = vmatpush.msra.mxu0 0.0
        %4398 = vmatpush.msra.mxu0 0.0
        %4399 = vmatpush.msra.mxu0 0.0
        %v4400 = vand.u32 %v3967, 4294901760
        %4401 = vmatpush.msra.mxu0 %v4400
        %v4402 = vand.u32 %v3961, 4294901760
        %4403 = vmatmul.f32.gmra.mxu0 %v4402
        %v4404 = vpop.f32.mrf.mxu0
        %v4405 = vadd.f32 %v4383, %v4404
        %4406 = vdwg.mxu0
        %v4407 = vadd.f32 %v3940, %v4113
        %v4408 = vadd.f32 %v3941, %v4259
        %v4409 = vadd.f32 %v3942, %v4405
        %v4410 = vld [vmem:[%s216] sm:$0xff]
        %4412 = vset.pattern.permute.xlu0 0
        %4413 = vperm.xlu0 %4412, %v4410
        %v4414 = vpop.permute.xlu0 %4413
        %v4416 = vadd.f32 %v4407, %v4414
        %v4417 = vadd.f32 %v4408, %v4414
        %v4418 = vadd.f32 %v4409, %v4414
        %4419 = vst [vmem:[%s203] sm:$0xff] %v4416
        %4420 = vst [vmem:[%s203 + $0x8] sm:$0xff] %v4417
        %vm4421 = vcmask 261120
        %4422 = vst.msk [vmem:[%s203 + $0x10] sm:$0xff] %vm4421, %v4418
        %s4423 = sand.u32 %s117, 1
        %s4424 = scalar_lea.sflag [#allocation3], %s4423
        %s4425 = sand.u32 %s117, 1
        %s4426 = smul.addr %s4425, 24
        %s4427 = scalar_lea.vmem [#allocation2], %s4426
        // Predicated region
        $region33: #{tpu_custom_call.1} parent=31 // pred_check
          %p4428 = pneg %p127
        $region34: #{tpu_custom_call.1} parent=31 // pred_check_branch
          %4430 = sbr.rel (%p4428) target = $region36
        $region35: #{tpu_custom_call.1} parent=31 // pred_region
          %4432 = vsyncadd %s4424, 0
          %s4433 = smul.addr %s22, 3
          %s4434 = smul.addr %s21, 3
          %s4435 = sadd.s32 %s4433, %s4434
          %s4436 = smul.addr %s4435, 8
          %s4437 = scalar_lea.hbm %s3, %s4436
          %s4439 = sshll.u32 %s4427, 4
          %s4440 = int_to_ptr.vmem [resolvable:$true] %s4439
          %s4441 = sshll.u32 %s4437, 4
          %s4442 = int_to_ptr.hbm [resolvable:$true] %s4441
          %4444 = dma.vmem_to_hbm [thread:$0]  %s4440, 384, %s4442, %s4424
        $region36: #{tpu_custom_call.1} parent=31 // pred_fallthru
          _
      $region32: #{tpu_custom_call.1} parent=5 // pred_fallthru
        _
      %p4445 = scmp.le.s32.totalorder 2, %s12
      // Predicated region
      $region37: #{tpu_custom_call.1} parent=5 // pred_check
        %p4446 = pneg %p4445
      $region38: #{tpu_custom_call.1} parent=5 // pred_check_branch
        %4448 = sbr.rel (%p4446) target = $region40
      $region39: #{tpu_custom_call.1} parent=5 // pred_region
        %s4449 = ssub.s32 %s12, 2
        // Predicated region
        $region41: #{tpu_custom_call.1} parent=39 // pred_check
          %p4450 = pneg %p133
        $region42: #{tpu_custom_call.1} parent=39 // pred_check_branch
          %4452 = sbr.rel (%p4450) target = $region44
        $region43: #{tpu_custom_call.1} parent=39 // pred_region
          %s4453 = sand.u32 %s118, 1
          %s4454 = scalar_lea.sflag [#allocation3], %s4453
          %s4455 = sand.u32 %s118, 1
          %s4456 = smul.addr %s4455, 24
          %s4457 = scalar_lea.vmem [#allocation2], %s4456
          %4459 = dma.done %s4454, 384
        $region44: #{tpu_custom_call.1} parent=39 // pred_fallthru
          _
      $region40: #{tpu_custom_call.1} parent=5 // pred_fallthru
        _
    $region6: #{tpu_custom_call.1} parent=1 // loop_footer
      %s16 = sadd.s32 1, %s12
    $region7: #{tpu_custom_call.1} parent=1 // loop_footer_branch
      %11 = sbr.rel target = $region3
    $region8: #{tpu_custom_call.1} parent=1 // loop_exit
      _
    %4460 = vsyncpa [#allocation3], 1
    %s4461 = scalar_lea.sflag [#allocation3], 1
    %4462 = vsyncpa %s4461, 1

</llo_original>
